<compile_context>
chip_gen: v7x
topology: tpu7x:2x2x1
jax: 0.10.0
libtpu: 0.0.40
codegen_flags: <defaults>
</compile_context>

<pallas_src>
import jax
import jax.numpy as jnp
from jax import lax
from jax.experimental import pallas as pl
from jax.experimental.pallas import tpu as pltpu

ODE_UNFOLDS = 6
EPSILON = 1e-8
TIME_PENALTY = 0.01
PONDER_EPS = 0.01
TIME_LIMIT = 100


def _ltc_adaptive_seq_kernel(
    # streamed per-(time-block, batch-block) inputs
    sen_num_ref, sen_den_ref,                        # (Tt, bt, U) sensory terms
    # loop-invariant parameters (pre-transformed in the wrapper)
    cm_t_ref, gv_ref, cg_ref,                        # (1, U)
    mu_ref, sigma_ref, w_pos_ref, w_erev_ref,        # (U, 1, U)  pre-syn axis leading
    out_w_ref, out_b_ref, halt_w_ref, halt_b_ref,    # (1, U) / (1, 1)
    # outputs
    seq_ref,     # (Tt, bt, U)  per-step hidden outputs
    h_ref,       # (bt, U)      carried hidden state (resident across t)
    rem_ref,     # (bt, 1)      per-sample sum over t of ponder "remainders"
    steps_ref,   # (bt, 1)      per-sample sum over t of (steps + 1)
):
    tb = pl.program_id(1)
    Tt = sen_num_ref.shape[0]
    bt = h_ref.shape[0]

    # hx=None -> zero initial hidden; bookkeeping accumulators reset per block.
    @pl.when(tb == 0)
    def _():
        h_ref[...] = jnp.zeros_like(h_ref)
        rem_ref[...] = jnp.zeros_like(rem_ref)
        steps_ref[...] = jnp.zeros_like(steps_ref)

    sigmoid = jax.nn.sigmoid
    budget = 1.0 - PONDER_EPS

    # hoist loop-invariant parameter loads
    cm_t = cm_t_ref[...]                 # softplus(cm) * ode_unfolds
    gv = gv_ref[...]                     # softplus(gleak) * vleak
    cg = cg_ref[...]                     # cm_t + softplus(gleak)
    mu_r = mu_ref[...]                   # (U, 1, U)
    sigma_r = sigma_ref[...]
    w_pos_r = w_pos_ref[...]             # softplus(w) * sparsity
    w_erev_r = w_erev_ref[...]           # softplus(w) * sparsity * erev
    out_w = out_w_ref[...]
    out_b = out_b_ref[...]
    halt_w = halt_w_ref[...]
    halt_b = halt_b_ref[...]

    def ltc_cell(hidden, sen_num, sen_den):
        # LTCCell._ode_solver (6 unfolds) + _map_outputs
        v_pre = hidden                                    # (bt, U)
        for _ in range(ODE_UNFOLDS):
            # gate[i, b, j] = sigmoid((v[b, i] - mu[i, j]) * sigma[i, j])
            v_t = jnp.transpose(v_pre)[:, :, None]        # (U, bt, 1)
            gate = sigmoid((v_t - mu_r) * sigma_r)        # (U, bt, U)
            # sum over the LEADING presynaptic axis -> plain VPU adds (no XLU)
            w_num = jnp.sum(w_erev_r * gate, axis=0) + sen_num   # (bt, U)
            w_den = jnp.sum(w_pos_r * gate, axis=0) + sen_den    # (bt, U)
            v_pre = (cm_t * v_pre + gv + w_num) / (cg + w_den + EPSILON)
        # output mapping: motor_size == state_size for FullyConnected wiring;
        # AdaptiveLTCCell carries this mapped value as the hidden state.
        return v_pre * out_w + out_b

    @pl.loop(0, Tt)
    def _time_step(tt):
        h_state = h_ref[...]                 # (bt, U) carried hidden state
        sen_num = sen_num_ref[tt]            # (bt, U) sensory numerator term
        sen_den = sen_den_ref[tt]            # (bt, U) sensory denominator term

        def ponder_cond(carry):
            step = carry[0]
            n_active = carry[-1]
            return jnp.logical_and(step < TIME_LIMIT - 1, n_active > 0.5)

        def ponder_body(carry):
            (step, hidden, total_hidden, halt_accum,
             total_rem, total_steps, cont, _) = carry
            # Lagged all-halted test: computed from cont at iteration entry so
            # the cross-lane max overlaps the cell compute; at most one extra
            # all-halted iteration runs and it contributes exactly 0.
            n_active = jnp.max(cont)
            hidden = ltc_cell(hidden, sen_num, sen_den)
            step_halt = sigmoid(
                jnp.sum(hidden * halt_w, axis=-1, keepdims=True) + halt_b)  # (bt,1)
            masked_halt = cont * step_halt
            halt_accum = halt_accum + masked_halt
            ending = jnp.where(
                jnp.logical_and(cont > 0.5, halt_accum + step_halt > budget),
                1.0, 0.0)
            cont = cont * (1.0 - ending)
            total_steps = total_steps + cont
            masked_rem = ending * (1.0 - halt_accum)
            total_hidden = total_hidden + (masked_halt + masked_rem) * hidden
            total_rem = total_rem + masked_halt
            return (step + 1, hidden, total_hidden, halt_accum,
                    total_rem, total_steps, cont, n_active)

        zeros_b1 = jnp.zeros((bt, 1), jnp.float32)
        carry0 = (jnp.int32(0), h_state, jnp.zeros_like(h_state),
                  zeros_b1, zeros_b1, zeros_b1,
                  jnp.ones((bt, 1), jnp.float32), jnp.float32(1.0))
        # Early-exit ponder loop: identical to the fixed PyTorch loop because
        # the reference `break` fires exactly when all samples have halted and
        # halted samples contribute exactly 0 to every accumulator afterwards.
        (_, hidden, total_hidden, halt_accum, total_rem, total_steps, cont, _) = (
            lax.while_loop(ponder_cond, ponder_body, carry0))

        # python `for ... else` tail (non-zero only for samples never halted)
        total_hidden = total_hidden + cont * (1.0 - halt_accum) * hidden

        seq_ref[tt] = total_hidden
        h_ref[...] = total_hidden
        rem_ref[...] = rem_ref[...] + total_rem
        steps_ref[...] = steps_ref[...] + total_steps + 1.0


def init_params(key, input_size, units):
    """Deterministic synthetic init matching LTCCell._init_ranges + wiring."""
    ks = jax.random.split(key, 12)

    def u(k, shape, lo, hi):
        return jax.random.uniform(k, shape, jnp.float32, lo, hi)

    inv_sqrt_u = 1.0 / (units ** 0.5)
    return dict(
        gleak=u(ks[0], (1, units), 0.001, 1.0),
        vleak=u(ks[1], (1, units), -0.2, 0.2),
        cm=u(ks[2], (1, units), 0.4, 0.6),
        sigma=u(ks[3], (units, units), 3.0, 8.0),
        mu=u(ks[4], (units, units), 0.3, 0.8),
        w=u(ks[5], (units, units), 0.001, 1.0),
        erev=jnp.where(jax.random.bernoulli(ks[6], 0.5, (units, units)),
                       1.0, -1.0).astype(jnp.float32),
        sparsity=jnp.ones((units, units), jnp.float32),          # fully connected
        s_sigma=u(ks[7], (input_size, units), 3.0, 8.0),
        s_mu=u(ks[8], (input_size, units), 0.3, 0.8),
        s_w=u(ks[9], (input_size, units), 0.001, 1.0),
        s_erev=jnp.where(jax.random.bernoulli(ks[10], 0.5, (input_size, units)),
                         1.0, -1.0).astype(jnp.float32),
        s_sparsity=jnp.ones((input_size, units), jnp.float32),
        in_w=jnp.ones((1, input_size), jnp.float32),
        in_b=jnp.zeros((1, input_size), jnp.float32),
        out_w=jnp.ones((1, units), jnp.float32),
        out_b=jnp.zeros((1, units), jnp.float32),
        halt_w=u(ks[11], (1, units), -inv_sqrt_u, inv_sqrt_u),
        halt_b=jnp.full((1, 1), -1.0, jnp.float32),              # initial_halting_bias
    )


def _pick_bt(B):
    """Batch tile: multiple of 8 (sublane aligned) when possible, capped so the
    ponder while_loop only waits on its own block's slowest sample; prefer >=2
    blocks so v7x's second TensorCore gets work (single-TC v5e/v6e are
    indifferent). Fallback bt=B keeps block dims equal to full array dims."""
    fallback = None
    for cand in (32, 24, 16, 8):
        if B % cand == 0:
            if B // cand >= 2:
                return cand
            if fallback is None:
                fallback = cand
    return fallback if fallback is not None else B
    # TODO(synk): for v7x, padding B to a multiple of 16 guarantees >=2
    # parallel batch blocks even for small batches.


def _pick_tt(L, cap=32):
    """Largest divisor of L up to `cap` timesteps per grid step (amortizes the
    ~600-cycle per-grid-step overhead and the tiny per-step DMAs)."""
    tt = 1
    for d in range(1, min(L, cap) + 1):
        if L % d == 0:
            tt = d
    return tt


def ltc_forward(x, params):
    """x: (B, L, S) batch-first. Returns (readout (B,L,U), h_final (B,U),
    total_ponder_cost scalar, total_ponder_steps scalar)."""
    B, L, S = x.shape
    U = params["gleak"].shape[1]
    softplus = jax.nn.softplus

    # ---- loop-invariant parameter transforms (hoisted to XLA) ----
    gleak = softplus(params["gleak"])                          # (1, U)
    cm_t = softplus(params["cm"]) * float(ODE_UNFOLDS)         # elapsed_time == 1.0
    gv = gleak * params["vleak"]
    cg = cm_t + gleak
    w_pos = softplus(params["w"]) * params["sparsity"]         # (U, U)
    w_erev = w_pos * params["erev"]
    mu_r = params["mu"][:, None, :]                            # (U, 1, U)
    sigma_r = params["sigma"][:, None, :]
    w_pos_r = w_pos[:, None, :]
    w_erev_r = w_erev[:, None, :]

    # ---- sensory synapse terms for all (L, B), precomputed in plain XLA ----
    x_mapped = x * params["in_w"].reshape(1, 1, S) + params["in_b"].reshape(1, 1, S)
    s_gate = jax.nn.sigmoid(
        (x_mapped[..., None] - params["s_mu"]) * params["s_sigma"])   # (B, L, S, U)
    s_w_pos = softplus(params["s_w"]) * params["s_sparsity"]          # (S, U)
    s_w_erev = s_w_pos * params["s_erev"]
    sen_num = jnp.sum(s_gate * s_w_erev, axis=2)               # (B, L, U)
    sen_den = jnp.sum(s_gate * s_w_pos, axis=2)                # (B, L, U)
    sen_num_t = jnp.transpose(sen_num, (1, 0, 2)).astype(jnp.float32)  # (L, B, U)
    sen_den_t = jnp.transpose(sen_den, (1, 0, 2)).astype(jnp.float32)

    param_arrays = [cm_t, gv, cg, mu_r, sigma_r, w_pos_r, w_erev_r,
                    params["out_w"], params["out_b"],
                    params["halt_w"], params["halt_b"]]

    bt = _pick_bt(B)
    nb = B // bt
    Tt = _pick_tt(L)
    nt = L // Tt

    stream_spec = pl.BlockSpec((Tt, bt, U), lambda b, t: (t, b, 0))
    in_specs = [stream_spec, stream_spec]
    in_specs += [pl.BlockSpec(p.shape, lambda b, t, _n=p.ndim: (0,) * _n)
                 for p in param_arrays]

    out_shapes = (
        jax.ShapeDtypeStruct((L, B, U), jnp.float32),   # per-step hidden outputs
        jax.ShapeDtypeStruct((B, U), jnp.float32),      # final hidden state
        jax.ShapeDtypeStruct((B, 1), jnp.float32),      # per-sample remainder sums
        jax.ShapeDtypeStruct((B, 1), jnp.float32),      # per-sample step sums
    )
    out_specs = (
        pl.BlockSpec((Tt, bt, U), lambda b, t: (t, b, 0)),
        pl.BlockSpec((bt, U), lambda b, t: (b, 0)),
        pl.BlockSpec((bt, 1), lambda b, t: (b, 0)),
        pl.BlockSpec((bt, 1), lambda b, t: (b, 0)),
    )

    seq, h_final, rem, steps = pl.pallas_call(
        _ltc_adaptive_seq_kernel,
        out_shape=out_shapes,
        grid_spec=pltpu.PrefetchScalarGridSpec(
            num_scalar_prefetch=0,
            grid=(nb, nt),
            in_specs=in_specs,
            out_specs=out_specs,
        ),
        compiler_params=pltpu.CompilerParams(
            dimension_semantics=("parallel", "arbitrary")),
    )(sen_num_t, sen_den_t, *param_arrays)

    readout = jnp.transpose(seq, (1, 0, 2))          # back to (B, L, U)
    # sum over t of batch means == (1/B) * sum over (t, b)
    total_ponder_cost = -TIME_PENALTY * jnp.sum(rem) / B
    total_ponder_steps = jnp.sum(steps) / B
    return readout, h_final, total_ponder_cost, total_ponder_steps


if __name__ == "__main__":
    key = jax.random.PRNGKey(0)
    k_x, k_p = jax.random.split(key)

    B, L, S, U = 2, 3, 20, 32          # batch, seq_len, input_size, units
    x = jax.random.normal(k_x, (B, L, S), dtype=jnp.float32)
    params = init_params(k_p, S, U)

    fwd = jax.jit(ltc_forward)
    readout, h_final, cost, steps = jax.block_until_ready(fwd(x, params))

    assert readout.shape == (B, L, U)
    assert h_final.shape == (B, U)
    assert cost.shape == () and steps.shape == ()
    assert bool(jnp.all(jnp.isfinite(readout)))
    assert bool(jnp.all(jnp.isfinite(h_final)))
    assert bool(jnp.isfinite(cost)) and bool(jnp.isfinite(steps))
    print("KERNEL_OK")
</pallas_src>

<mosaic_0001>
module attributes {stable_mosaic.version = 11 : i64} {
  func.func @_ltc_adaptive_seq_kernel(%arg0: i32, %arg1: i32, %arg2: memref<3x2x32xf32, #tpu.memory_space<vmem>>, %arg3: memref<3x2x32xf32, #tpu.memory_space<vmem>>, %arg4: memref<1x32xf32, #tpu.memory_space<vmem>>, %arg5: memref<1x32xf32, #tpu.memory_space<vmem>>, %arg6: memref<1x32xf32, #tpu.memory_space<vmem>>, %arg7: memref<32x1x32xf32, #tpu.memory_space<vmem>>, %arg8: memref<32x1x32xf32, #tpu.memory_space<vmem>>, %arg9: memref<32x1x32xf32, #tpu.memory_space<vmem>>, %arg10: memref<32x1x32xf32, #tpu.memory_space<vmem>>, %arg11: memref<1x32xf32, #tpu.memory_space<vmem>>, %arg12: memref<1x32xf32, #tpu.memory_space<vmem>>, %arg13: memref<1x32xf32, #tpu.memory_space<vmem>>, %arg14: memref<1x1xf32, #tpu.memory_space<vmem>>, %arg15: memref<3x2x32xf32, #tpu.memory_space<vmem>>, %arg16: memref<2x32xf32, #tpu.memory_space<vmem>>, %arg17: memref<2x1xf32, #tpu.memory_space<vmem>>, %arg18: memref<2x1xf32, #tpu.memory_space<vmem>>) attributes {dimension_semantics = [#tpu.dimension_semantics<parallel>, #tpu.dimension_semantics<arbitrary>], iteration_bounds = array<i64: 1, 1>, scalar_prefetch = 0 : i64, scratch_operands = 0 : i64, tpu.core_type = #tpu.core_type<tc>, window_params = [{transform_indices = @transform_0, window_bounds = array<i64: 3, 2, 32>}, {transform_indices = @transform_1, window_bounds = array<i64: 3, 2, 32>}, {pipeline_mode = #tpu.pipeline_mode<synchronous>, transform_indices = @transform_2, window_bounds = array<i64: 1, 32>}, {pipeline_mode = #tpu.pipeline_mode<synchronous>, transform_indices = @transform_3, window_bounds = array<i64: 1, 32>}, {pipeline_mode = #tpu.pipeline_mode<synchronous>, transform_indices = @transform_4, window_bounds = array<i64: 1, 32>}, {pipeline_mode = #tpu.pipeline_mode<synchronous>, transform_indices = @transform_5, window_bounds = array<i64: 32, 1, 32>}, {pipeline_mode = #tpu.pipeline_mode<synchronous>, transform_indices = @transform_6, window_bounds = array<i64: 32, 1, 32>}, {pipeline_mode = #tpu.pipeline_mode<synchronous>, transform_indices = @transform_7, window_bounds = array<i64: 32, 1, 32>}, {pipeline_mode = #tpu.pipeline_mode<synchronous>, transform_indices = @transform_8, window_bounds = array<i64: 32, 1, 32>}, {pipeline_mode = #tpu.pipeline_mode<synchronous>, transform_indices = @transform_9, window_bounds = array<i64: 1, 32>}, {pipeline_mode = #tpu.pipeline_mode<synchronous>, transform_indices = @transform_10, window_bounds = array<i64: 1, 32>}, {pipeline_mode = #tpu.pipeline_mode<synchronous>, transform_indices = @transform_11, window_bounds = array<i64: 1, 32>}, {pipeline_mode = #tpu.pipeline_mode<synchronous>, transform_indices = @transform_12, window_bounds = array<i64: 1, 1>}, {transform_indices = @transform_13, window_bounds = array<i64: 3, 2, 32>}, {transform_indices = @transform_14, window_bounds = array<i64: 2, 32>}, {transform_indices = @transform_15, window_bounds = array<i64: 2, 1>}, {transform_indices = @transform_16, window_bounds = array<i64: 2, 1>}]} {
    %c0_i32 = arith.constant 0 : i32
    %0 = arith.cmpi eq, %arg1, %c0_i32 : i32
    %1 = arith.extui %0 : i1 to i32
    %c0_i32_0 = arith.constant 0 : i32
    %2 = arith.cmpi ne, %1, %c0_i32_0 : i32
    scf.if %2 {
      %cst = arith.constant 0.000000e+00 : f32
      %15 = vector.broadcast %cst : f32 to vector<2x32xf32>
      %c0_28 = arith.constant 0 : index
      %c0_29 = arith.constant 0 : index
      %16 = vector.load %arg16[%c0_28, %c0_29] : memref<2x32xf32, #tpu.memory_space<vmem>>, vector<2x32xf32>
      tpu.vector_store %arg16[%c0_28, %c0_29], %15 {strides = array<i32>} : memref<2x32xf32, #tpu.memory_space<vmem>>, vector<2x32xf32>,
      %cst_30 = arith.constant 0.000000e+00 : f32
      %17 = vector.broadcast %cst_30 : f32 to vector<2x1xf32>
      %c0_31 = arith.constant 0 : index
      %c0_32 = arith.constant 0 : index
      %18 = vector.load %arg17[%c0_31, %c0_32] : memref<2x1xf32, #tpu.memory_space<vmem>>, vector<2x1xf32>
      tpu.vector_store %arg17[%c0_31, %c0_32], %17 {strides = array<i32>} : memref<2x1xf32, #tpu.memory_space<vmem>>, vector<2x1xf32>,
      %cst_33 = arith.constant 0.000000e+00 : f32
      %19 = vector.broadcast %cst_33 : f32 to vector<2x1xf32>
      %c0_34 = arith.constant 0 : index
      %c0_35 = arith.constant 0 : index
      %20 = vector.load %arg18[%c0_34, %c0_35] : memref<2x1xf32, #tpu.memory_space<vmem>>, vector<2x1xf32>
      tpu.vector_store %arg18[%c0_34, %c0_35], %19 {strides = array<i32>} : memref<2x1xf32, #tpu.memory_space<vmem>>, vector<2x1xf32>,
    } else {
    }
    %c0 = arith.constant 0 : index
    %c0_1 = arith.constant 0 : index
    %3 = vector.load %arg4[%c0, %c0_1] : memref<1x32xf32, #tpu.memory_space<vmem>>, vector<1x32xf32>
    %c0_2 = arith.constant 0 : index
    %c0_3 = arith.constant 0 : index
    %4 = vector.load %arg5[%c0_2, %c0_3] : memref<1x32xf32, #tpu.memory_space<vmem>>, vector<1x32xf32>
    %c0_4 = arith.constant 0 : index
    %c0_5 = arith.constant 0 : index
    %5 = vector.load %arg6[%c0_4, %c0_5] : memref<1x32xf32, #tpu.memory_space<vmem>>, vector<1x32xf32>
    %c0_6 = arith.constant 0 : index
    %c0_7 = arith.constant 0 : index
    %c0_8 = arith.constant 0 : index
    %6 = vector.load %arg7[%c0_6, %c0_7, %c0_8] : memref<32x1x32xf32, #tpu.memory_space<vmem>>, vector<32x1x32xf32>
    %c0_9 = arith.constant 0 : index
    %c0_10 = arith.constant 0 : index
    %c0_11 = arith.constant 0 : index
    %7 = vector.load %arg8[%c0_9, %c0_10, %c0_11] : memref<32x1x32xf32, #tpu.memory_space<vmem>>, vector<32x1x32xf32>
    %c0_12 = arith.constant 0 : index
    %c0_13 = arith.constant 0 : index
    %c0_14 = arith.constant 0 : index
    %8 = vector.load %arg9[%c0_12, %c0_13, %c0_14] : memref<32x1x32xf32, #tpu.memory_space<vmem>>, vector<32x1x32xf32>
    %c0_15 = arith.constant 0 : index
    %c0_16 = arith.constant 0 : index
    %c0_17 = arith.constant 0 : index
    %9 = vector.load %arg10[%c0_15, %c0_16, %c0_17] : memref<32x1x32xf32, #tpu.memory_space<vmem>>, vector<32x1x32xf32>
    %c0_18 = arith.constant 0 : index
    %c0_19 = arith.constant 0 : index
    %10 = vector.load %arg11[%c0_18, %c0_19] : memref<1x32xf32, #tpu.memory_space<vmem>>, vector<1x32xf32>
    %c0_20 = arith.constant 0 : index
    %c0_21 = arith.constant 0 : index
    %11 = vector.load %arg12[%c0_20, %c0_21] : memref<1x32xf32, #tpu.memory_space<vmem>>, vector<1x32xf32>
    %c0_22 = arith.constant 0 : index
    %c0_23 = arith.constant 0 : index
    %12 = vector.load %arg13[%c0_22, %c0_23] : memref<1x32xf32, #tpu.memory_space<vmem>>, vector<1x32xf32>
    %c0_24 = arith.constant 0 : index
    %c0_25 = arith.constant 0 : index
    %13 = vector.load %arg14[%c0_24, %c0_25] : memref<1x1xf32, #tpu.memory_space<vmem>>, vector<1x1xf32>
    %c0_i32_26 = arith.constant 0 : i32
    %c3_i32 = arith.constant 3 : i32
    %14 = arith.addi %c0_i32_26, %c3_i32 : i32
    %c1_i32 = arith.constant 1 : i32
    scf.for %arg19 = %c0_i32_26 to %14 step %c1_i32  : i32 {
      %c1_i32_28 = arith.constant 1 : i32
      %15 = arith.muli %arg19, %c1_i32_28 : i32
      %c0_i32_29 = arith.constant 0 : i32
      %16 = arith.addi %c0_i32_29, %15 : i32
      %c0_30 = arith.constant 0 : index
      %c0_31 = arith.constant 0 : index
      %17 = vector.load %arg16[%c0_30, %c0_31] : memref<2x32xf32, #tpu.memory_space<vmem>>, vector<2x32xf32>
      %18 = arith.index_cast %16 : i32 to index
      %c0_32 = arith.constant 0 : index
      %c0_33 = arith.constant 0 : index
      %19 = vector.load %arg2[%18, %c0_32, %c0_33] : memref<3x2x32xf32, #tpu.memory_space<vmem>>, vector<1x2x32xf32>
      %20 = vector.shape_cast %19 : vector<1x2x32xf32> to vector<2x32xf32>
      %21 = arith.index_cast %16 : i32 to index
      %c0_34 = arith.constant 0 : index
      %c0_35 = arith.constant 0 : index
      %22 = vector.load %arg3[%21, %c0_34, %c0_35] : memref<3x2x32xf32, #tpu.memory_space<vmem>>, vector<1x2x32xf32>
      %23 = vector.shape_cast %22 : vector<1x2x32xf32> to vector<2x32xf32>
      %cst = arith.constant 0.000000e+00 : f32
      %24 = vector.broadcast %cst : f32 to vector<2x1xf32>
      %cst_36 = arith.constant 0.000000e+00 : f32
      %25 = vector.broadcast %cst_36 : f32 to vector<2x32xf32>
      %cst_37 = arith.constant 1.000000e+00 : f32
      %26 = vector.broadcast %cst_37 : f32 to vector<2x1xf32>
      %c0_i32_38 = arith.constant 0 : i32
      %cst_39 = arith.constant 1.000000e+00 : f32
      %27:8 = scf.while (%arg20 = %c0_i32_38, %arg21 = %17, %arg22 = %25, %arg23 = %24, %arg24 = %24, %arg25 = %24, %arg26 = %26, %arg27 = %cst_39) : (i32, vector<2x32xf32>, vector<2x32xf32>, vector<2x1xf32>, vector<2x1xf32>, vector<2x1xf32>, vector<2x1xf32>, f32) -> (i32, vector<2x32xf32>, vector<2x32xf32>, vector<2x1xf32>, vector<2x1xf32>, vector<2x1xf32>, vector<2x1xf32>, f32) {
        %c99_i32 = arith.constant 99 : i32
        %47 = arith.cmpi slt, %arg20, %c99_i32 : i32
        %cst_54 = arith.constant 5.000000e-01 : f32
        %48 = arith.cmpf ogt, %arg27, %cst_54 : f32
        %49 = arith.andi %47, %48 : i1
        scf.condition(%49) %arg20, %arg21, %arg22, %arg23, %arg24, %arg25, %arg26, %arg27 : i32, vector<2x32xf32>, vector<2x32xf32>, vector<2x1xf32>, vector<2x1xf32>, vector<2x1xf32>, vector<2x1xf32>, f32
      } do {
      ^bb0(%arg20: i32, %arg21: vector<2x32xf32>, %arg22: vector<2x32xf32>, %arg23: vector<2x1xf32>, %arg24: vector<2x1xf32>, %arg25: vector<2x1xf32>, %arg26: vector<2x1xf32>, %arg27: f32):
        %47 = vector.shape_cast %arg26 : vector<2x1xf32> to vector<1x2x1xf32>
        %cst_54 = arith.constant dense<0xFF800000> : vector<1xf32>
        %48 = vector.multi_reduction <maximumf>, %47, %cst_54 [1, 2] : vector<1x2x1xf32> to vector<1xf32>
        %49 = vector.shape_cast %48 : vector<1xf32> to vector<1x1x1xf32>
        %50 = vector.extract %49[0, 0, 0] : f32 from vector<1x1x1xf32>
        %51 = tpu.transpose %arg21, [1, 0] : vector<2x32xf32> -> vector<32x2xf32>
        %52 = vector.shape_cast %51 : vector<32x2xf32> to vector<32x2x1xf32>
        %53 = vector.broadcast %52 : vector<32x2x1xf32> to vector<32x2x32xf32>
        %54 = vector.broadcast %6 : vector<32x1x32xf32> to vector<32x2x32xf32>
        %55 = arith.subf %53, %54 : vector<32x2x32xf32>
        %56 = vector.broadcast %7 : vector<32x1x32xf32> to vector<32x2x32xf32>
        %57 = arith.mulf %55, %56 : vector<32x2x32xf32>
        %58 = arith.negf %57 : vector<32x2x32xf32>
        %59 = math.exp %58 : vector<32x2x32xf32>
        %cst_55 = arith.constant 1.000000e+00 : f32
        %60 = vector.broadcast %cst_55 : f32 to vector<32x2x32xf32>
        %61 = arith.addf %60, %59 : vector<32x2x32xf32>
        %62 = arith.divf %60, %61 : vector<32x2x32xf32>
        %63 = vector.broadcast %9 : vector<32x1x32xf32> to vector<32x2x32xf32>
        %64 = arith.mulf %63, %62 : vector<32x2x32xf32>
        %cst_56 = arith.constant dense<0.000000e+00> : vector<2x32xf32>
        %65 = vector.multi_reduction <add>, %64, %cst_56 [0] : vector<32x2x32xf32> to vector<2x32xf32>
        %66 = arith.addf %65, %20 : vector<2x32xf32>
        %67 = vector.broadcast %8 : vector<32x1x32xf32> to vector<32x2x32xf32>
        %68 = arith.mulf %67, %62 : vector<32x2x32xf32>
        %cst_57 = arith.constant dense<0.000000e+00> : vector<2x32xf32>
        %69 = vector.multi_reduction <add>, %68, %cst_57 [0] : vector<32x2x32xf32> to vector<2x32xf32>
        %70 = arith.addf %69, %23 : vector<2x32xf32>
        %71 = vector.broadcast %3 : vector<1x32xf32> to vector<2x32xf32>
        %72 = arith.mulf %71, %arg21 : vector<2x32xf32>
        %73 = vector.broadcast %4 : vector<1x32xf32> to vector<2x32xf32>
        %74 = arith.addf %72, %73 : vector<2x32xf32>
        %75 = arith.addf %74, %66 : vector<2x32xf32>
        %76 = vector.broadcast %5 : vector<1x32xf32> to vector<2x32xf32>
        %77 = arith.addf %76, %70 : vector<2x32xf32>
        %cst_58 = arith.constant 9.99999993E-9 : f32
        %78 = vector.broadcast %cst_58 : f32 to vector<2x32xf32>
        %79 = arith.addf %77, %78 : vector<2x32xf32>
        %80 = arith.divf %75, %79 : vector<2x32xf32>
        %81 = tpu.transpose %80, [1, 0] : vector<2x32xf32> -> vector<32x2xf32>
        %82 = vector.shape_cast %81 : vector<32x2xf32> to vector<32x2x1xf32>
        %83 = vector.broadcast %82 : vector<32x2x1xf32> to vector<32x2x32xf32>
        %84 = vector.broadcast %6 : vector<32x1x32xf32> to vector<32x2x32xf32>
        %85 = arith.subf %83, %84 : vector<32x2x32xf32>
        %86 = vector.broadcast %7 : vector<32x1x32xf32> to vector<32x2x32xf32>
        %87 = arith.mulf %85, %86 : vector<32x2x32xf32>
        %88 = arith.negf %87 : vector<32x2x32xf32>
        %89 = math.exp %88 : vector<32x2x32xf32>
        %cst_59 = arith.constant 1.000000e+00 : f32
        %90 = vector.broadcast %cst_59 : f32 to vector<32x2x32xf32>
        %91 = arith.addf %90, %89 : vector<32x2x32xf32>
        %92 = arith.divf %90, %91 : vector<32x2x32xf32>
        %93 = vector.broadcast %9 : vector<32x1x32xf32> to vector<32x2x32xf32>
        %94 = arith.mulf %93, %92 : vector<32x2x32xf32>
        %cst_60 = arith.constant dense<0.000000e+00> : vector<2x32xf32>
        %95 = vector.multi_reduction <add>, %94, %cst_60 [0] : vector<32x2x32xf32> to vector<2x32xf32>
        %96 = arith.addf %95, %20 : vector<2x32xf32>
        %97 = vector.broadcast %8 : vector<32x1x32xf32> to vector<32x2x32xf32>
        %98 = arith.mulf %97, %92 : vector<32x2x32xf32>
        %cst_61 = arith.constant dense<0.000000e+00> : vector<2x32xf32>
        %99 = vector.multi_reduction <add>, %98, %cst_61 [0] : vector<32x2x32xf32> to vector<2x32xf32>
        %100 = arith.addf %99, %23 : vector<2x32xf32>
        %101 = vector.broadcast %3 : vector<1x32xf32> to vector<2x32xf32>
        %102 = arith.mulf %101, %80 : vector<2x32xf32>
        %103 = vector.broadcast %4 : vector<1x32xf32> to vector<2x32xf32>
        %104 = arith.addf %102, %103 : vector<2x32xf32>
        %105 = arith.addf %104, %96 : vector<2x32xf32>
        %106 = vector.broadcast %5 : vector<1x32xf32> to vector<2x32xf32>
        %107 = arith.addf %106, %100 : vector<2x32xf32>
        %cst_62 = arith.constant 9.99999993E-9 : f32
        %108 = vector.broadcast %cst_62 : f32 to vector<2x32xf32>
        %109 = arith.addf %107, %108 : vector<2x32xf32>
        %110 = arith.divf %105, %109 : vector<2x32xf32>
        %111 = tpu.transpose %110, [1, 0] : vector<2x32xf32> -> vector<32x2xf32>
        %112 = vector.shape_cast %111 : vector<32x2xf32> to vector<32x2x1xf32>
        %113 = vector.broadcast %112 : vector<32x2x1xf32> to vector<32x2x32xf32>
        %114 = vector.broadcast %6 : vector<32x1x32xf32> to vector<32x2x32xf32>
        %115 = arith.subf %113, %114 : vector<32x2x32xf32>
        %116 = vector.broadcast %7 : vector<32x1x32xf32> to vector<32x2x32xf32>
        %117 = arith.mulf %115, %116 : vector<32x2x32xf32>
        %118 = arith.negf %117 : vector<32x2x32xf32>
        %119 = math.exp %118 : vector<32x2x32xf32>
        %cst_63 = arith.constant 1.000000e+00 : f32
        %120 = vector.broadcast %cst_63 : f32 to vector<32x2x32xf32>
        %121 = arith.addf %120, %119 : vector<32x2x32xf32>
        %122 = arith.divf %120, %121 : vector<32x2x32xf32>
        %123 = vector.broadcast %9 : vector<32x1x32xf32> to vector<32x2x32xf32>
        %124 = arith.mulf %123, %122 : vector<32x2x32xf32>
        %cst_64 = arith.constant dense<0.000000e+00> : vector<2x32xf32>
        %125 = vector.multi_reduction <add>, %124, %cst_64 [0] : vector<32x2x32xf32> to vector<2x32xf32>
        %126 = arith.addf %125, %20 : vector<2x32xf32>
        %127 = vector.broadcast %8 : vector<32x1x32xf32> to vector<32x2x32xf32>
        %128 = arith.mulf %127, %122 : vector<32x2x32xf32>
        %cst_65 = arith.constant dense<0.000000e+00> : vector<2x32xf32>
        %129 = vector.multi_reduction <add>, %128, %cst_65 [0] : vector<32x2x32xf32> to vector<2x32xf32>
        %130 = arith.addf %129, %23 : vector<2x32xf32>
        %131 = vector.broadcast %3 : vector<1x32xf32> to vector<2x32xf32>
        %132 = arith.mulf %131, %110 : vector<2x32xf32>
        %133 = vector.broadcast %4 : vector<1x32xf32> to vector<2x32xf32>
        %134 = arith.addf %132, %133 : vector<2x32xf32>
        %135 = arith.addf %134, %126 : vector<2x32xf32>
        %136 = vector.broadcast %5 : vector<1x32xf32> to vector<2x32xf32>
        %137 = arith.addf %136, %130 : vector<2x32xf32>
        %cst_66 = arith.constant 9.99999993E-9 : f32
        %138 = vector.broadcast %cst_66 : f32 to vector<2x32xf32>
        %139 = arith.addf %137, %138 : vector<2x32xf32>
        %140 = arith.divf %135, %139 : vector<2x32xf32>
        %141 = tpu.transpose %140, [1, 0] : vector<2x32xf32> -> vector<32x2xf32>
        %142 = vector.shape_cast %141 : vector<32x2xf32> to vector<32x2x1xf32>
        %143 = vector.broadcast %142 : vector<32x2x1xf32> to vector<32x2x32xf32>
        %144 = vector.broadcast %6 : vector<32x1x32xf32> to vector<32x2x32xf32>
        %145 = arith.subf %143, %144 : vector<32x2x32xf32>
        %146 = vector.broadcast %7 : vector<32x1x32xf32> to vector<32x2x32xf32>
        %147 = arith.mulf %145, %146 : vector<32x2x32xf32>
        %148 = arith.negf %147 : vector<32x2x32xf32>
        %149 = math.exp %148 : vector<32x2x32xf32>
        %cst_67 = arith.constant 1.000000e+00 : f32
        %150 = vector.broadcast %cst_67 : f32 to vector<32x2x32xf32>
        %151 = arith.addf %150, %149 : vector<32x2x32xf32>
        %152 = arith.divf %150, %151 : vector<32x2x32xf32>
        %153 = vector.broadcast %9 : vector<32x1x32xf32> to vector<32x2x32xf32>
        %154 = arith.mulf %153, %152 : vector<32x2x32xf32>
        %cst_68 = arith.constant dense<0.000000e+00> : vector<2x32xf32>
        %155 = vector.multi_reduction <add>, %154, %cst_68 [0] : vector<32x2x32xf32> to vector<2x32xf32>
        %156 = arith.addf %155, %20 : vector<2x32xf32>
        %157 = vector.broadcast %8 : vector<32x1x32xf32> to vector<32x2x32xf32>
        %158 = arith.mulf %157, %152 : vector<32x2x32xf32>
        %cst_69 = arith.constant dense<0.000000e+00> : vector<2x32xf32>
        %159 = vector.multi_reduction <add>, %158, %cst_69 [0] : vector<32x2x32xf32> to vector<2x32xf32>
        %160 = arith.addf %159, %23 : vector<2x32xf32>
        %161 = vector.broadcast %3 : vector<1x32xf32> to vector<2x32xf32>
        %162 = arith.mulf %161, %140 : vector<2x32xf32>
        %163 = vector.broadcast %4 : vector<1x32xf32> to vector<2x32xf32>
        %164 = arith.addf %162, %163 : vector<2x32xf32>
        %165 = arith.addf %164, %156 : vector<2x32xf32>
        %166 = vector.broadcast %5 : vector<1x32xf32> to vector<2x32xf32>
        %167 = arith.addf %166, %160 : vector<2x32xf32>
        %cst_70 = arith.constant 9.99999993E-9 : f32
        %168 = vector.broadcast %cst_70 : f32 to vector<2x32xf32>
        %169 = arith.addf %167, %168 : vector<2x32xf32>
        %170 = arith.divf %165, %169 : vector<2x32xf32>
        %171 = tpu.transpose %170, [1, 0] : vector<2x32xf32> -> vector<32x2xf32>
        %172 = vector.shape_cast %171 : vector<32x2xf32> to vector<32x2x1xf32>
        %173 = vector.broadcast %172 : vector<32x2x1xf32> to vector<32x2x32xf32>
        %174 = vector.broadcast %6 : vector<32x1x32xf32> to vector<32x2x32xf32>
        %175 = arith.subf %173, %174 : vector<32x2x32xf32>
        %176 = vector.broadcast %7 : vector<32x1x32xf32> to vector<32x2x32xf32>
        %177 = arith.mulf %175, %176 : vector<32x2x32xf32>
        %178 = arith.negf %177 : vector<32x2x32xf32>
        %179 = math.exp %178 : vector<32x2x32xf32>
        %cst_71 = arith.constant 1.000000e+00 : f32
        %180 = vector.broadcast %cst_71 : f32 to vector<32x2x32xf32>
        %181 = arith.addf %180, %179 : vector<32x2x32xf32>
        %182 = arith.divf %180, %181 : vector<32x2x32xf32>
        %183 = vector.broadcast %9 : vector<32x1x32xf32> to vector<32x2x32xf32>
        %184 = arith.mulf %183, %182 : vector<32x2x32xf32>
        %cst_72 = arith.constant dense<0.000000e+00> : vector<2x32xf32>
        %185 = vector.multi_reduction <add>, %184, %cst_72 [0] : vector<32x2x32xf32> to vector<2x32xf32>
        %186 = arith.addf %185, %20 : vector<2x32xf32>
        %187 = vector.broadcast %8 : vector<32x1x32xf32> to vector<32x2x32xf32>
        %188 = arith.mulf %187, %182 : vector<32x2x32xf32>
        %cst_73 = arith.constant dense<0.000000e+00> : vector<2x32xf32>
        %189 = vector.multi_reduction <add>, %188, %cst_73 [0] : vector<32x2x32xf32> to vector<2x32xf32>
        %190 = arith.addf %189, %23 : vector<2x32xf32>
        %191 = vector.broadcast %3 : vector<1x32xf32> to vector<2x32xf32>
        %192 = arith.mulf %191, %170 : vector<2x32xf32>
        %193 = vector.broadcast %4 : vector<1x32xf32> to vector<2x32xf32>
        %194 = arith.addf %192, %193 : vector<2x32xf32>
        %195 = arith.addf %194, %186 : vector<2x32xf32>
        %196 = vector.broadcast %5 : vector<1x32xf32> to vector<2x32xf32>
        %197 = arith.addf %196, %190 : vector<2x32xf32>
        %cst_74 = arith.constant 9.99999993E-9 : f32
        %198 = vector.broadcast %cst_74 : f32 to vector<2x32xf32>
        %199 = arith.addf %197, %198 : vector<2x32xf32>
        %200 = arith.divf %195, %199 : vector<2x32xf32>
        %201 = tpu.transpose %200, [1, 0] : vector<2x32xf32> -> vector<32x2xf32>
        %202 = vector.shape_cast %201 : vector<32x2xf32> to vector<32x2x1xf32>
        %203 = vector.broadcast %202 : vector<32x2x1xf32> to vector<32x2x32xf32>
        %204 = vector.broadcast %6 : vector<32x1x32xf32> to vector<32x2x32xf32>
        %205 = arith.subf %203, %204 : vector<32x2x32xf32>
        %206 = vector.broadcast %7 : vector<32x1x32xf32> to vector<32x2x32xf32>
        %207 = arith.mulf %205, %206 : vector<32x2x32xf32>
        %208 = arith.negf %207 : vector<32x2x32xf32>
        %209 = math.exp %208 : vector<32x2x32xf32>
        %cst_75 = arith.constant 1.000000e+00 : f32
        %210 = vector.broadcast %cst_75 : f32 to vector<32x2x32xf32>
        %211 = arith.addf %210, %209 : vector<32x2x32xf32>
        %212 = arith.divf %210, %211 : vector<32x2x32xf32>
        %213 = vector.broadcast %9 : vector<32x1x32xf32> to vector<32x2x32xf32>
        %214 = arith.mulf %213, %212 : vector<32x2x32xf32>
        %cst_76 = arith.constant dense<0.000000e+00> : vector<2x32xf32>
        %215 = vector.multi_reduction <add>, %214, %cst_76 [0] : vector<32x2x32xf32> to vector<2x32xf32>
        %216 = arith.addf %215, %20 : vector<2x32xf32>
        %217 = vector.broadcast %8 : vector<32x1x32xf32> to vector<32x2x32xf32>
        %218 = arith.mulf %217, %212 : vector<32x2x32xf32>
        %cst_77 = arith.constant dense<0.000000e+00> : vector<2x32xf32>
        %219 = vector.multi_reduction <add>, %218, %cst_77 [0] : vector<32x2x32xf32> to vector<2x32xf32>
        %220 = arith.addf %219, %23 : vector<2x32xf32>
        %221 = vector.broadcast %3 : vector<1x32xf32> to vector<2x32xf32>
        %222 = arith.mulf %221, %200 : vector<2x32xf32>
        %223 = vector.broadcast %4 : vector<1x32xf32> to vector<2x32xf32>
        %224 = arith.addf %222, %223 : vector<2x32xf32>
        %225 = arith.addf %224, %216 : vector<2x32xf32>
        %226 = vector.broadcast %5 : vector<1x32xf32> to vector<2x32xf32>
        %227 = arith.addf %226, %220 : vector<2x32xf32>
        %cst_78 = arith.constant 9.99999993E-9 : f32
        %228 = vector.broadcast %cst_78 : f32 to vector<2x32xf32>
        %229 = arith.addf %227, %228 : vector<2x32xf32>
        %230 = arith.divf %225, %229 : vector<2x32xf32>
        %231 = vector.broadcast %10 : vector<1x32xf32> to vector<2x32xf32>
        %232 = arith.mulf %230, %231 : vector<2x32xf32>
        %233 = vector.broadcast %11 : vector<1x32xf32> to vector<2x32xf32>
        %234 = arith.addf %232, %233 : vector<2x32xf32>
        %235 = vector.broadcast %12 : vector<1x32xf32> to vector<2x32xf32>
        %236 = arith.mulf %234, %235 : vector<2x32xf32>
        %cst_79 = arith.constant dense<0.000000e+00> : vector<2xf32>
        %237 = vector.multi_reduction <add>, %236, %cst_79 [1] : vector<2x32xf32> to vector<2xf32>
        %238 = vector.shape_cast %237 : vector<2xf32> to vector<2x1xf32>
        %239 = vector.broadcast %13 : vector<1x1xf32> to vector<2x1xf32>
        %240 = arith.addf %238, %239 : vector<2x1xf32>
        %241 = arith.negf %240 : vector<2x1xf32>
        %242 = math.exp %241 : vector<2x1xf32>
        %cst_80 = arith.constant 1.000000e+00 : f32
        %243 = vector.broadcast %cst_80 : f32 to vector<2x1xf32>
        %244 = arith.addf %243, %242 : vector<2x1xf32>
        %245 = arith.divf %243, %244 : vector<2x1xf32>
        %246 = arith.mulf %arg26, %245 : vector<2x1xf32>
        %247 = arith.addf %arg23, %246 : vector<2x1xf32>
        %cst_81 = arith.constant 5.000000e-01 : f32
        %248 = vector.broadcast %cst_81 : f32 to vector<2x1xf32>
        %249 = arith.cmpf ogt, %arg26, %248 : vector<2x1xf32>
        %250 = arith.addf %247, %245 : vector<2x1xf32>
        %cst_82 = arith.constant 9.900000e-01 : f32
        %251 = vector.broadcast %cst_82 : f32 to vector<2x1xf32>
        %252 = arith.cmpf ogt, %250, %251 : vector<2x1xf32>
        %253 = arith.andi %249, %252 : vector<2x1xi1>
        %cst_83 = arith.constant 1.000000e+00 : f32
        %cst_84 = arith.constant 0.000000e+00 : f32
        %254 = vector.broadcast %cst_83 : f32 to vector<2x1xf32>
        %255 = vector.broadcast %cst_84 : f32 to vector<2x1xf32>
        %256 = arith.select %253, %254, %255 : vector<2x1xi1>, vector<2x1xf32>
        %cst_85 = arith.constant 1.000000e+00 : f32
        %257 = vector.broadcast %cst_85 : f32 to vector<2x1xf32>
        %258 = arith.subf %257, %256 : vector<2x1xf32>
        %259 = arith.mulf %arg26, %258 : vector<2x1xf32>
        %260 = arith.addf %arg25, %259 : vector<2x1xf32>
        %cst_86 = arith.constant 1.000000e+00 : f32
        %261 = vector.broadcast %cst_86 : f32 to vector<2x1xf32>
        %262 = arith.subf %261, %247 : vector<2x1xf32>
        %263 = arith.mulf %256, %262 : vector<2x1xf32>
        %264 = arith.addf %246, %263 : vector<2x1xf32>
        %265 = vector.broadcast %264 : vector<2x1xf32> to vector<2x32xf32>
        %266 = arith.mulf %265, %234 : vector<2x32xf32>
        %267 = arith.addf %arg22, %266 : vector<2x32xf32>
        %268 = arith.addf %arg24, %246 : vector<2x1xf32>
        %c1_i32_87 = arith.constant 1 : i32
        %269 = arith.addi %arg20, %c1_i32_87 : i32
        scf.yield %269, %234, %267, %247, %268, %260, %259, %50 : i32, vector<2x32xf32>, vector<2x32xf32>, vector<2x1xf32>, vector<2x1xf32>, vector<2x1xf32>, vector<2x1xf32>, f32
      }
      %cst_40 = arith.constant 1.000000e+00 : f32
      %28 = vector.broadcast %cst_40 : f32 to vector<2x1xf32>
      %29 = arith.subf %28, %27#3 : vector<2x1xf32>
      %30 = arith.mulf %27#6, %29 : vector<2x1xf32>
      %31 = vector.broadcast %30 : vector<2x1xf32> to vector<2x32xf32>
      %32 = arith.mulf %31, %27#1 : vector<2x32xf32>
      %33 = arith.addf %27#2, %32 : vector<2x32xf32>
      %34 = arith.index_cast %16 : i32 to index
      %c0_41 = arith.constant 0 : index
      %c0_42 = arith.constant 0 : index
      %35 = vector.load %arg15[%34, %c0_41, %c0_42] : memref<3x2x32xf32, #tpu.memory_space<vmem>>, vector<1x2x32xf32>
      %36 = vector.shape_cast %35 : vector<1x2x32xf32> to vector<2x32xf32>
      %37 = vector.shape_cast %33 : vector<2x32xf32> to vector<1x2x32xf32>
      tpu.vector_store %arg15[%34, %c0_41, %c0_42], %37 {strides = array<i32>} : memref<3x2x32xf32, #tpu.memory_space<vmem>>, vector<1x2x32xf32>,
      %c0_43 = arith.constant 0 : index
      %c0_44 = arith.constant 0 : index
      %38 = vector.load %arg16[%c0_43, %c0_44] : memref<2x32xf32, #tpu.memory_space<vmem>>, vector<2x32xf32>
      tpu.vector_store %arg16[%c0_43, %c0_44], %33 {strides = array<i32>} : memref<2x32xf32, #tpu.memory_space<vmem>>, vector<2x32xf32>,
      %c0_45 = arith.constant 0 : index
      %c0_46 = arith.constant 0 : index
      %39 = vector.load %arg17[%c0_45, %c0_46] : memref<2x1xf32, #tpu.memory_space<vmem>>, vector<2x1xf32>
      %40 = arith.addf %39, %27#4 : vector<2x1xf32>
      %c0_47 = arith.constant 0 : index
      %c0_48 = arith.constant 0 : index
      %41 = vector.load %arg17[%c0_47, %c0_48] : memref<2x1xf32, #tpu.memory_space<vmem>>, vector<2x1xf32>
      tpu.vector_store %arg17[%c0_47, %c0_48], %40 {strides = array<i32>} : memref<2x1xf32, #tpu.memory_space<vmem>>, vector<2x1xf32>,
      %c0_49 = arith.constant 0 : index
      %c0_50 = arith.constant 0 : index
      %42 = vector.load %arg18[%c0_49, %c0_50] : memref<2x1xf32, #tpu.memory_space<vmem>>, vector<2x1xf32>
      %43 = arith.addf %42, %27#5 : vector<2x1xf32>
      %cst_51 = arith.constant 1.000000e+00 : f32
      %44 = vector.broadcast %cst_51 : f32 to vector<2x1xf32>
      %45 = arith.addf %43, %44 : vector<2x1xf32>
      %c0_52 = arith.constant 0 : index
      %c0_53 = arith.constant 0 : index
      %46 = vector.load %arg18[%c0_52, %c0_53] : memref<2x1xf32, #tpu.memory_space<vmem>>, vector<2x1xf32>
      tpu.vector_store %arg18[%c0_52, %c0_53], %45 {strides = array<i32>} : memref<2x1xf32, #tpu.memory_space<vmem>>, vector<2x1xf32>,
    }
    %c3_i32_27 = arith.constant 3 : i32
    return
  }
  func.func @transform_0(%arg0: i32, %arg1: i32) -> (i32, i32, i32) {
    %c0_i32 = arith.constant 0 : i32
    %c0_i32_0 = arith.constant 0 : i32
    return %arg1, %arg0, %c0_i32 : i32, i32, i32
  }
  func.func @transform_1(%arg0: i32, %arg1: i32) -> (i32, i32, i32) {
    %c0_i32 = arith.constant 0 : i32
    %c0_i32_0 = arith.constant 0 : i32
    return %arg1, %arg0, %c0_i32 : i32, i32, i32
  }
  func.func @transform_2(%arg0: i32, %arg1: i32) -> (i32, i32) {
    %c0_i32 = arith.constant 0 : i32
    %c0_i32_0 = arith.constant 0 : i32
    %c0_i32_1 = arith.constant 0 : i32
    return %c0_i32, %c0_i32_0 : i32, i32
  }
  func.func @transform_3(%arg0: i32, %arg1: i32) -> (i32, i32) {
    %c0_i32 = arith.constant 0 : i32
    %c0_i32_0 = arith.constant 0 : i32
    %c0_i32_1 = arith.constant 0 : i32
    return %c0_i32, %c0_i32_0 : i32, i32
  }
  func.func @transform_4(%arg0: i32, %arg1: i32) -> (i32, i32) {
    %c0_i32 = arith.constant 0 : i32
    %c0_i32_0 = arith.constant 0 : i32
    %c0_i32_1 = arith.constant 0 : i32
    return %c0_i32, %c0_i32_0 : i32, i32
  }
  func.func @transform_5(%arg0: i32, %arg1: i32) -> (i32, i32, i32) {
    %c0_i32 = arith.constant 0 : i32
    %c0_i32_0 = arith.constant 0 : i32
    %c0_i32_1 = arith.constant 0 : i32
    %c0_i32_2 = arith.constant 0 : i32
    return %c0_i32, %c0_i32_0, %c0_i32_1 : i32, i32, i32
  }
  func.func @transform_6(%arg0: i32, %arg1: i32) -> (i32, i32, i32) {
    %c0_i32 = arith.constant 0 : i32
    %c0_i32_0 = arith.constant 0 : i32
    %c0_i32_1 = arith.constant 0 : i32
    %c0_i32_2 = arith.constant 0 : i32
    return %c0_i32, %c0_i32_0, %c0_i32_1 : i32, i32, i32
  }
  func.func @transform_7(%arg0: i32, %arg1: i32) -> (i32, i32, i32) {
    %c0_i32 = arith.constant 0 : i32
    %c0_i32_0 = arith.constant 0 : i32
    %c0_i32_1 = arith.constant 0 : i32
    %c0_i32_2 = arith.constant 0 : i32
    return %c0_i32, %c0_i32_0, %c0_i32_1 : i32, i32, i32
  }
  func.func @transform_8(%arg0: i32, %arg1: i32) -> (i32, i32, i32) {
    %c0_i32 = arith.constant 0 : i32
    %c0_i32_0 = arith.constant 0 : i32
    %c0_i32_1 = arith.constant 0 : i32
    %c0_i32_2 = arith.constant 0 : i32
    return %c0_i32, %c0_i32_0, %c0_i32_1 : i32, i32, i32
  }
  func.func @transform_9(%arg0: i32, %arg1: i32) -> (i32, i32) {
    %c0_i32 = arith.constant 0 : i32
    %c0_i32_0 = arith.constant 0 : i32
    %c0_i32_1 = arith.constant 0 : i32
    return %c0_i32, %c0_i32_0 : i32, i32
  }
  func.func @transform_10(%arg0: i32, %arg1: i32) -> (i32, i32) {
    %c0_i32 = arith.constant 0 : i32
    %c0_i32_0 = arith.constant 0 : i32
    %c0_i32_1 = arith.constant 0 : i32
    return %c0_i32, %c0_i32_0 : i32, i32
  }
  func.func @transform_11(%arg0: i32, %arg1: i32) -> (i32, i32) {
    %c0_i32 = arith.constant 0 : i32
    %c0_i32_0 = arith.constant 0 : i32
    %c0_i32_1 = arith.constant 0 : i32
    return %c0_i32, %c0_i32_0 : i32, i32
  }
  func.func @transform_12(%arg0: i32, %arg1: i32) -> (i32, i32) {
    %c0_i32 = arith.constant 0 : i32
    %c0_i32_0 = arith.constant 0 : i32
    %c0_i32_1 = arith.constant 0 : i32
    return %c0_i32, %c0_i32_0 : i32, i32
  }
  func.func @transform_13(%arg0: i32, %arg1: i32) -> (i32, i32, i32) {
    %c0_i32 = arith.constant 0 : i32
    %c0_i32_0 = arith.constant 0 : i32
    return %arg1, %arg0, %c0_i32 : i32, i32, i32
  }
  func.func @transform_14(%arg0: i32, %arg1: i32) -> (i32, i32) {
    %c0_i32 = arith.constant 0 : i32
    %c0_i32_0 = arith.constant 0 : i32
    return %arg0, %c0_i32 : i32, i32
  }
  func.func @transform_15(%arg0: i32, %arg1: i32) -> (i32, i32) {
    %c0_i32 = arith.constant 0 : i32
    %c0_i32_0 = arith.constant 0 : i32
    return %arg0, %c0_i32 : i32, i32
  }
  func.func @transform_16(%arg0: i32, %arg1: i32) -> (i32, i32) {
    %c0_i32 = arith.constant 0 : i32
    %c0_i32_0 = arith.constant 0 : i32
    return %arg0, %c0_i32 : i32, i32
  }
}

</mosaic_0001>

<llo_original>
// kernel: mul.26
$region0: #{mul.26}
  #allocation0 [shape = 's32[1]{0}', space=sflag, size = 0x4, scoped, tag = 'scoped memory for mul.26']
  %s0 = inlined_call_operand.vmem [shape: f32[1,32], index: 0, kind: input, shape index: {}]
  %s1 = inlined_call_operand.vmem [shape: f32[1,32], index: 1, kind: input, shape index: {}]
  %s2 = inlined_call_operand.vmem [shape: f32[1,32], index: 2, kind: output, shape index: {}]
  %v3 = vld [vmem:[%s0] sm:$0x1]
  %v4 = vld [vmem:[%s1] sm:$0x1]
  %5 = xla_tuple %v3, %v4
  %6 = xla_tuple %5
  %v7 = vmul.f32 %v3, %v4
  %8 = xla_tuple %v7
  %9 = vst [vmem:[%s2] sm:$0x1] %v7

// kernel: ltc_forward.1
$region0: #{ltc_forward.1}
  #allocation0 [shape = 'u32[]', space=smem, size = 0x4, offset = 0x4, fixed_abs, tag = 'smem constant byte address 0x4 - core index']
  #allocation1 [shape = 'u32[144,128]{1,0:T(1,128)}', space=vmem, size = 0x12000, scoped, tag = 'internal scratch']
  #allocation2 [shape = 'f32[1,1]{1,0:T(1,128)S(1)}', space=vmem, size = 0x200, scoped, tag = 'scoped memory for ltc_forward.1']
  %s0 = inlined_call_operand.vmem [shape: f32[3,2,32], index: 0, kind: input, shape index: {}]
  %s1 = inlined_call_operand.vmem [shape: f32[3,2,32], index: 1, kind: input, shape index: {}]
  %s2 = inlined_call_operand.vmem [shape: f32[1,32], index: 2, kind: input, shape index: {}]
  %s3 = inlined_call_operand.vmem [shape: f32[1,32], index: 3, kind: input, shape index: {}]
  %s4 = inlined_call_operand.vmem [shape: f32[1,32], index: 4, kind: input, shape index: {}]
  %s5 = inlined_call_operand.vmem [shape: f32[32,1,32], index: 5, kind: input, shape index: {}]
  %s6 = inlined_call_operand.vmem [shape: f32[32,1,32], index: 6, kind: input, shape index: {}]
  %s7 = inlined_call_operand.vmem [shape: f32[32,1,32], index: 7, kind: input, shape index: {}]
  %s8 = inlined_call_operand.vmem [shape: f32[32,1,32], index: 8, kind: input, shape index: {}]
  %s9 = inlined_call_operand.vmem [shape: f32[1,32], index: 9, kind: input, shape index: {}]
  %s10 = inlined_call_operand.vmem [shape: f32[1,32], index: 10, kind: input, shape index: {}]
  %s11 = inlined_call_operand.vmem [shape: f32[1,32], index: 11, kind: input, shape index: {}]
  %s12 = inlined_call_operand.<no memory space> [shape: f32[1,1], index: 12, kind: input, shape index: {}]
  %s13 = inlined_call_operand.hbm [shape: f32[3,2,32], index: 13, kind: output, shape index: {0}]
  %s14 = inlined_call_operand.hbm [shape: f32[2,32], index: 14, kind: output, shape index: {1}]
  %s15 = inlined_call_operand.vmem [shape: f32[2,1], index: 15, kind: output, shape index: {2}]
  %s16 = inlined_call_operand.vmem [shape: f32[2,1], index: 16, kind: output, shape index: {3}]
  %17 = xla_tuple %s13, %s14, %s15, %s16
  %s18 = sld [smem:[#allocation0]]
  $region104: #{ltc_forward.1} parent=0
    _
  %s20 = ssub.s32 1, %s18
  %s21 = scalar_select 0, %s20, %s18
  %v22 = vstv %s12
  %23 = vst [vmem:[#allocation2] sm:$0x1] %v22
  $region1: #{ltc_forward.1} parent=0
    #allocation3 [shape = 'u8[3072]{0}', space=vmem, size = 0xc00, scoped, tag = 'output window, operand 0, single buffered']
    #allocation4 [shape = 's32[1]{0}', space=sflag, size = 0x4, scoped, tag = 'scoped memory for ltc_forward.1']
    #allocation5 [shape = 'u8[1024]{0}', space=vmem, size = 0x400, scoped, tag = 'output window, operand 1, single buffered']
    #allocation6 [shape = 's32[1]{0}', space=sflag, size = 0x4, scoped, tag = 'scoped memory for ltc_forward.1']
    %24 = vsyncpa [#allocation4], 0
    %25 = vsyncpa [#allocation6], 0
    // Predicated region
    $region2: #{ltc_forward.1} parent=1 // pred_check
      _
    $region3: #{ltc_forward.1} parent=1 // pred_check_branch
      %27 = sbr.rel (0) target = $region5
    $region4: #{ltc_forward.1} parent=1 // pred_region
      _
    $region5: #{ltc_forward.1} parent=1 // pred_fallthru
      _
    // Predicated region
    $region6: #{ltc_forward.1} parent=1 // pred_check
      _
    $region7: #{ltc_forward.1} parent=1 // pred_check_branch
      %29 = sbr.rel (0) target = $region9
    $region8: #{ltc_forward.1} parent=1 // pred_region
      _
    $region9: #{ltc_forward.1} parent=1 // pred_fallthru
      _
    // Predicated region
    $region10: #{ltc_forward.1} parent=1 // pred_check
      _
    $region11: #{ltc_forward.1} parent=1 // pred_check_branch
      %31 = sbr.rel (0) target = $region13
    $region12: #{ltc_forward.1} parent=1 // pred_region
      _
    $region13: #{ltc_forward.1} parent=1 // pred_fallthru
      _
    // Predicated region
    $region14: #{ltc_forward.1} parent=1 // pred_check
      _
    $region15: #{ltc_forward.1} parent=1 // pred_check_branch
      %33 = sbr.rel (0) target = $region17
    $region16: #{ltc_forward.1} parent=1 // pred_region
      _
    $region17: #{ltc_forward.1} parent=1 // pred_fallthru
      _
    // Predicated region
    $region18: #{ltc_forward.1} parent=1 // pred_check
      _
    $region19: #{ltc_forward.1} parent=1 // pred_check_branch
      %35 = sbr.rel (0) target = $region21
    $region20: #{ltc_forward.1} parent=1 // pred_region
      _
    $region21: #{ltc_forward.1} parent=1 // pred_fallthru
      _
    // Predicated region
    $region22: #{ltc_forward.1} parent=1 // pred_check
      _
    $region23: #{ltc_forward.1} parent=1 // pred_check_branch
      %37 = sbr.rel (0) target = $region25
    $region24: #{ltc_forward.1} parent=1 // pred_region
      _
    $region25: #{ltc_forward.1} parent=1 // pred_fallthru
      _
    // Predicated region
    $region26: #{ltc_forward.1} parent=1 // pred_check
      _
    $region27: #{ltc_forward.1} parent=1 // pred_check_branch
      %39 = sbr.rel (0) target = $region29
    $region28: #{ltc_forward.1} parent=1 // pred_region
      _
    $region29: #{ltc_forward.1} parent=1 // pred_fallthru
      _
    // Predicated region
    $region30: #{ltc_forward.1} parent=1 // pred_check
      _
    $region31: #{ltc_forward.1} parent=1 // pred_check_branch
      %41 = sbr.rel (0) target = $region33
    $region32: #{ltc_forward.1} parent=1 // pred_region
      _
    $region33: #{ltc_forward.1} parent=1 // pred_fallthru
      _
    // Predicated region
    $region34: #{ltc_forward.1} parent=1 // pred_check
      _
    $region35: #{ltc_forward.1} parent=1 // pred_check_branch
      %43 = sbr.rel (0) target = $region37
    $region36: #{ltc_forward.1} parent=1 // pred_region
      _
    $region37: #{ltc_forward.1} parent=1 // pred_fallthru
      _
    // Predicated region
    $region38: #{ltc_forward.1} parent=1 // pred_check
      _
    $region39: #{ltc_forward.1} parent=1 // pred_check_branch
      %45 = sbr.rel (0) target = $region41
    $region40: #{ltc_forward.1} parent=1 // pred_region
      _
    $region41: #{ltc_forward.1} parent=1 // pred_fallthru
      _
    // Predicated region
    $region42: #{ltc_forward.1} parent=1 // pred_check
      _
    $region43: #{ltc_forward.1} parent=1 // pred_check_branch
      %47 = sbr.rel (0) target = $region45
    $region44: #{ltc_forward.1} parent=1 // pred_region
      _
    $region45: #{ltc_forward.1} parent=1 // pred_fallthru
      _
    // Predicated region
    $region46: #{ltc_forward.1} parent=1 // pred_check
      _
    $region47: #{ltc_forward.1} parent=1 // pred_check_branch
      %49 = sbr.rel (0) target = $region49
    $region48: #{ltc_forward.1} parent=1 // pred_region
      _
    $region49: #{ltc_forward.1} parent=1 // pred_fallthru
      _
    // Predicated region
    $region50: #{ltc_forward.1} parent=1 // pred_check
      _
    $region51: #{ltc_forward.1} parent=1 // pred_check_branch
      %51 = sbr.rel (0) target = $region53
    $region52: #{ltc_forward.1} parent=1 // pred_region
      _
    $region53: #{ltc_forward.1} parent=1 // pred_fallthru
      _
    %p52 = scmp.eq.s32.totalorder 0, 0
    // Predicated region
    $region54: #{ltc_forward.1} parent=1 // pred_check
      %p53 = pneg %p52
    $region55: #{ltc_forward.1} parent=1 // pred_check_branch
      %55 = sbr.rel (%p53) target = $region57
    $region56: #{ltc_forward.1} parent=1 // pred_region
      %vm56 = vcmask 254976
      %57 = vst.msk [vmem:[#allocation5] sm:$0x3] %vm56, 0.0
      %vm58 = vcmask 1024
      %59 = vst.msk [vmem:[%s15] sm:$0x3] %vm58, 0.0
      %60 = vst.msk [vmem:[%s16] sm:$0x3] %vm58, 0.0
    $region57: #{ltc_forward.1} parent=1 // pred_fallthru
      _
    %v61 = vld [vmem:[%s2] sm:$0x1]
    %v62 = vld [vmem:[%s3] sm:$0x1]
    %v63 = vld [vmem:[%s4] sm:$0x1]
    %v64 = vld [vmem:[%s5] sm:$0x1]
    %v65 = vld [vmem:[%s5 + $0x1] sm:$0x1]
    %v66 = vld [vmem:[%s5 + $0x2] sm:$0x1]
    %v67 = vld [vmem:[%s5 + $0x3] sm:$0x1]
    %v68 = vld [vmem:[%s5 + $0x4] sm:$0x1]
    %v69 = vld [vmem:[%s5 + $0x5] sm:$0x1]
    %v70 = vld [vmem:[%s5 + $0x6] sm:$0x1]
    %v71 = vld [vmem:[%s5 + $0x7] sm:$0x1]
    %v72 = vld [vmem:[%s5 + $0x8] sm:$0x1]
    %v73 = vld [vmem:[%s5 + $0x9] sm:$0x1]
    %v74 = vld [vmem:[%s5 + $0xa] sm:$0x1]
    %v75 = vld [vmem:[%s5 + $0xb] sm:$0x1]
    %v76 = vld [vmem:[%s5 + $0xc] sm:$0x1]
    %v77 = vld [vmem:[%s5 + $0xd] sm:$0x1]
    %v78 = vld [vmem:[%s5 + $0xe] sm:$0x1]
    %v79 = vld [vmem:[%s5 + $0xf] sm:$0x1]
    %v80 = vld [vmem:[%s5 + $0x10] sm:$0x1]
    %v81 = vld [vmem:[%s5 + $0x11] sm:$0x1]
    %v82 = vld [vmem:[%s5 + $0x12] sm:$0x1]
    %v83 = vld [vmem:[%s5 + $0x13] sm:$0x1]
    %v84 = vld [vmem:[%s5 + $0x14] sm:$0x1]
    %v85 = vld [vmem:[%s5 + $0x15] sm:$0x1]
    %v86 = vld [vmem:[%s5 + $0x16] sm:$0x1]
    %v87 = vld [vmem:[%s5 + $0x17] sm:$0x1]
    %v88 = vld [vmem:[%s5 + $0x18] sm:$0x1]
    %v89 = vld [vmem:[%s5 + $0x19] sm:$0x1]
    %v90 = vld [vmem:[%s5 + $0x1a] sm:$0x1]
    %v91 = vld [vmem:[%s5 + $0x1b] sm:$0x1]
    %v92 = vld [vmem:[%s5 + $0x1c] sm:$0x1]
    %v93 = vld [vmem:[%s5 + $0x1d] sm:$0x1]
    %v94 = vld [vmem:[%s5 + $0x1e] sm:$0x1]
    %v95 = vld [vmem:[%s5 + $0x1f] sm:$0x1]
    %v96 = vld [vmem:[%s6] sm:$0x1]
    %v97 = vld [vmem:[%s6 + $0x1] sm:$0x1]
    %v98 = vld [vmem:[%s6 + $0x2] sm:$0x1]
    %v99 = vld [vmem:[%s6 + $0x3] sm:$0x1]
    %v100 = vld [vmem:[%s6 + $0x4] sm:$0x1]
    %v101 = vld [vmem:[%s6 + $0x5] sm:$0x1]
    %v102 = vld [vmem:[%s6 + $0x6] sm:$0x1]
    %v103 = vld [vmem:[%s6 + $0x7] sm:$0x1]
    %v104 = vld [vmem:[%s6 + $0x8] sm:$0x1]
    %v105 = vld [vmem:[%s6 + $0x9] sm:$0x1]
    %v106 = vld [vmem:[%s6 + $0xa] sm:$0x1]
    %v107 = vld [vmem:[%s6 + $0xb] sm:$0x1]
    %v108 = vld [vmem:[%s6 + $0xc] sm:$0x1]
    %v109 = vld [vmem:[%s6 + $0xd] sm:$0x1]
    %v110 = vld [vmem:[%s6 + $0xe] sm:$0x1]
    %v111 = vld [vmem:[%s6 + $0xf] sm:$0x1]
    %v112 = vld [vmem:[%s6 + $0x10] sm:$0x1]
    %v113 = vld [vmem:[%s6 + $0x11] sm:$0x1]
    %v114 = vld [vmem:[%s6 + $0x12] sm:$0x1]
    %v115 = vld [vmem:[%s6 + $0x13] sm:$0x1]
    %v116 = vld [vmem:[%s6 + $0x14] sm:$0x1]
    %v117 = vld [vmem:[%s6 + $0x15] sm:$0x1]
    %v118 = vld [vmem:[%s6 + $0x16] sm:$0x1]
    %v119 = vld [vmem:[%s6 + $0x17] sm:$0x1]
    %v120 = vld [vmem:[%s6 + $0x18] sm:$0x1]
    %v121 = vld [vmem:[%s6 + $0x19] sm:$0x1]
    %v122 = vld [vmem:[%s6 + $0x1a] sm:$0x1]
    %v123 = vld [vmem:[%s6 + $0x1b] sm:$0x1]
    %v124 = vld [vmem:[%s6 + $0x1c] sm:$0x1]
    %v125 = vld [vmem:[%s6 + $0x1d] sm:$0x1]
    %v126 = vld [vmem:[%s6 + $0x1e] sm:$0x1]
    %v127 = vld [vmem:[%s6 + $0x1f] sm:$0x1]
    %v128 = vld [vmem:[%s7] sm:$0x1]
    %v129 = vld [vmem:[%s7 + $0x1] sm:$0x1]
    %v130 = vld [vmem:[%s7 + $0x2] sm:$0x1]
    %v131 = vld [vmem:[%s7 + $0x3] sm:$0x1]
    %v132 = vld [vmem:[%s7 + $0x4] sm:$0x1]
    %v133 = vld [vmem:[%s7 + $0x5] sm:$0x1]
    %v134 = vld [vmem:[%s7 + $0x6] sm:$0x1]
    %v135 = vld [vmem:[%s7 + $0x7] sm:$0x1]
    %v136 = vld [vmem:[%s7 + $0x8] sm:$0x1]
    %v137 = vld [vmem:[%s7 + $0x9] sm:$0x1]
    %v138 = vld [vmem:[%s7 + $0xa] sm:$0x1]
    %v139 = vld [vmem:[%s7 + $0xb] sm:$0x1]
    %v140 = vld [vmem:[%s7 + $0xc] sm:$0x1]
    %v141 = vld [vmem:[%s7 + $0xd] sm:$0x1]
    %v142 = vld [vmem:[%s7 + $0xe] sm:$0x1]
    %v143 = vld [vmem:[%s7 + $0xf] sm:$0x1]
    %v144 = vld [vmem:[%s7 + $0x10] sm:$0x1]
    %v145 = vld [vmem:[%s7 + $0x11] sm:$0x1]
    %v146 = vld [vmem:[%s7 + $0x12] sm:$0x1]
    %v147 = vld [vmem:[%s7 + $0x13] sm:$0x1]
    %v148 = vld [vmem:[%s7 + $0x14] sm:$0x1]
    %v149 = vld [vmem:[%s7 + $0x15] sm:$0x1]
    %v150 = vld [vmem:[%s7 + $0x16] sm:$0x1]
    %v151 = vld [vmem:[%s7 + $0x17] sm:$0x1]
    %v152 = vld [vmem:[%s7 + $0x18] sm:$0x1]
    %v153 = vld [vmem:[%s7 + $0x19] sm:$0x1]
    %v154 = vld [vmem:[%s7 + $0x1a] sm:$0x1]
    %v155 = vld [vmem:[%s7 + $0x1b] sm:$0x1]
    %v156 = vld [vmem:[%s7 + $0x1c] sm:$0x1]
    %v157 = vld [vmem:[%s7 + $0x1d] sm:$0x1]
    %v158 = vld [vmem:[%s7 + $0x1e] sm:$0x1]
    %v159 = vld [vmem:[%s7 + $0x1f] sm:$0x1]
    %v160 = vld [vmem:[%s8] sm:$0x1]
    %v161 = vld [vmem:[%s8 + $0x1] sm:$0x1]
    %v162 = vld [vmem:[%s8 + $0x2] sm:$0x1]
    %v163 = vld [vmem:[%s8 + $0x3] sm:$0x1]
    %v164 = vld [vmem:[%s8 + $0x4] sm:$0x1]
    %v165 = vld [vmem:[%s8 + $0x5] sm:$0x1]
    %v166 = vld [vmem:[%s8 + $0x6] sm:$0x1]
    %v167 = vld [vmem:[%s8 + $0x7] sm:$0x1]
    %v168 = vld [vmem:[%s8 + $0x8] sm:$0x1]
    %v169 = vld [vmem:[%s8 + $0x9] sm:$0x1]
    %v170 = vld [vmem:[%s8 + $0xa] sm:$0x1]
    %v171 = vld [vmem:[%s8 + $0xb] sm:$0x1]
    %v172 = vld [vmem:[%s8 + $0xc] sm:$0x1]
    %v173 = vld [vmem:[%s8 + $0xd] sm:$0x1]
    %v174 = vld [vmem:[%s8 + $0xe] sm:$0x1]
    %v175 = vld [vmem:[%s8 + $0xf] sm:$0x1]
    %v176 = vld [vmem:[%s8 + $0x10] sm:$0x1]
    %v177 = vld [vmem:[%s8 + $0x11] sm:$0x1]
    %v178 = vld [vmem:[%s8 + $0x12] sm:$0x1]
    %v179 = vld [vmem:[%s8 + $0x13] sm:$0x1]
    %v180 = vld [vmem:[%s8 + $0x14] sm:$0x1]
    %v181 = vld [vmem:[%s8 + $0x15] sm:$0x1]
    %v182 = vld [vmem:[%s8 + $0x16] sm:$0x1]
    %v183 = vld [vmem:[%s8 + $0x17] sm:$0x1]
    %v184 = vld [vmem:[%s8 + $0x18] sm:$0x1]
    %v185 = vld [vmem:[%s8 + $0x19] sm:$0x1]
    %v186 = vld [vmem:[%s8 + $0x1a] sm:$0x1]
    %v187 = vld [vmem:[%s8 + $0x1b] sm:$0x1]
    %v188 = vld [vmem:[%s8 + $0x1c] sm:$0x1]
    %v189 = vld [vmem:[%s8 + $0x1d] sm:$0x1]
    %v190 = vld [vmem:[%s8 + $0x1e] sm:$0x1]
    %v191 = vld [vmem:[%s8 + $0x1f] sm:$0x1]
    %v192 = vld [vmem:[%s9] sm:$0x1]
    %v193 = vld [vmem:[%s10] sm:$0x1]
    %v194 = vld [vmem:[%s11] sm:$0x1]
    %v195 = vld [vmem:[#allocation2] sm:$0x1]
    loop: start=0, step=1, limit=3
    $region58: #{ltc_forward.1} parent=1 // loop_pre_header
      _
    $region59: #{ltc_forward.1} parent=1 // loop_header
      %s197 = sphi 0, %s201
      %p198 = scmp.ge.s32.totalorder %s197, 3
    $region60: #{ltc_forward.1} parent=1 // loop_header_branch
      %200 = sbr.rel (%p198) target = $region64
    $region61: #{ltc_forward.1} parent=1 // loop_body
      %v202 = vld [vmem:[#allocation5] sm:$0x3]
      %s203 = smul.u32 %s197, 2
      %s204 = scalar_lea.vmem %s0, %s203
      %v205 = vld [vmem:[%s204] sm:$0x3]
      %s206 = scalar_lea.vmem %s1, %s203
      %v207 = vld [vmem:[%s206] sm:$0x3]
      // While loop
      $region65: #{ltc_forward.1} parent=61 // loop_pre_header
        _
      $region66: #{ltc_forward.1} parent=61 // loop_header
        %s209 = sphi 0, %s5345
        %v210 = vphi %v202, %v5300
        %v211 = vphi 0.0, %v5343
        %v212 = vphi 0.0, %v5325
        %v213 = vphi 0.0, %v5344
        %v214 = vphi 0.0, %v5333
        %v215 = vphi 1.0, %v5332
        %s216 = sphi 1.0, %s233
        %p217 = scmp.lt.s32.totalorder %s209, 99
        %p218 = scmp.gt.f32.partialorder %s216, 0.5
        %p219 = pnand %p217, %p218
        %p220 = pneg %p219
      $region67: #{ltc_forward.1} parent=61 // loop_header_branch
        %222 = sbr.rel (%p219) target = $region71
      $region68: #{ltc_forward.1} parent=61 // loop_body
        %vm223 = vcmask 1024
        %v224 = vsel %vm223, %v215, -inf
        %225 = vmax.xlane.f32.xlu0 %v224
        %v226 = vpop.xlane.xlu0 %225
        %v227 = vrot.slane %v226, 4
        %v228 = vmax.f32 %v226, %v227
        %v229 = vrot.slane %v228, 2
        %v230 = vmax.f32 %v228, %v229
        %v231 = vrot.slane %v230, 1
        %v232 = vmax.f32 %v230, %v231
        %s233 = vtos %v232
        %234 = vxpose.xlu0.b32.start [1/16] %v210, 128
        %235 = vxpose.xlu0.b32.cont [2/16] 0.0, 128
        %236 = vxpose.xlu0.b32.cont [3/16] 0.0, 128
        %237 = vxpose.xlu0.b32.cont [4/16] 0.0, 128
        %238 = vxpose.xlu0.b32.cont [5/16] 0.0, 128
        %239 = vxpose.xlu0.b32.cont [6/16] 0.0, 128
        %240 = vxpose.xlu0.b32.cont [7/16] 0.0, 128
        %241 = vxpose.xlu0.b32.cont [8/16] 0.0, 128
        %242 = vxpose.xlu0.b32.cont [9/16] 0.0, 128
        %243 = vxpose.xlu0.b32.cont [10/16] 0.0, 128
        %244 = vxpose.xlu0.b32.cont [11/16] 0.0, 128
        %245 = vxpose.xlu0.b32.cont [12/16] 0.0, 128
        %246 = vxpose.xlu0.b32.cont [13/16] 0.0, 128
        %247 = vxpose.xlu0.b32.cont [14/16] 0.0, 128
        %248 = vxpose.xlu0.b32.cont [15/16] 0.0, 128
        %249 = vxpose.xlu0.b32.end [16/16] 0.0, 128
        %v250 = vpop.trf.xlu0
        %v251 = vpop.trf.xlu0
        %v252 = vpop.trf.xlu0
        %v253 = vpop.trf.xlu0
        %v254 = vpop.trf.xlu0
        %v255 = vpop.trf.xlu0
        %v256 = vpop.trf.xlu0
        %v257 = vpop.trf.xlu0
        %v258 = vpop.trf.xlu0
        %v259 = vpop.trf.xlu0
        %v260 = vpop.trf.xlu0
        %v261 = vpop.trf.xlu0
        %v262 = vpop.trf.xlu0
        %v263 = vpop.trf.xlu0
        %v264 = vpop.trf.xlu0
        %v265 = vpop.trf.xlu0
        %v266 = vlaneseq
        %v267 = vshrl.u32 %v266, 7
        %v268 = vsub.s32 0, %v267
        %v269 = vrot.slane %v250, %v268
        %271 = vbcast.lane.b32.xlu0 %v269, 256
        %v272 = vpop.permute.xlu0 %271
        %v273 = vlaneseq
        %v274 = vshrl.u32 %v273, 7
        %v275 = vsub.s32 1, %v274
        %v276 = vrot.slane %v250, %v275
        %278 = vbcast.lane.b32.xlu0 %v276, 256
        %v279 = vpop.permute.xlu0 %278
        %v280 = vlaneseq
        %v281 = vshrl.u32 %v280, 7
        %v282 = vsub.s32 2, %v281
        %v283 = vrot.slane %v250, %v282
        %285 = vbcast.lane.b32.xlu0 %v283, 256
        %v286 = vpop.permute.xlu0 %285
        %v287 = vlaneseq
        %v288 = vshrl.u32 %v287, 7
        %v289 = vsub.s32 3, %v288
        %v290 = vrot.slane %v250, %v289
        %292 = vbcast.lane.b32.xlu0 %v290, 256
        %v293 = vpop.permute.xlu0 %292
        %v294 = vlaneseq
        %v295 = vshrl.u32 %v294, 7
        %v296 = vsub.s32 4, %v295
        %v297 = vrot.slane %v250, %v296
        %299 = vbcast.lane.b32.xlu0 %v297, 256
        %v300 = vpop.permute.xlu0 %299
        %v301 = vlaneseq
        %v302 = vshrl.u32 %v301, 7
        %v303 = vsub.s32 5, %v302
        %v304 = vrot.slane %v250, %v303
        %306 = vbcast.lane.b32.xlu0 %v304, 256
        %v307 = vpop.permute.xlu0 %306
        %v308 = vlaneseq
        %v309 = vshrl.u32 %v308, 7
        %v310 = vsub.s32 6, %v309
        %v311 = vrot.slane %v250, %v310
        %313 = vbcast.lane.b32.xlu0 %v311, 256
        %v314 = vpop.permute.xlu0 %313
        %v315 = vlaneseq
        %v316 = vshrl.u32 %v315, 7
        %v317 = vsub.s32 7, %v316
        %v318 = vrot.slane %v250, %v317
        %320 = vbcast.lane.b32.xlu0 %v318, 256
        %v321 = vpop.permute.xlu0 %320
        %v322 = vlaneseq
        %v323 = vshrl.u32 %v322, 7
        %v324 = vsub.s32 0, %v323
        %v325 = vrot.slane %v251, %v324
        %327 = vbcast.lane.b32.xlu0 %v325, 256
        %v328 = vpop.permute.xlu0 %327
        %v329 = vlaneseq
        %v330 = vshrl.u32 %v329, 7
        %v331 = vsub.s32 1, %v330
        %v332 = vrot.slane %v251, %v331
        %334 = vbcast.lane.b32.xlu0 %v332, 256
        %v335 = vpop.permute.xlu0 %334
        %v336 = vlaneseq
        %v337 = vshrl.u32 %v336, 7
        %v338 = vsub.s32 2, %v337
        %v339 = vrot.slane %v251, %v338
        %341 = vbcast.lane.b32.xlu0 %v339, 256
        %v342 = vpop.permute.xlu0 %341
        %v343 = vlaneseq
        %v344 = vshrl.u32 %v343, 7
        %v345 = vsub.s32 3, %v344
        %v346 = vrot.slane %v251, %v345
        %348 = vbcast.lane.b32.xlu0 %v346, 256
        %v349 = vpop.permute.xlu0 %348
        %v350 = vlaneseq
        %v351 = vshrl.u32 %v350, 7
        %v352 = vsub.s32 4, %v351
        %v353 = vrot.slane %v251, %v352
        %355 = vbcast.lane.b32.xlu0 %v353, 256
        %v356 = vpop.permute.xlu0 %355
        %v357 = vlaneseq
        %v358 = vshrl.u32 %v357, 7
        %v359 = vsub.s32 5, %v358
        %v360 = vrot.slane %v251, %v359
        %362 = vbcast.lane.b32.xlu0 %v360, 256
        %v363 = vpop.permute.xlu0 %362
        %v364 = vlaneseq
        %v365 = vshrl.u32 %v364, 7
        %v366 = vsub.s32 6, %v365
        %v367 = vrot.slane %v251, %v366
        %369 = vbcast.lane.b32.xlu0 %v367, 256
        %v370 = vpop.permute.xlu0 %369
        %v371 = vlaneseq
        %v372 = vshrl.u32 %v371, 7
        %v373 = vsub.s32 7, %v372
        %v374 = vrot.slane %v251, %v373
        %376 = vbcast.lane.b32.xlu0 %v374, 256
        %v377 = vpop.permute.xlu0 %376
        %v378 = vlaneseq
        %v379 = vshrl.u32 %v378, 7
        %v380 = vsub.s32 0, %v379
        %v381 = vrot.slane %v252, %v380
        %383 = vbcast.lane.b32.xlu0 %v381, 256
        %v384 = vpop.permute.xlu0 %383
        %v385 = vlaneseq
        %v386 = vshrl.u32 %v385, 7
        %v387 = vsub.s32 1, %v386
        %v388 = vrot.slane %v252, %v387
        %390 = vbcast.lane.b32.xlu0 %v388, 256
        %v391 = vpop.permute.xlu0 %390
        %v392 = vlaneseq
        %v393 = vshrl.u32 %v392, 7
        %v394 = vsub.s32 2, %v393
        %v395 = vrot.slane %v252, %v394
        %397 = vbcast.lane.b32.xlu0 %v395, 256
        %v398 = vpop.permute.xlu0 %397
        %v399 = vlaneseq
        %v400 = vshrl.u32 %v399, 7
        %v401 = vsub.s32 3, %v400
        %v402 = vrot.slane %v252, %v401
        %404 = vbcast.lane.b32.xlu0 %v402, 256
        %v405 = vpop.permute.xlu0 %404
        %v406 = vlaneseq
        %v407 = vshrl.u32 %v406, 7
        %v408 = vsub.s32 4, %v407
        %v409 = vrot.slane %v252, %v408
        %411 = vbcast.lane.b32.xlu0 %v409, 256
        %v412 = vpop.permute.xlu0 %411
        %v413 = vlaneseq
        %v414 = vshrl.u32 %v413, 7
        %v415 = vsub.s32 5, %v414
        %v416 = vrot.slane %v252, %v415
        %418 = vbcast.lane.b32.xlu0 %v416, 256
        %v419 = vpop.permute.xlu0 %418
        %v420 = vlaneseq
        %v421 = vshrl.u32 %v420, 7
        %v422 = vsub.s32 6, %v421
        %v423 = vrot.slane %v252, %v422
        %425 = vbcast.lane.b32.xlu0 %v423, 256
        %v426 = vpop.permute.xlu0 %425
        %v427 = vlaneseq
        %v428 = vshrl.u32 %v427, 7
        %v429 = vsub.s32 7, %v428
        %v430 = vrot.slane %v252, %v429
        %432 = vbcast.lane.b32.xlu0 %v430, 256
        %v433 = vpop.permute.xlu0 %432
        %v434 = vlaneseq
        %v435 = vshrl.u32 %v434, 7
        %v436 = vsub.s32 0, %v435
        %v437 = vrot.slane %v253, %v436
        %439 = vbcast.lane.b32.xlu0 %v437, 256
        %v440 = vpop.permute.xlu0 %439
        %v441 = vlaneseq
        %v442 = vshrl.u32 %v441, 7
        %v443 = vsub.s32 1, %v442
        %v444 = vrot.slane %v253, %v443
        %446 = vbcast.lane.b32.xlu0 %v444, 256
        %v447 = vpop.permute.xlu0 %446
        %v448 = vlaneseq
        %v449 = vshrl.u32 %v448, 7
        %v450 = vsub.s32 2, %v449
        %v451 = vrot.slane %v253, %v450
        %453 = vbcast.lane.b32.xlu0 %v451, 256
        %v454 = vpop.permute.xlu0 %453
        %v455 = vlaneseq
        %v456 = vshrl.u32 %v455, 7
        %v457 = vsub.s32 3, %v456
        %v458 = vrot.slane %v253, %v457
        %460 = vbcast.lane.b32.xlu0 %v458, 256
        %v461 = vpop.permute.xlu0 %460
        %v462 = vlaneseq
        %v463 = vshrl.u32 %v462, 7
        %v464 = vsub.s32 4, %v463
        %v465 = vrot.slane %v253, %v464
        %467 = vbcast.lane.b32.xlu0 %v465, 256
        %v468 = vpop.permute.xlu0 %467
        %v469 = vlaneseq
        %v470 = vshrl.u32 %v469, 7
        %v471 = vsub.s32 5, %v470
        %v472 = vrot.slane %v253, %v471
        %474 = vbcast.lane.b32.xlu0 %v472, 256
        %v475 = vpop.permute.xlu0 %474
        %v476 = vlaneseq
        %v477 = vshrl.u32 %v476, 7
        %v478 = vsub.s32 6, %v477
        %v479 = vrot.slane %v253, %v478
        %481 = vbcast.lane.b32.xlu0 %v479, 256
        %v482 = vpop.permute.xlu0 %481
        %v483 = vlaneseq
        %v484 = vshrl.u32 %v483, 7
        %v485 = vsub.s32 7, %v484
        %v486 = vrot.slane %v253, %v485
        %488 = vbcast.lane.b32.xlu0 %v486, 256
        %v489 = vpop.permute.xlu0 %488
        %v522 = vlaneseq
        %v523 = vshrl.u32 %v522, 7
        %v524 = vsub.s32 0, %v523
        %v525 = vrot.slane %v64, %v524
        %v526 = vlaneseq
        %v527 = vshrl.u32 %v526, 7
        %v528 = vsub.s32 0, %v527
        %v529 = vrot.slane %v65, %v528
        %v530 = vlaneseq
        %v531 = vshrl.u32 %v530, 7
        %v532 = vsub.s32 0, %v531
        %v533 = vrot.slane %v66, %v532
        %v534 = vlaneseq
        %v535 = vshrl.u32 %v534, 7
        %v536 = vsub.s32 0, %v535
        %v537 = vrot.slane %v67, %v536
        %v538 = vlaneseq
        %v539 = vshrl.u32 %v538, 7
        %v540 = vsub.s32 0, %v539
        %v541 = vrot.slane %v68, %v540
        %v542 = vlaneseq
        %v543 = vshrl.u32 %v542, 7
        %v544 = vsub.s32 0, %v543
        %v545 = vrot.slane %v69, %v544
        %v546 = vlaneseq
        %v547 = vshrl.u32 %v546, 7
        %v548 = vsub.s32 0, %v547
        %v549 = vrot.slane %v70, %v548
        %v550 = vlaneseq
        %v551 = vshrl.u32 %v550, 7
        %v552 = vsub.s32 0, %v551
        %v553 = vrot.slane %v71, %v552
        %v554 = vlaneseq
        %v555 = vshrl.u32 %v554, 7
        %v556 = vsub.s32 0, %v555
        %v557 = vrot.slane %v72, %v556
        %v558 = vlaneseq
        %v559 = vshrl.u32 %v558, 7
        %v560 = vsub.s32 0, %v559
        %v561 = vrot.slane %v73, %v560
        %v562 = vlaneseq
        %v563 = vshrl.u32 %v562, 7
        %v564 = vsub.s32 0, %v563
        %v565 = vrot.slane %v74, %v564
        %v566 = vlaneseq
        %v567 = vshrl.u32 %v566, 7
        %v568 = vsub.s32 0, %v567
        %v569 = vrot.slane %v75, %v568
        %v570 = vlaneseq
        %v571 = vshrl.u32 %v570, 7
        %v572 = vsub.s32 0, %v571
        %v573 = vrot.slane %v76, %v572
        %v574 = vlaneseq
        %v575 = vshrl.u32 %v574, 7
        %v576 = vsub.s32 0, %v575
        %v577 = vrot.slane %v77, %v576
        %v578 = vlaneseq
        %v579 = vshrl.u32 %v578, 7
        %v580 = vsub.s32 0, %v579
        %v581 = vrot.slane %v78, %v580
        %v582 = vlaneseq
        %v583 = vshrl.u32 %v582, 7
        %v584 = vsub.s32 0, %v583
        %v585 = vrot.slane %v79, %v584
        %v586 = vlaneseq
        %v587 = vshrl.u32 %v586, 7
        %v588 = vsub.s32 0, %v587
        %v589 = vrot.slane %v80, %v588
        %v590 = vlaneseq
        %v591 = vshrl.u32 %v590, 7
        %v592 = vsub.s32 0, %v591
        %v593 = vrot.slane %v81, %v592
        %v594 = vlaneseq
        %v595 = vshrl.u32 %v594, 7
        %v596 = vsub.s32 0, %v595
        %v597 = vrot.slane %v82, %v596
        %v598 = vlaneseq
        %v599 = vshrl.u32 %v598, 7
        %v600 = vsub.s32 0, %v599
        %v601 = vrot.slane %v83, %v600
        %v602 = vlaneseq
        %v603 = vshrl.u32 %v602, 7
        %v604 = vsub.s32 0, %v603
        %v605 = vrot.slane %v84, %v604
        %v606 = vlaneseq
        %v607 = vshrl.u32 %v606, 7
        %v608 = vsub.s32 0, %v607
        %v609 = vrot.slane %v85, %v608
        %v610 = vlaneseq
        %v611 = vshrl.u32 %v610, 7
        %v612 = vsub.s32 0, %v611
        %v613 = vrot.slane %v86, %v612
        %v614 = vlaneseq
        %v615 = vshrl.u32 %v614, 7
        %v616 = vsub.s32 0, %v615
        %v617 = vrot.slane %v87, %v616
        %v618 = vlaneseq
        %v619 = vshrl.u32 %v618, 7
        %v620 = vsub.s32 0, %v619
        %v621 = vrot.slane %v88, %v620
        %v622 = vlaneseq
        %v623 = vshrl.u32 %v622, 7
        %v624 = vsub.s32 0, %v623
        %v625 = vrot.slane %v89, %v624
        %v626 = vlaneseq
        %v627 = vshrl.u32 %v626, 7
        %v628 = vsub.s32 0, %v627
        %v629 = vrot.slane %v90, %v628
        %v630 = vlaneseq
        %v631 = vshrl.u32 %v630, 7
        %v632 = vsub.s32 0, %v631
        %v633 = vrot.slane %v91, %v632
        %v634 = vlaneseq
        %v635 = vshrl.u32 %v634, 7
        %v636 = vsub.s32 0, %v635
        %v637 = vrot.slane %v92, %v636
        %v638 = vlaneseq
        %v639 = vshrl.u32 %v638, 7
        %v640 = vsub.s32 0, %v639
        %v641 = vrot.slane %v93, %v640
        %v642 = vlaneseq
        %v643 = vshrl.u32 %v642, 7
        %v644 = vsub.s32 0, %v643
        %v645 = vrot.slane %v94, %v644
        %v646 = vlaneseq
        %v647 = vshrl.u32 %v646, 7
        %v648 = vsub.s32 0, %v647
        %v649 = vrot.slane %v95, %v648
        %v682 = vsub.f32 %v272, %v525
        %v683 = vsub.f32 %v279, %v529
        %v684 = vsub.f32 %v286, %v533
        %v685 = vsub.f32 %v293, %v537
        %v686 = vsub.f32 %v300, %v541
        %v687 = vsub.f32 %v307, %v545
        %v688 = vsub.f32 %v314, %v549
        %v689 = vsub.f32 %v321, %v553
        %v690 = vsub.f32 %v328, %v557
        %v691 = vsub.f32 %v335, %v561
        %v692 = vsub.f32 %v342, %v565
        %v693 = vsub.f32 %v349, %v569
        %v694 = vsub.f32 %v356, %v573
        %v695 = vsub.f32 %v363, %v577
        %v696 = vsub.f32 %v370, %v581
        %v697 = vsub.f32 %v377, %v585
        %v698 = vsub.f32 %v384, %v589
        %v699 = vsub.f32 %v391, %v593
        %v700 = vsub.f32 %v398, %v597
        %v701 = vsub.f32 %v405, %v601
        %v702 = vsub.f32 %v412, %v605
        %v703 = vsub.f32 %v419, %v609
        %v704 = vsub.f32 %v426, %v613
        %v705 = vsub.f32 %v433, %v617
        %v706 = vsub.f32 %v440, %v621
        %v707 = vsub.f32 %v447, %v625
        %v708 = vsub.f32 %v454, %v629
        %v709 = vsub.f32 %v461, %v633
        %v710 = vsub.f32 %v468, %v637
        %v711 = vsub.f32 %v475, %v641
        %v712 = vsub.f32 %v482, %v645
        %v713 = vsub.f32 %v489, %v649
        %v746 = vlaneseq
        %v747 = vshrl.u32 %v746, 7
        %v748 = vsub.s32 0, %v747
        %v749 = vrot.slane %v96, %v748
        %v750 = vlaneseq
        %v751 = vshrl.u32 %v750, 7
        %v752 = vsub.s32 0, %v751
        %v753 = vrot.slane %v97, %v752
        %v754 = vlaneseq
        %v755 = vshrl.u32 %v754, 7
        %v756 = vsub.s32 0, %v755
        %v757 = vrot.slane %v98, %v756
        %v758 = vlaneseq
        %v759 = vshrl.u32 %v758, 7
        %v760 = vsub.s32 0, %v759
        %v761 = vrot.slane %v99, %v760
        %v762 = vlaneseq
        %v763 = vshrl.u32 %v762, 7
        %v764 = vsub.s32 0, %v763
        %v765 = vrot.slane %v100, %v764
        %v766 = vlaneseq
        %v767 = vshrl.u32 %v766, 7
        %v768 = vsub.s32 0, %v767
        %v769 = vrot.slane %v101, %v768
        %v770 = vlaneseq
        %v771 = vshrl.u32 %v770, 7
        %v772 = vsub.s32 0, %v771
        %v773 = vrot.slane %v102, %v772
        %v774 = vlaneseq
        %v775 = vshrl.u32 %v774, 7
        %v776 = vsub.s32 0, %v775
        %v777 = vrot.slane %v103, %v776
        %v778 = vlaneseq
        %v779 = vshrl.u32 %v778, 7
        %v780 = vsub.s32 0, %v779
        %v781 = vrot.slane %v104, %v780
        %v782 = vlaneseq
        %v783 = vshrl.u32 %v782, 7
        %v784 = vsub.s32 0, %v783
        %v785 = vrot.slane %v105, %v784
        %v786 = vlaneseq
        %v787 = vshrl.u32 %v786, 7
        %v788 = vsub.s32 0, %v787
        %v789 = vrot.slane %v106, %v788
        %v790 = vlaneseq
        %v791 = vshrl.u32 %v790, 7
        %v792 = vsub.s32 0, %v791
        %v793 = vrot.slane %v107, %v792
        %v794 = vlaneseq
        %v795 = vshrl.u32 %v794, 7
        %v796 = vsub.s32 0, %v795
        %v797 = vrot.slane %v108, %v796
        %v798 = vlaneseq
        %v799 = vshrl.u32 %v798, 7
        %v800 = vsub.s32 0, %v799
        %v801 = vrot.slane %v109, %v800
        %v802 = vlaneseq
        %v803 = vshrl.u32 %v802, 7
        %v804 = vsub.s32 0, %v803
        %v805 = vrot.slane %v110, %v804
        %v806 = vlaneseq
        %v807 = vshrl.u32 %v806, 7
        %v808 = vsub.s32 0, %v807
        %v809 = vrot.slane %v111, %v808
        %v810 = vlaneseq
        %v811 = vshrl.u32 %v810, 7
        %v812 = vsub.s32 0, %v811
        %v813 = vrot.slane %v112, %v812
        %v814 = vlaneseq
        %v815 = vshrl.u32 %v814, 7
        %v816 = vsub.s32 0, %v815
        %v817 = vrot.slane %v113, %v816
        %v818 = vlaneseq
        %v819 = vshrl.u32 %v818, 7
        %v820 = vsub.s32 0, %v819
        %v821 = vrot.slane %v114, %v820
        %v822 = vlaneseq
        %v823 = vshrl.u32 %v822, 7
        %v824 = vsub.s32 0, %v823
        %v825 = vrot.slane %v115, %v824
        %v826 = vlaneseq
        %v827 = vshrl.u32 %v826, 7
        %v828 = vsub.s32 0, %v827
        %v829 = vrot.slane %v116, %v828
        %v830 = vlaneseq
        %v831 = vshrl.u32 %v830, 7
        %v832 = vsub.s32 0, %v831
        %v833 = vrot.slane %v117, %v832
        %v834 = vlaneseq
        %v835 = vshrl.u32 %v834, 7
        %v836 = vsub.s32 0, %v835
        %v837 = vrot.slane %v118, %v836
        %v838 = vlaneseq
        %v839 = vshrl.u32 %v838, 7
        %v840 = vsub.s32 0, %v839
        %v841 = vrot.slane %v119, %v840
        %v842 = vlaneseq
        %v843 = vshrl.u32 %v842, 7
        %v844 = vsub.s32 0, %v843
        %v845 = vrot.slane %v120, %v844
        %v846 = vlaneseq
        %v847 = vshrl.u32 %v846, 7
        %v848 = vsub.s32 0, %v847
        %v849 = vrot.slane %v121, %v848
        %v850 = vlaneseq
        %v851 = vshrl.u32 %v850, 7
        %v852 = vsub.s32 0, %v851
        %v853 = vrot.slane %v122, %v852
        %v854 = vlaneseq
        %v855 = vshrl.u32 %v854, 7
        %v856 = vsub.s32 0, %v855
        %v857 = vrot.slane %v123, %v856
        %v858 = vlaneseq
        %v859 = vshrl.u32 %v858, 7
        %v860 = vsub.s32 0, %v859
        %v861 = vrot.slane %v124, %v860
        %v862 = vlaneseq
        %v863 = vshrl.u32 %v862, 7
        %v864 = vsub.s32 0, %v863
        %v865 = vrot.slane %v125, %v864
        %v866 = vlaneseq
        %v867 = vshrl.u32 %v866, 7
        %v868 = vsub.s32 0, %v867
        %v869 = vrot.slane %v126, %v868
        %v870 = vlaneseq
        %v871 = vshrl.u32 %v870, 7
        %v872 = vsub.s32 0, %v871
        %v873 = vrot.slane %v127, %v872
        %v906 = vmul.f32 %v682, %v749
        %v907 = vmul.f32 %v683, %v753
        %v908 = vmul.f32 %v684, %v757
        %v909 = vmul.f32 %v685, %v761
        %v910 = vmul.f32 %v686, %v765
        %v911 = vmul.f32 %v687, %v769
        %v912 = vmul.f32 %v688, %v773
        %v913 = vmul.f32 %v689, %v777
        %v914 = vmul.f32 %v690, %v781
        %v915 = vmul.f32 %v691, %v785
        %v916 = vmul.f32 %v692, %v789
        %v917 = vmul.f32 %v693, %v793
        %v918 = vmul.f32 %v694, %v797
        %v919 = vmul.f32 %v695, %v801
        %v920 = vmul.f32 %v696, %v805
        %v921 = vmul.f32 %v697, %v809
        %v922 = vmul.f32 %v698, %v813
        %v923 = vmul.f32 %v699, %v817
        %v924 = vmul.f32 %v700, %v821
        %v925 = vmul.f32 %v701, %v825
        %v926 = vmul.f32 %v702, %v829
        %v927 = vmul.f32 %v703, %v833
        %v928 = vmul.f32 %v704, %v837
        %v929 = vmul.f32 %v705, %v841
        %v930 = vmul.f32 %v706, %v845
        %v931 = vmul.f32 %v707, %v849
        %v932 = vmul.f32 %v708, %v853
        %v933 = vmul.f32 %v709, %v857
        %v934 = vmul.f32 %v710, %v861
        %v935 = vmul.f32 %v711, %v865
        %v936 = vmul.f32 %v712, %v869
        %v937 = vmul.f32 %v713, %v873
        %v938 = vxor.u32 %v906, 2147483648
        %v939 = vxor.u32 %v907, 2147483648
        %v940 = vxor.u32 %v908, 2147483648
        %v941 = vxor.u32 %v909, 2147483648
        %v942 = vxor.u32 %v910, 2147483648
        %v943 = vxor.u32 %v911, 2147483648
        %v944 = vxor.u32 %v912, 2147483648
        %v945 = vxor.u32 %v913, 2147483648
        %v946 = vxor.u32 %v914, 2147483648
        %v947 = vxor.u32 %v915, 2147483648
        %v948 = vxor.u32 %v916, 2147483648
        %v949 = vxor.u32 %v917, 2147483648
        %v950 = vxor.u32 %v918, 2147483648
        %v951 = vxor.u32 %v919, 2147483648
        %v952 = vxor.u32 %v920, 2147483648
        %v953 = vxor.u32 %v921, 2147483648
        %v954 = vxor.u32 %v922, 2147483648
        %v955 = vxor.u32 %v923, 2147483648
        %v956 = vxor.u32 %v924, 2147483648
        %v957 = vxor.u32 %v925, 2147483648
        %v958 = vxor.u32 %v926, 2147483648
        %v959 = vxor.u32 %v927, 2147483648
        %v960 = vxor.u32 %v928, 2147483648
        %v961 = vxor.u32 %v929, 2147483648
        %v962 = vxor.u32 %v930, 2147483648
        %v963 = vxor.u32 %v931, 2147483648
        %v964 = vxor.u32 %v932, 2147483648
        %v965 = vxor.u32 %v933, 2147483648
        %v966 = vxor.u32 %v934, 2147483648
        %v967 = vxor.u32 %v935, 2147483648
        %v968 = vxor.u32 %v936, 2147483648
        %v969 = vxor.u32 %v937, 2147483648
        %v970 = vmul.f32 %v938, 1.442695
        %v971 = vpow.pop %v970
        %v972 = vmul.f32 %v939, 1.442695
        %v973 = vpow.pop %v972
        %v974 = vmul.f32 %v940, 1.442695
        %v975 = vpow.pop %v974
        %v976 = vmul.f32 %v941, 1.442695
        %v977 = vpow.pop %v976
        %v978 = vmul.f32 %v942, 1.442695
        %v979 = vpow.pop %v978
        %v980 = vmul.f32 %v943, 1.442695
        %v981 = vpow.pop %v980
        %v982 = vmul.f32 %v944, 1.442695
        %v983 = vpow.pop %v982
        %v984 = vmul.f32 %v945, 1.442695
        %v985 = vpow.pop %v984
        %v986 = vmul.f32 %v946, 1.442695
        %v987 = vpow.pop %v986
        %v988 = vmul.f32 %v947, 1.442695
        %v989 = vpow.pop %v988
        %v990 = vmul.f32 %v948, 1.442695
        %v991 = vpow.pop %v990
        %v992 = vmul.f32 %v949, 1.442695
        %v993 = vpow.pop %v992
        %v994 = vmul.f32 %v950, 1.442695
        %v995 = vpow.pop %v994
        %v996 = vmul.f32 %v951, 1.442695
        %v997 = vpow.pop %v996
        %v998 = vmul.f32 %v952, 1.442695
        %v999 = vpow.pop %v998
        %v1000 = vmul.f32 %v953, 1.442695
        %v1001 = vpow.pop %v1000
        %v1002 = vmul.f32 %v954, 1.442695
        %v1003 = vpow.pop %v1002
        %v1004 = vmul.f32 %v955, 1.442695
        %v1005 = vpow.pop %v1004
        %v1006 = vmul.f32 %v956, 1.442695
        %v1007 = vpow.pop %v1006
        %v1008 = vmul.f32 %v957, 1.442695
        %v1009 = vpow.pop %v1008
        %v1010 = vmul.f32 %v958, 1.442695
        %v1011 = vpow.pop %v1010
        %v1012 = vmul.f32 %v959, 1.442695
        %v1013 = vpow.pop %v1012
        %v1014 = vmul.f32 %v960, 1.442695
        %v1015 = vpow.pop %v1014
        %v1016 = vmul.f32 %v961, 1.442695
        %v1017 = vpow.pop %v1016
        %v1018 = vmul.f32 %v962, 1.442695
        %v1019 = vpow.pop %v1018
        %v1020 = vmul.f32 %v963, 1.442695
        %v1021 = vpow.pop %v1020
        %v1022 = vmul.f32 %v964, 1.442695
        %v1023 = vpow.pop %v1022
        %v1024 = vmul.f32 %v965, 1.442695
        %v1025 = vpow.pop %v1024
        %v1026 = vmul.f32 %v966, 1.442695
        %v1027 = vpow.pop %v1026
        %v1028 = vmul.f32 %v967, 1.442695
        %v1029 = vpow.pop %v1028
        %v1030 = vmul.f32 %v968, 1.442695
        %v1031 = vpow.pop %v1030
        %v1032 = vmul.f32 %v969, 1.442695
        %v1033 = vpow.pop %v1032
        %v1034 = vadd.f32 %v971, 1.0
        %v1035 = vadd.f32 %v973, 1.0
        %v1036 = vadd.f32 %v975, 1.0
        %v1037 = vadd.f32 %v977, 1.0
        %v1038 = vadd.f32 %v979, 1.0
        %v1039 = vadd.f32 %v981, 1.0
        %v1040 = vadd.f32 %v983, 1.0
        %v1041 = vadd.f32 %v985, 1.0
        %v1042 = vadd.f32 %v987, 1.0
        %v1043 = vadd.f32 %v989, 1.0
        %v1044 = vadd.f32 %v991, 1.0
        %v1045 = vadd.f32 %v993, 1.0
        %v1046 = vadd.f32 %v995, 1.0
        %v1047 = vadd.f32 %v997, 1.0
        %v1048 = vadd.f32 %v999, 1.0
        %v1049 = vadd.f32 %v1001, 1.0
        %v1050 = vadd.f32 %v1003, 1.0
        %v1051 = vadd.f32 %v1005, 1.0
        %v1052 = vadd.f32 %v1007, 1.0
        %v1053 = vadd.f32 %v1009, 1.0
        %v1054 = vadd.f32 %v1011, 1.0
        %v1055 = vadd.f32 %v1013, 1.0
        %v1056 = vadd.f32 %v1015, 1.0
        %v1057 = vadd.f32 %v1017, 1.0
        %v1058 = vadd.f32 %v1019, 1.0
        %v1059 = vadd.f32 %v1021, 1.0
        %v1060 = vadd.f32 %v1023, 1.0
        %v1061 = vadd.f32 %v1025, 1.0
        %v1062 = vadd.f32 %v1027, 1.0
        %v1063 = vadd.f32 %v1029, 1.0
        %v1064 = vadd.f32 %v1031, 1.0
        %v1065 = vadd.f32 %v1033, 1.0
        %v1066 = vrcp.pop %v1034
        %v1067 = vmul.f32 1.0, %v1066
        %v1068 = vrcp.pop %v1035
        %v1069 = vmul.f32 1.0, %v1068
        %v1070 = vrcp.pop %v1036
        %v1071 = vmul.f32 1.0, %v1070
        %v1072 = vrcp.pop %v1037
        %v1073 = vmul.f32 1.0, %v1072
        %v1074 = vrcp.pop %v1038
        %v1075 = vmul.f32 1.0, %v1074
        %v1076 = vrcp.pop %v1039
        %v1077 = vmul.f32 1.0, %v1076
        %v1078 = vrcp.pop %v1040
        %v1079 = vmul.f32 1.0, %v1078
        %v1080 = vrcp.pop %v1041
        %v1081 = vmul.f32 1.0, %v1080
        %v1082 = vrcp.pop %v1042
        %v1083 = vmul.f32 1.0, %v1082
        %v1084 = vrcp.pop %v1043
        %v1085 = vmul.f32 1.0, %v1084
        %v1086 = vrcp.pop %v1044
        %v1087 = vmul.f32 1.0, %v1086
        %v1088 = vrcp.pop %v1045
        %v1089 = vmul.f32 1.0, %v1088
        %v1090 = vrcp.pop %v1046
        %v1091 = vmul.f32 1.0, %v1090
        %v1092 = vrcp.pop %v1047
        %v1093 = vmul.f32 1.0, %v1092
        %v1094 = vrcp.pop %v1048
        %v1095 = vmul.f32 1.0, %v1094
        %v1096 = vrcp.pop %v1049
        %v1097 = vmul.f32 1.0, %v1096
        %v1098 = vrcp.pop %v1050
        %v1099 = vmul.f32 1.0, %v1098
        %v1100 = vrcp.pop %v1051
        %v1101 = vmul.f32 1.0, %v1100
        %v1102 = vrcp.pop %v1052
        %v1103 = vmul.f32 1.0, %v1102
        %v1104 = vrcp.pop %v1053
        %v1105 = vmul.f32 1.0, %v1104
        %v1106 = vrcp.pop %v1054
        %v1107 = vmul.f32 1.0, %v1106
        %v1108 = vrcp.pop %v1055
        %v1109 = vmul.f32 1.0, %v1108
        %v1110 = vrcp.pop %v1056
        %v1111 = vmul.f32 1.0, %v1110
        %v1112 = vrcp.pop %v1057
        %v1113 = vmul.f32 1.0, %v1112
        %v1114 = vrcp.pop %v1058
        %v1115 = vmul.f32 1.0, %v1114
        %v1116 = vrcp.pop %v1059
        %v1117 = vmul.f32 1.0, %v1116
        %v1118 = vrcp.pop %v1060
        %v1119 = vmul.f32 1.0, %v1118
        %v1120 = vrcp.pop %v1061
        %v1121 = vmul.f32 1.0, %v1120
        %v1122 = vrcp.pop %v1062
        %v1123 = vmul.f32 1.0, %v1122
        %v1124 = vrcp.pop %v1063
        %v1125 = vmul.f32 1.0, %v1124
        %v1126 = vrcp.pop %v1064
        %v1127 = vmul.f32 1.0, %v1126
        %v1128 = vrcp.pop %v1065
        %v1129 = vmul.f32 1.0, %v1128
        %v1162 = vlaneseq
        %v1163 = vshrl.u32 %v1162, 7
        %v1164 = vsub.s32 0, %v1163
        %v1165 = vrot.slane %v160, %v1164
        %v1166 = vlaneseq
        %v1167 = vshrl.u32 %v1166, 7
        %v1168 = vsub.s32 0, %v1167
        %v1169 = vrot.slane %v161, %v1168
        %v1170 = vlaneseq
        %v1171 = vshrl.u32 %v1170, 7
        %v1172 = vsub.s32 0, %v1171
        %v1173 = vrot.slane %v162, %v1172
        %v1174 = vlaneseq
        %v1175 = vshrl.u32 %v1174, 7
        %v1176 = vsub.s32 0, %v1175
        %v1177 = vrot.slane %v163, %v1176
        %v1178 = vlaneseq
        %v1179 = vshrl.u32 %v1178, 7
        %v1180 = vsub.s32 0, %v1179
        %v1181 = vrot.slane %v164, %v1180
        %v1182 = vlaneseq
        %v1183 = vshrl.u32 %v1182, 7
        %v1184 = vsub.s32 0, %v1183
        %v1185 = vrot.slane %v165, %v1184
        %v1186 = vlaneseq
        %v1187 = vshrl.u32 %v1186, 7
        %v1188 = vsub.s32 0, %v1187
        %v1189 = vrot.slane %v166, %v1188
        %v1190 = vlaneseq
        %v1191 = vshrl.u32 %v1190, 7
        %v1192 = vsub.s32 0, %v1191
        %v1193 = vrot.slane %v167, %v1192
        %v1194 = vlaneseq
        %v1195 = vshrl.u32 %v1194, 7
        %v1196 = vsub.s32 0, %v1195
        %v1197 = vrot.slane %v168, %v1196
        %v1198 = vlaneseq
        %v1199 = vshrl.u32 %v1198, 7
        %v1200 = vsub.s32 0, %v1199
        %v1201 = vrot.slane %v169, %v1200
        %v1202 = vlaneseq
        %v1203 = vshrl.u32 %v1202, 7
        %v1204 = vsub.s32 0, %v1203
        %v1205 = vrot.slane %v170, %v1204
        %v1206 = vlaneseq
        %v1207 = vshrl.u32 %v1206, 7
        %v1208 = vsub.s32 0, %v1207
        %v1209 = vrot.slane %v171, %v1208
        %v1210 = vlaneseq
        %v1211 = vshrl.u32 %v1210, 7
        %v1212 = vsub.s32 0, %v1211
        %v1213 = vrot.slane %v172, %v1212
        %v1214 = vlaneseq
        %v1215 = vshrl.u32 %v1214, 7
        %v1216 = vsub.s32 0, %v1215
        %v1217 = vrot.slane %v173, %v1216
        %v1218 = vlaneseq
        %v1219 = vshrl.u32 %v1218, 7
        %v1220 = vsub.s32 0, %v1219
        %v1221 = vrot.slane %v174, %v1220
        %v1222 = vlaneseq
        %v1223 = vshrl.u32 %v1222, 7
        %v1224 = vsub.s32 0, %v1223
        %v1225 = vrot.slane %v175, %v1224
        %v1226 = vlaneseq
        %v1227 = vshrl.u32 %v1226, 7
        %v1228 = vsub.s32 0, %v1227
        %v1229 = vrot.slane %v176, %v1228
        %v1230 = vlaneseq
        %v1231 = vshrl.u32 %v1230, 7
        %v1232 = vsub.s32 0, %v1231
        %v1233 = vrot.slane %v177, %v1232
        %v1234 = vlaneseq
        %v1235 = vshrl.u32 %v1234, 7
        %v1236 = vsub.s32 0, %v1235
        %v1237 = vrot.slane %v178, %v1236
        %v1238 = vlaneseq
        %v1239 = vshrl.u32 %v1238, 7
        %v1240 = vsub.s32 0, %v1239
        %v1241 = vrot.slane %v179, %v1240
        %v1242 = vlaneseq
        %v1243 = vshrl.u32 %v1242, 7
        %v1244 = vsub.s32 0, %v1243
        %v1245 = vrot.slane %v180, %v1244
        %v1246 = vlaneseq
        %v1247 = vshrl.u32 %v1246, 7
        %v1248 = vsub.s32 0, %v1247
        %v1249 = vrot.slane %v181, %v1248
        %v1250 = vlaneseq
        %v1251 = vshrl.u32 %v1250, 7
        %v1252 = vsub.s32 0, %v1251
        %v1253 = vrot.slane %v182, %v1252
        %v1254 = vlaneseq
        %v1255 = vshrl.u32 %v1254, 7
        %v1256 = vsub.s32 0, %v1255
        %v1257 = vrot.slane %v183, %v1256
        %v1258 = vlaneseq
        %v1259 = vshrl.u32 %v1258, 7
        %v1260 = vsub.s32 0, %v1259
        %v1261 = vrot.slane %v184, %v1260
        %v1262 = vlaneseq
        %v1263 = vshrl.u32 %v1262, 7
        %v1264 = vsub.s32 0, %v1263
        %v1265 = vrot.slane %v185, %v1264
        %v1266 = vlaneseq
        %v1267 = vshrl.u32 %v1266, 7
        %v1268 = vsub.s32 0, %v1267
        %v1269 = vrot.slane %v186, %v1268
        %v1270 = vlaneseq
        %v1271 = vshrl.u32 %v1270, 7
        %v1272 = vsub.s32 0, %v1271
        %v1273 = vrot.slane %v187, %v1272
        %v1274 = vlaneseq
        %v1275 = vshrl.u32 %v1274, 7
        %v1276 = vsub.s32 0, %v1275
        %v1277 = vrot.slane %v188, %v1276
        %v1278 = vlaneseq
        %v1279 = vshrl.u32 %v1278, 7
        %v1280 = vsub.s32 0, %v1279
        %v1281 = vrot.slane %v189, %v1280
        %v1282 = vlaneseq
        %v1283 = vshrl.u32 %v1282, 7
        %v1284 = vsub.s32 0, %v1283
        %v1285 = vrot.slane %v190, %v1284
        %v1286 = vlaneseq
        %v1287 = vshrl.u32 %v1286, 7
        %v1288 = vsub.s32 0, %v1287
        %v1289 = vrot.slane %v191, %v1288
        %v1322 = vmul.f32 %v1165, %v1067
        %v1323 = vmul.f32 %v1169, %v1069
        %v1324 = vmul.f32 %v1173, %v1071
        %v1325 = vmul.f32 %v1177, %v1073
        %v1326 = vmul.f32 %v1181, %v1075
        %v1327 = vmul.f32 %v1185, %v1077
        %v1328 = vmul.f32 %v1189, %v1079
        %v1329 = vmul.f32 %v1193, %v1081
        %v1330 = vmul.f32 %v1197, %v1083
        %v1331 = vmul.f32 %v1201, %v1085
        %v1332 = vmul.f32 %v1205, %v1087
        %v1333 = vmul.f32 %v1209, %v1089
        %v1334 = vmul.f32 %v1213, %v1091
        %v1335 = vmul.f32 %v1217, %v1093
        %v1336 = vmul.f32 %v1221, %v1095
        %v1337 = vmul.f32 %v1225, %v1097
        %v1338 = vmul.f32 %v1229, %v1099
        %v1339 = vmul.f32 %v1233, %v1101
        %v1340 = vmul.f32 %v1237, %v1103
        %v1341 = vmul.f32 %v1241, %v1105
        %v1342 = vmul.f32 %v1245, %v1107
        %v1343 = vmul.f32 %v1249, %v1109
        %v1344 = vmul.f32 %v1253, %v1111
        %v1345 = vmul.f32 %v1257, %v1113
        %v1346 = vmul.f32 %v1261, %v1115
        %v1347 = vmul.f32 %v1265, %v1117
        %v1348 = vmul.f32 %v1269, %v1119
        %v1349 = vmul.f32 %v1273, %v1121
        %v1350 = vmul.f32 %v1277, %v1123
        %v1351 = vmul.f32 %v1281, %v1125
        %v1352 = vmul.f32 %v1285, %v1127
        %v1353 = vmul.f32 %v1289, %v1129
        %vm1354 = vcmask 254976
        %v1355 = vsel %vm1354, %v1322, 0.0
        %v1356 = vsel %vm1354, %v1323, 0.0
        %v1357 = vadd.f32 %v1355, %v1356
        %v1358 = vsel %vm1354, %v1324, 0.0
        %v1359 = vadd.f32 %v1357, %v1358
        %v1360 = vsel %vm1354, %v1325, 0.0
        %v1361 = vadd.f32 %v1359, %v1360
        %v1362 = vsel %vm1354, %v1326, 0.0
        %v1363 = vadd.f32 %v1361, %v1362
        %v1364 = vsel %vm1354, %v1327, 0.0
        %v1365 = vadd.f32 %v1363, %v1364
        %v1366 = vsel %vm1354, %v1328, 0.0
        %v1367 = vadd.f32 %v1365, %v1366
        %v1368 = vsel %vm1354, %v1329, 0.0
        %v1369 = vadd.f32 %v1367, %v1368
        %v1370 = vsel %vm1354, %v1330, 0.0
        %v1371 = vadd.f32 %v1369, %v1370
        %v1372 = vsel %vm1354, %v1331, 0.0
        %v1373 = vadd.f32 %v1371, %v1372
        %v1374 = vsel %vm1354, %v1332, 0.0
        %v1375 = vadd.f32 %v1373, %v1374
        %v1376 = vsel %vm1354, %v1333, 0.0
        %v1377 = vadd.f32 %v1375, %v1376
        %v1378 = vsel %vm1354, %v1334, 0.0
        %v1379 = vadd.f32 %v1377, %v1378
        %v1380 = vsel %vm1354, %v1335, 0.0
        %v1381 = vadd.f32 %v1379, %v1380
        %v1382 = vsel %vm1354, %v1336, 0.0
        %v1383 = vadd.f32 %v1381, %v1382
        %v1384 = vsel %vm1354, %v1337, 0.0
        %v1385 = vadd.f32 %v1383, %v1384
        %v1386 = vsel %vm1354, %v1338, 0.0
        %v1387 = vadd.f32 %v1385, %v1386
        %v1388 = vsel %vm1354, %v1339, 0.0
        %v1389 = vadd.f32 %v1387, %v1388
        %v1390 = vsel %vm1354, %v1340, 0.0
        %v1391 = vadd.f32 %v1389, %v1390
        %v1392 = vsel %vm1354, %v1341, 0.0
        %v1393 = vadd.f32 %v1391, %v1392
        %v1394 = vsel %vm1354, %v1342, 0.0
        %v1395 = vadd.f32 %v1393, %v1394
        %v1396 = vsel %vm1354, %v1343, 0.0
        %v1397 = vadd.f32 %v1395, %v1396
        %v1398 = vsel %vm1354, %v1344, 0.0
        %v1399 = vadd.f32 %v1397, %v1398
        %v1400 = vsel %vm1354, %v1345, 0.0
        %v1401 = vadd.f32 %v1399, %v1400
        %v1402 = vsel %vm1354, %v1346, 0.0
        %v1403 = vadd.f32 %v1401, %v1402
        %v1404 = vsel %vm1354, %v1347, 0.0
        %v1405 = vadd.f32 %v1403, %v1404
        %v1406 = vsel %vm1354, %v1348, 0.0
        %v1407 = vadd.f32 %v1405, %v1406
        %v1408 = vsel %vm1354, %v1349, 0.0
        %v1409 = vadd.f32 %v1407, %v1408
        %v1410 = vsel %vm1354, %v1350, 0.0
        %v1411 = vadd.f32 %v1409, %v1410
        %v1412 = vsel %vm1354, %v1351, 0.0
        %v1413 = vadd.f32 %v1411, %v1412
        %v1414 = vsel %vm1354, %v1352, 0.0
        %v1415 = vadd.f32 %v1413, %v1414
        %v1416 = vsel %vm1354, %v1353, 0.0
        %v1417 = vadd.f32 %v1415, %v1416
        %v1418 = vadd.f32 %v1417, %v205
        %v1451 = vlaneseq
        %v1452 = vshrl.u32 %v1451, 7
        %v1453 = vsub.s32 0, %v1452
        %v1454 = vrot.slane %v128, %v1453
        %v1455 = vlaneseq
        %v1456 = vshrl.u32 %v1455, 7
        %v1457 = vsub.s32 0, %v1456
        %v1458 = vrot.slane %v129, %v1457
        %v1459 = vlaneseq
        %v1460 = vshrl.u32 %v1459, 7
        %v1461 = vsub.s32 0, %v1460
        %v1462 = vrot.slane %v130, %v1461
        %v1463 = vlaneseq
        %v1464 = vshrl.u32 %v1463, 7
        %v1465 = vsub.s32 0, %v1464
        %v1466 = vrot.slane %v131, %v1465
        %v1467 = vlaneseq
        %v1468 = vshrl.u32 %v1467, 7
        %v1469 = vsub.s32 0, %v1468
        %v1470 = vrot.slane %v132, %v1469
        %v1471 = vlaneseq
        %v1472 = vshrl.u32 %v1471, 7
        %v1473 = vsub.s32 0, %v1472
        %v1474 = vrot.slane %v133, %v1473
        %v1475 = vlaneseq
        %v1476 = vshrl.u32 %v1475, 7
        %v1477 = vsub.s32 0, %v1476
        %v1478 = vrot.slane %v134, %v1477
        %v1479 = vlaneseq
        %v1480 = vshrl.u32 %v1479, 7
        %v1481 = vsub.s32 0, %v1480
        %v1482 = vrot.slane %v135, %v1481
        %v1483 = vlaneseq
        %v1484 = vshrl.u32 %v1483, 7
        %v1485 = vsub.s32 0, %v1484
        %v1486 = vrot.slane %v136, %v1485
        %v1487 = vlaneseq
        %v1488 = vshrl.u32 %v1487, 7
        %v1489 = vsub.s32 0, %v1488
        %v1490 = vrot.slane %v137, %v1489
        %v1491 = vlaneseq
        %v1492 = vshrl.u32 %v1491, 7
        %v1493 = vsub.s32 0, %v1492
        %v1494 = vrot.slane %v138, %v1493
        %v1495 = vlaneseq
        %v1496 = vshrl.u32 %v1495, 7
        %v1497 = vsub.s32 0, %v1496
        %v1498 = vrot.slane %v139, %v1497
        %v1499 = vlaneseq
        %v1500 = vshrl.u32 %v1499, 7
        %v1501 = vsub.s32 0, %v1500
        %v1502 = vrot.slane %v140, %v1501
        %v1503 = vlaneseq
        %v1504 = vshrl.u32 %v1503, 7
        %v1505 = vsub.s32 0, %v1504
        %v1506 = vrot.slane %v141, %v1505
        %v1507 = vlaneseq
        %v1508 = vshrl.u32 %v1507, 7
        %v1509 = vsub.s32 0, %v1508
        %v1510 = vrot.slane %v142, %v1509
        %v1511 = vlaneseq
        %v1512 = vshrl.u32 %v1511, 7
        %v1513 = vsub.s32 0, %v1512
        %v1514 = vrot.slane %v143, %v1513
        %v1515 = vlaneseq
        %v1516 = vshrl.u32 %v1515, 7
        %v1517 = vsub.s32 0, %v1516
        %v1518 = vrot.slane %v144, %v1517
        %v1519 = vlaneseq
        %v1520 = vshrl.u32 %v1519, 7
        %v1521 = vsub.s32 0, %v1520
        %v1522 = vrot.slane %v145, %v1521
        %v1523 = vlaneseq
        %v1524 = vshrl.u32 %v1523, 7
        %v1525 = vsub.s32 0, %v1524
        %v1526 = vrot.slane %v146, %v1525
        %v1527 = vlaneseq
        %v1528 = vshrl.u32 %v1527, 7
        %v1529 = vsub.s32 0, %v1528
        %v1530 = vrot.slane %v147, %v1529
        %v1531 = vlaneseq
        %v1532 = vshrl.u32 %v1531, 7
        %v1533 = vsub.s32 0, %v1532
        %v1534 = vrot.slane %v148, %v1533
        %v1535 = vlaneseq
        %v1536 = vshrl.u32 %v1535, 7
        %v1537 = vsub.s32 0, %v1536
        %v1538 = vrot.slane %v149, %v1537
        %v1539 = vlaneseq
        %v1540 = vshrl.u32 %v1539, 7
        %v1541 = vsub.s32 0, %v1540
        %v1542 = vrot.slane %v150, %v1541
        %v1543 = vlaneseq
        %v1544 = vshrl.u32 %v1543, 7
        %v1545 = vsub.s32 0, %v1544
        %v1546 = vrot.slane %v151, %v1545
        %v1547 = vlaneseq
        %v1548 = vshrl.u32 %v1547, 7
        %v1549 = vsub.s32 0, %v1548
        %v1550 = vrot.slane %v152, %v1549
        %v1551 = vlaneseq
        %v1552 = vshrl.u32 %v1551, 7
        %v1553 = vsub.s32 0, %v1552
        %v1554 = vrot.slane %v153, %v1553
        %v1555 = vlaneseq
        %v1556 = vshrl.u32 %v1555, 7
        %v1557 = vsub.s32 0, %v1556
        %v1558 = vrot.slane %v154, %v1557
        %v1559 = vlaneseq
        %v1560 = vshrl.u32 %v1559, 7
        %v1561 = vsub.s32 0, %v1560
        %v1562 = vrot.slane %v155, %v1561
        %v1563 = vlaneseq
        %v1564 = vshrl.u32 %v1563, 7
        %v1565 = vsub.s32 0, %v1564
        %v1566 = vrot.slane %v156, %v1565
        %v1567 = vlaneseq
        %v1568 = vshrl.u32 %v1567, 7
        %v1569 = vsub.s32 0, %v1568
        %v1570 = vrot.slane %v157, %v1569
        %v1571 = vlaneseq
        %v1572 = vshrl.u32 %v1571, 7
        %v1573 = vsub.s32 0, %v1572
        %v1574 = vrot.slane %v158, %v1573
        %v1575 = vlaneseq
        %v1576 = vshrl.u32 %v1575, 7
        %v1577 = vsub.s32 0, %v1576
        %v1578 = vrot.slane %v159, %v1577
        %v1611 = vmul.f32 %v1454, %v1067
        %v1612 = vmul.f32 %v1458, %v1069
        %v1613 = vmul.f32 %v1462, %v1071
        %v1614 = vmul.f32 %v1466, %v1073
        %v1615 = vmul.f32 %v1470, %v1075
        %v1616 = vmul.f32 %v1474, %v1077
        %v1617 = vmul.f32 %v1478, %v1079
        %v1618 = vmul.f32 %v1482, %v1081
        %v1619 = vmul.f32 %v1486, %v1083
        %v1620 = vmul.f32 %v1490, %v1085
        %v1621 = vmul.f32 %v1494, %v1087
        %v1622 = vmul.f32 %v1498, %v1089
        %v1623 = vmul.f32 %v1502, %v1091
        %v1624 = vmul.f32 %v1506, %v1093
        %v1625 = vmul.f32 %v1510, %v1095
        %v1626 = vmul.f32 %v1514, %v1097
        %v1627 = vmul.f32 %v1518, %v1099
        %v1628 = vmul.f32 %v1522, %v1101
        %v1629 = vmul.f32 %v1526, %v1103
        %v1630 = vmul.f32 %v1530, %v1105
        %v1631 = vmul.f32 %v1534, %v1107
        %v1632 = vmul.f32 %v1538, %v1109
        %v1633 = vmul.f32 %v1542, %v1111
        %v1634 = vmul.f32 %v1546, %v1113
        %v1635 = vmul.f32 %v1550, %v1115
        %v1636 = vmul.f32 %v1554, %v1117
        %v1637 = vmul.f32 %v1558, %v1119
        %v1638 = vmul.f32 %v1562, %v1121
        %v1639 = vmul.f32 %v1566, %v1123
        %v1640 = vmul.f32 %v1570, %v1125
        %v1641 = vmul.f32 %v1574, %v1127
        %v1642 = vmul.f32 %v1578, %v1129
        %v1643 = vsel %vm1354, %v1611, 0.0
        %v1644 = vsel %vm1354, %v1612, 0.0
        %v1645 = vadd.f32 %v1643, %v1644
        %v1646 = vsel %vm1354, %v1613, 0.0
        %v1647 = vadd.f32 %v1645, %v1646
        %v1648 = vsel %vm1354, %v1614, 0.0
        %v1649 = vadd.f32 %v1647, %v1648
        %v1650 = vsel %vm1354, %v1615, 0.0
        %v1651 = vadd.f32 %v1649, %v1650
        %v1652 = vsel %vm1354, %v1616, 0.0
        %v1653 = vadd.f32 %v1651, %v1652
        %v1654 = vsel %vm1354, %v1617, 0.0
        %v1655 = vadd.f32 %v1653, %v1654
        %v1656 = vsel %vm1354, %v1618, 0.0
        %v1657 = vadd.f32 %v1655, %v1656
        %v1658 = vsel %vm1354, %v1619, 0.0
        %v1659 = vadd.f32 %v1657, %v1658
        %v1660 = vsel %vm1354, %v1620, 0.0
        %v1661 = vadd.f32 %v1659, %v1660
        %v1662 = vsel %vm1354, %v1621, 0.0
        %v1663 = vadd.f32 %v1661, %v1662
        %v1664 = vsel %vm1354, %v1622, 0.0
        %v1665 = vadd.f32 %v1663, %v1664
        %v1666 = vsel %vm1354, %v1623, 0.0
        %v1667 = vadd.f32 %v1665, %v1666
        %v1668 = vsel %vm1354, %v1624, 0.0
        %v1669 = vadd.f32 %v1667, %v1668
        %v1670 = vsel %vm1354, %v1625, 0.0
        %v1671 = vadd.f32 %v1669, %v1670
        %v1672 = vsel %vm1354, %v1626, 0.0
        %v1673 = vadd.f32 %v1671, %v1672
        %v1674 = vsel %vm1354, %v1627, 0.0
        %v1675 = vadd.f32 %v1673, %v1674
        %v1676 = vsel %vm1354, %v1628, 0.0
        %v1677 = vadd.f32 %v1675, %v1676
        %v1678 = vsel %vm1354, %v1629, 0.0
        %v1679 = vadd.f32 %v1677, %v1678
        %v1680 = vsel %vm1354, %v1630, 0.0
        %v1681 = vadd.f32 %v1679, %v1680
        %v1682 = vsel %vm1354, %v1631, 0.0
        %v1683 = vadd.f32 %v1681, %v1682
        %v1684 = vsel %vm1354, %v1632, 0.0
        %v1685 = vadd.f32 %v1683, %v1684
        %v1686 = vsel %vm1354, %v1633, 0.0
        %v1687 = vadd.f32 %v1685, %v1686
        %v1688 = vsel %vm1354, %v1634, 0.0
        %v1689 = vadd.f32 %v1687, %v1688
        %v1690 = vsel %vm1354, %v1635, 0.0
        %v1691 = vadd.f32 %v1689, %v1690
        %v1692 = vsel %vm1354, %v1636, 0.0
        %v1693 = vadd.f32 %v1691, %v1692
        %v1694 = vsel %vm1354, %v1637, 0.0
        %v1695 = vadd.f32 %v1693, %v1694
        %v1696 = vsel %vm1354, %v1638, 0.0
        %v1697 = vadd.f32 %v1695, %v1696
        %v1698 = vsel %vm1354, %v1639, 0.0
        %v1699 = vadd.f32 %v1697, %v1698
        %v1700 = vsel %vm1354, %v1640, 0.0
        %v1701 = vadd.f32 %v1699, %v1700
        %v1702 = vsel %vm1354, %v1641, 0.0
        %v1703 = vadd.f32 %v1701, %v1702
        %v1704 = vsel %vm1354, %v1642, 0.0
        %v1705 = vadd.f32 %v1703, %v1704
        %v1706 = vadd.f32 %v1705, %v207
        %v1708 = vlaneseq
        %v1709 = vshrl.u32 %v1708, 7
        %v1710 = vsub.s32 0, %v1709
        %v1711 = vrot.slane %v61, %v1710
        %v1713 = vmul.f32 %v1711, %v210
        %v1715 = vlaneseq
        %v1716 = vshrl.u32 %v1715, 7
        %v1717 = vsub.s32 0, %v1716
        %v1718 = vrot.slane %v62, %v1717
        %v1720 = vadd.f32 %v1713, %v1718
        %v1721 = vadd.f32 %v1720, %v1418
        %v1723 = vlaneseq
        %v1724 = vshrl.u32 %v1723, 7
        %v1725 = vsub.s32 0, %v1724
        %v1726 = vrot.slane %v63, %v1725
        %v1728 = vadd.f32 %v1726, %v1706
        %v1729 = vadd.f32 %v1728, 1e-08
        %v1730 = vrcp.pop %v1729
        %v1731 = vmul.f32 %v1721, %v1730
        %1732 = vxpose.xlu0.b32.start [1/16] %v1731, 128
        %1733 = vxpose.xlu0.b32.cont [2/16] 0.0, 128
        %1734 = vxpose.xlu0.b32.cont [3/16] 0.0, 128
        %1735 = vxpose.xlu0.b32.cont [4/16] 0.0, 128
        %1736 = vxpose.xlu0.b32.cont [5/16] 0.0, 128
        %1737 = vxpose.xlu0.b32.cont [6/16] 0.0, 128
        %1738 = vxpose.xlu0.b32.cont [7/16] 0.0, 128
        %1739 = vxpose.xlu0.b32.cont [8/16] 0.0, 128
        %1740 = vxpose.xlu0.b32.cont [9/16] 0.0, 128
        %1741 = vxpose.xlu0.b32.cont [10/16] 0.0, 128
        %1742 = vxpose.xlu0.b32.cont [11/16] 0.0, 128
        %1743 = vxpose.xlu0.b32.cont [12/16] 0.0, 128
        %1744 = vxpose.xlu0.b32.cont [13/16] 0.0, 128
        %1745 = vxpose.xlu0.b32.cont [14/16] 0.0, 128
        %1746 = vxpose.xlu0.b32.cont [15/16] 0.0, 128
        %1747 = vxpose.xlu0.b32.end [16/16] 0.0, 128
        %v1748 = vpop.trf.xlu0
        %v1749 = vpop.trf.xlu0
        %v1750 = vpop.trf.xlu0
        %v1751 = vpop.trf.xlu0
        %v1752 = vpop.trf.xlu0
        %v1753 = vpop.trf.xlu0
        %v1754 = vpop.trf.xlu0
        %v1755 = vpop.trf.xlu0
        %v1756 = vpop.trf.xlu0
        %v1757 = vpop.trf.xlu0
        %v1758 = vpop.trf.xlu0
        %v1759 = vpop.trf.xlu0
        %v1760 = vpop.trf.xlu0
        %v1761 = vpop.trf.xlu0
        %v1762 = vpop.trf.xlu0
        %v1763 = vpop.trf.xlu0
        %v1764 = vlaneseq
        %v1765 = vshrl.u32 %v1764, 7
        %v1766 = vsub.s32 0, %v1765
        %v1767 = vrot.slane %v1748, %v1766
        %1769 = vbcast.lane.b32.xlu0 %v1767, 256
        %v1770 = vpop.permute.xlu0 %1769
        %v1771 = vlaneseq
        %v1772 = vshrl.u32 %v1771, 7
        %v1773 = vsub.s32 1, %v1772
        %v1774 = vrot.slane %v1748, %v1773
        %1776 = vbcast.lane.b32.xlu0 %v1774, 256
        %v1777 = vpop.permute.xlu0 %1776
        %v1778 = vlaneseq
        %v1779 = vshrl.u32 %v1778, 7
        %v1780 = vsub.s32 2, %v1779
        %v1781 = vrot.slane %v1748, %v1780
        %1783 = vbcast.lane.b32.xlu0 %v1781, 256
        %v1784 = vpop.permute.xlu0 %1783
        %v1785 = vlaneseq
        %v1786 = vshrl.u32 %v1785, 7
        %v1787 = vsub.s32 3, %v1786
        %v1788 = vrot.slane %v1748, %v1787
        %1790 = vbcast.lane.b32.xlu0 %v1788, 256
        %v1791 = vpop.permute.xlu0 %1790
        %v1792 = vlaneseq
        %v1793 = vshrl.u32 %v1792, 7
        %v1794 = vsub.s32 4, %v1793
        %v1795 = vrot.slane %v1748, %v1794
        %1797 = vbcast.lane.b32.xlu0 %v1795, 256
        %v1798 = vpop.permute.xlu0 %1797
        %v1799 = vlaneseq
        %v1800 = vshrl.u32 %v1799, 7
        %v1801 = vsub.s32 5, %v1800
        %v1802 = vrot.slane %v1748, %v1801
        %1804 = vbcast.lane.b32.xlu0 %v1802, 256
        %v1805 = vpop.permute.xlu0 %1804
        %v1806 = vlaneseq
        %v1807 = vshrl.u32 %v1806, 7
        %v1808 = vsub.s32 6, %v1807
        %v1809 = vrot.slane %v1748, %v1808
        %1811 = vbcast.lane.b32.xlu0 %v1809, 256
        %v1812 = vpop.permute.xlu0 %1811
        %v1813 = vlaneseq
        %v1814 = vshrl.u32 %v1813, 7
        %v1815 = vsub.s32 7, %v1814
        %v1816 = vrot.slane %v1748, %v1815
        %1818 = vbcast.lane.b32.xlu0 %v1816, 256
        %v1819 = vpop.permute.xlu0 %1818
        %v1820 = vlaneseq
        %v1821 = vshrl.u32 %v1820, 7
        %v1822 = vsub.s32 0, %v1821
        %v1823 = vrot.slane %v1749, %v1822
        %1825 = vbcast.lane.b32.xlu0 %v1823, 256
        %v1826 = vpop.permute.xlu0 %1825
        %v1827 = vlaneseq
        %v1828 = vshrl.u32 %v1827, 7
        %v1829 = vsub.s32 1, %v1828
        %v1830 = vrot.slane %v1749, %v1829
        %1832 = vbcast.lane.b32.xlu0 %v1830, 256
        %v1833 = vpop.permute.xlu0 %1832
        %v1834 = vlaneseq
        %v1835 = vshrl.u32 %v1834, 7
        %v1836 = vsub.s32 2, %v1835
        %v1837 = vrot.slane %v1749, %v1836
        %1839 = vbcast.lane.b32.xlu0 %v1837, 256
        %v1840 = vpop.permute.xlu0 %1839
        %v1841 = vlaneseq
        %v1842 = vshrl.u32 %v1841, 7
        %v1843 = vsub.s32 3, %v1842
        %v1844 = vrot.slane %v1749, %v1843
        %1846 = vbcast.lane.b32.xlu0 %v1844, 256
        %v1847 = vpop.permute.xlu0 %1846
        %v1848 = vlaneseq
        %v1849 = vshrl.u32 %v1848, 7
        %v1850 = vsub.s32 4, %v1849
        %v1851 = vrot.slane %v1749, %v1850
        %1853 = vbcast.lane.b32.xlu0 %v1851, 256
        %v1854 = vpop.permute.xlu0 %1853
        %v1855 = vlaneseq
        %v1856 = vshrl.u32 %v1855, 7
        %v1857 = vsub.s32 5, %v1856
        %v1858 = vrot.slane %v1749, %v1857
        %1860 = vbcast.lane.b32.xlu0 %v1858, 256
        %v1861 = vpop.permute.xlu0 %1860
        %v1862 = vlaneseq
        %v1863 = vshrl.u32 %v1862, 7
        %v1864 = vsub.s32 6, %v1863
        %v1865 = vrot.slane %v1749, %v1864
        %1867 = vbcast.lane.b32.xlu0 %v1865, 256
        %v1868 = vpop.permute.xlu0 %1867
        %v1869 = vlaneseq
        %v1870 = vshrl.u32 %v1869, 7
        %v1871 = vsub.s32 7, %v1870
        %v1872 = vrot.slane %v1749, %v1871
        %1874 = vbcast.lane.b32.xlu0 %v1872, 256
        %v1875 = vpop.permute.xlu0 %1874
        %v1876 = vlaneseq
        %v1877 = vshrl.u32 %v1876, 7
        %v1878 = vsub.s32 0, %v1877
        %v1879 = vrot.slane %v1750, %v1878
        %1881 = vbcast.lane.b32.xlu0 %v1879, 256
        %v1882 = vpop.permute.xlu0 %1881
        %v1883 = vlaneseq
        %v1884 = vshrl.u32 %v1883, 7
        %v1885 = vsub.s32 1, %v1884
        %v1886 = vrot.slane %v1750, %v1885
        %1888 = vbcast.lane.b32.xlu0 %v1886, 256
        %v1889 = vpop.permute.xlu0 %1888
        %v1890 = vlaneseq
        %v1891 = vshrl.u32 %v1890, 7
        %v1892 = vsub.s32 2, %v1891
        %v1893 = vrot.slane %v1750, %v1892
        %1895 = vbcast.lane.b32.xlu0 %v1893, 256
        %v1896 = vpop.permute.xlu0 %1895
        %v1897 = vlaneseq
        %v1898 = vshrl.u32 %v1897, 7
        %v1899 = vsub.s32 3, %v1898
        %v1900 = vrot.slane %v1750, %v1899
        %1902 = vbcast.lane.b32.xlu0 %v1900, 256
        %v1903 = vpop.permute.xlu0 %1902
        %v1904 = vlaneseq
        %v1905 = vshrl.u32 %v1904, 7
        %v1906 = vsub.s32 4, %v1905
        %v1907 = vrot.slane %v1750, %v1906
        %1909 = vbcast.lane.b32.xlu0 %v1907, 256
        %v1910 = vpop.permute.xlu0 %1909
        %v1911 = vlaneseq
        %v1912 = vshrl.u32 %v1911, 7
        %v1913 = vsub.s32 5, %v1912
        %v1914 = vrot.slane %v1750, %v1913
        %1916 = vbcast.lane.b32.xlu0 %v1914, 256
        %v1917 = vpop.permute.xlu0 %1916
        %v1918 = vlaneseq
        %v1919 = vshrl.u32 %v1918, 7
        %v1920 = vsub.s32 6, %v1919
        %v1921 = vrot.slane %v1750, %v1920
        %1923 = vbcast.lane.b32.xlu0 %v1921, 256
        %v1924 = vpop.permute.xlu0 %1923
        %v1925 = vlaneseq
        %v1926 = vshrl.u32 %v1925, 7
        %v1927 = vsub.s32 7, %v1926
        %v1928 = vrot.slane %v1750, %v1927
        %1930 = vbcast.lane.b32.xlu0 %v1928, 256
        %v1931 = vpop.permute.xlu0 %1930
        %v1932 = vlaneseq
        %v1933 = vshrl.u32 %v1932, 7
        %v1934 = vsub.s32 0, %v1933
        %v1935 = vrot.slane %v1751, %v1934
        %1937 = vbcast.lane.b32.xlu0 %v1935, 256
        %v1938 = vpop.permute.xlu0 %1937
        %v1939 = vlaneseq
        %v1940 = vshrl.u32 %v1939, 7
        %v1941 = vsub.s32 1, %v1940
        %v1942 = vrot.slane %v1751, %v1941
        %1944 = vbcast.lane.b32.xlu0 %v1942, 256
        %v1945 = vpop.permute.xlu0 %1944
        %v1946 = vlaneseq
        %v1947 = vshrl.u32 %v1946, 7
        %v1948 = vsub.s32 2, %v1947
        %v1949 = vrot.slane %v1751, %v1948
        %1951 = vbcast.lane.b32.xlu0 %v1949, 256
        %v1952 = vpop.permute.xlu0 %1951
        %v1953 = vlaneseq
        %v1954 = vshrl.u32 %v1953, 7
        %v1955 = vsub.s32 3, %v1954
        %v1956 = vrot.slane %v1751, %v1955
        %1958 = vbcast.lane.b32.xlu0 %v1956, 256
        %v1959 = vpop.permute.xlu0 %1958
        %v1960 = vlaneseq
        %v1961 = vshrl.u32 %v1960, 7
        %v1962 = vsub.s32 4, %v1961
        %v1963 = vrot.slane %v1751, %v1962
        %1965 = vbcast.lane.b32.xlu0 %v1963, 256
        %v1966 = vpop.permute.xlu0 %1965
        %v1967 = vlaneseq
        %v1968 = vshrl.u32 %v1967, 7
        %v1969 = vsub.s32 5, %v1968
        %v1970 = vrot.slane %v1751, %v1969
        %1972 = vbcast.lane.b32.xlu0 %v1970, 256
        %v1973 = vpop.permute.xlu0 %1972
        %v1974 = vlaneseq
        %v1975 = vshrl.u32 %v1974, 7
        %v1976 = vsub.s32 6, %v1975
        %v1977 = vrot.slane %v1751, %v1976
        %1979 = vbcast.lane.b32.xlu0 %v1977, 256
        %v1980 = vpop.permute.xlu0 %1979
        %v1981 = vlaneseq
        %v1982 = vshrl.u32 %v1981, 7
        %v1983 = vsub.s32 7, %v1982
        %v1984 = vrot.slane %v1751, %v1983
        %1986 = vbcast.lane.b32.xlu0 %v1984, 256
        %v1987 = vpop.permute.xlu0 %1986
        %v1988 = vsub.f32 %v1770, %v525
        %v1989 = vsub.f32 %v1777, %v529
        %v1990 = vsub.f32 %v1784, %v533
        %v1991 = vsub.f32 %v1791, %v537
        %v1992 = vsub.f32 %v1798, %v541
        %v1993 = vsub.f32 %v1805, %v545
        %v1994 = vsub.f32 %v1812, %v549
        %v1995 = vsub.f32 %v1819, %v553
        %v1996 = vsub.f32 %v1826, %v557
        %v1997 = vsub.f32 %v1833, %v561
        %v1998 = vsub.f32 %v1840, %v565
        %v1999 = vsub.f32 %v1847, %v569
        %v2000 = vsub.f32 %v1854, %v573
        %v2001 = vsub.f32 %v1861, %v577
        %v2002 = vsub.f32 %v1868, %v581
        %v2003 = vsub.f32 %v1875, %v585
        %v2004 = vsub.f32 %v1882, %v589
        %v2005 = vsub.f32 %v1889, %v593
        %v2006 = vsub.f32 %v1896, %v597
        %v2007 = vsub.f32 %v1903, %v601
        %v2008 = vsub.f32 %v1910, %v605
        %v2009 = vsub.f32 %v1917, %v609
        %v2010 = vsub.f32 %v1924, %v613
        %v2011 = vsub.f32 %v1931, %v617
        %v2012 = vsub.f32 %v1938, %v621
        %v2013 = vsub.f32 %v1945, %v625
        %v2014 = vsub.f32 %v1952, %v629
        %v2015 = vsub.f32 %v1959, %v633
        %v2016 = vsub.f32 %v1966, %v637
        %v2017 = vsub.f32 %v1973, %v641
        %v2018 = vsub.f32 %v1980, %v645
        %v2019 = vsub.f32 %v1987, %v649
        %v2020 = vmul.f32 %v1988, %v749
        %v2021 = vmul.f32 %v1989, %v753
        %v2022 = vmul.f32 %v1990, %v757
        %v2023 = vmul.f32 %v1991, %v761
        %v2024 = vmul.f32 %v1992, %v765
        %v2025 = vmul.f32 %v1993, %v769
        %v2026 = vmul.f32 %v1994, %v773
        %v2027 = vmul.f32 %v1995, %v777
        %v2028 = vmul.f32 %v1996, %v781
        %v2029 = vmul.f32 %v1997, %v785
        %v2030 = vmul.f32 %v1998, %v789
        %v2031 = vmul.f32 %v1999, %v793
        %v2032 = vmul.f32 %v2000, %v797
        %v2033 = vmul.f32 %v2001, %v801
        %v2034 = vmul.f32 %v2002, %v805
        %v2035 = vmul.f32 %v2003, %v809
        %v2036 = vmul.f32 %v2004, %v813
        %v2037 = vmul.f32 %v2005, %v817
        %v2038 = vmul.f32 %v2006, %v821
        %v2039 = vmul.f32 %v2007, %v825
        %v2040 = vmul.f32 %v2008, %v829
        %v2041 = vmul.f32 %v2009, %v833
        %v2042 = vmul.f32 %v2010, %v837
        %v2043 = vmul.f32 %v2011, %v841
        %v2044 = vmul.f32 %v2012, %v845
        %v2045 = vmul.f32 %v2013, %v849
        %v2046 = vmul.f32 %v2014, %v853
        %v2047 = vmul.f32 %v2015, %v857
        %v2048 = vmul.f32 %v2016, %v861
        %v2049 = vmul.f32 %v2017, %v865
        %v2050 = vmul.f32 %v2018, %v869
        %v2051 = vmul.f32 %v2019, %v873
        %v2052 = vxor.u32 %v2020, 2147483648
        %v2053 = vxor.u32 %v2021, 2147483648
        %v2054 = vxor.u32 %v2022, 2147483648
        %v2055 = vxor.u32 %v2023, 2147483648
        %v2056 = vxor.u32 %v2024, 2147483648
        %v2057 = vxor.u32 %v2025, 2147483648
        %v2058 = vxor.u32 %v2026, 2147483648
        %v2059 = vxor.u32 %v2027, 2147483648
        %v2060 = vxor.u32 %v2028, 2147483648
        %v2061 = vxor.u32 %v2029, 2147483648
        %v2062 = vxor.u32 %v2030, 2147483648
        %v2063 = vxor.u32 %v2031, 2147483648
        %v2064 = vxor.u32 %v2032, 2147483648
        %v2065 = vxor.u32 %v2033, 2147483648
        %v2066 = vxor.u32 %v2034, 2147483648
        %v2067 = vxor.u32 %v2035, 2147483648
        %v2068 = vxor.u32 %v2036, 2147483648
        %v2069 = vxor.u32 %v2037, 2147483648
        %v2070 = vxor.u32 %v2038, 2147483648
        %v2071 = vxor.u32 %v2039, 2147483648
        %v2072 = vxor.u32 %v2040, 2147483648
        %v2073 = vxor.u32 %v2041, 2147483648
        %v2074 = vxor.u32 %v2042, 2147483648
        %v2075 = vxor.u32 %v2043, 2147483648
        %v2076 = vxor.u32 %v2044, 2147483648
        %v2077 = vxor.u32 %v2045, 2147483648
        %v2078 = vxor.u32 %v2046, 2147483648
        %v2079 = vxor.u32 %v2047, 2147483648
        %v2080 = vxor.u32 %v2048, 2147483648
        %v2081 = vxor.u32 %v2049, 2147483648
        %v2082 = vxor.u32 %v2050, 2147483648
        %v2083 = vxor.u32 %v2051, 2147483648
        %v2084 = vmul.f32 %v2052, 1.442695
        %v2085 = vpow.pop %v2084
        %v2086 = vmul.f32 %v2053, 1.442695
        %v2087 = vpow.pop %v2086
        %v2088 = vmul.f32 %v2054, 1.442695
        %v2089 = vpow.pop %v2088
        %v2090 = vmul.f32 %v2055, 1.442695
        %v2091 = vpow.pop %v2090
        %v2092 = vmul.f32 %v2056, 1.442695
        %v2093 = vpow.pop %v2092
        %v2094 = vmul.f32 %v2057, 1.442695
        %v2095 = vpow.pop %v2094
        %v2096 = vmul.f32 %v2058, 1.442695
        %v2097 = vpow.pop %v2096
        %v2098 = vmul.f32 %v2059, 1.442695
        %v2099 = vpow.pop %v2098
        %v2100 = vmul.f32 %v2060, 1.442695
        %v2101 = vpow.pop %v2100
        %v2102 = vmul.f32 %v2061, 1.442695
        %v2103 = vpow.pop %v2102
        %v2104 = vmul.f32 %v2062, 1.442695
        %v2105 = vpow.pop %v2104
        %v2106 = vmul.f32 %v2063, 1.442695
        %v2107 = vpow.pop %v2106
        %v2108 = vmul.f32 %v2064, 1.442695
        %v2109 = vpow.pop %v2108
        %v2110 = vmul.f32 %v2065, 1.442695
        %v2111 = vpow.pop %v2110
        %v2112 = vmul.f32 %v2066, 1.442695
        %v2113 = vpow.pop %v2112
        %v2114 = vmul.f32 %v2067, 1.442695
        %v2115 = vpow.pop %v2114
        %v2116 = vmul.f32 %v2068, 1.442695
        %v2117 = vpow.pop %v2116
        %v2118 = vmul.f32 %v2069, 1.442695
        %v2119 = vpow.pop %v2118
        %v2120 = vmul.f32 %v2070, 1.442695
        %v2121 = vpow.pop %v2120
        %v2122 = vmul.f32 %v2071, 1.442695
        %v2123 = vpow.pop %v2122
        %v2124 = vmul.f32 %v2072, 1.442695
        %v2125 = vpow.pop %v2124
        %v2126 = vmul.f32 %v2073, 1.442695
        %v2127 = vpow.pop %v2126
        %v2128 = vmul.f32 %v2074, 1.442695
        %v2129 = vpow.pop %v2128
        %v2130 = vmul.f32 %v2075, 1.442695
        %v2131 = vpow.pop %v2130
        %v2132 = vmul.f32 %v2076, 1.442695
        %v2133 = vpow.pop %v2132
        %v2134 = vmul.f32 %v2077, 1.442695
        %v2135 = vpow.pop %v2134
        %v2136 = vmul.f32 %v2078, 1.442695
        %v2137 = vpow.pop %v2136
        %v2138 = vmul.f32 %v2079, 1.442695
        %v2139 = vpow.pop %v2138
        %v2140 = vmul.f32 %v2080, 1.442695
        %v2141 = vpow.pop %v2140
        %v2142 = vmul.f32 %v2081, 1.442695
        %v2143 = vpow.pop %v2142
        %v2144 = vmul.f32 %v2082, 1.442695
        %v2145 = vpow.pop %v2144
        %v2146 = vmul.f32 %v2083, 1.442695
        %v2147 = vpow.pop %v2146
        %v2148 = vadd.f32 %v2085, 1.0
        %v2149 = vadd.f32 %v2087, 1.0
        %v2150 = vadd.f32 %v2089, 1.0
        %v2151 = vadd.f32 %v2091, 1.0
        %v2152 = vadd.f32 %v2093, 1.0
        %v2153 = vadd.f32 %v2095, 1.0
        %v2154 = vadd.f32 %v2097, 1.0
        %v2155 = vadd.f32 %v2099, 1.0
        %v2156 = vadd.f32 %v2101, 1.0
        %v2157 = vadd.f32 %v2103, 1.0
        %v2158 = vadd.f32 %v2105, 1.0
        %v2159 = vadd.f32 %v2107, 1.0
        %v2160 = vadd.f32 %v2109, 1.0
        %v2161 = vadd.f32 %v2111, 1.0
        %v2162 = vadd.f32 %v2113, 1.0
        %v2163 = vadd.f32 %v2115, 1.0
        %v2164 = vadd.f32 %v2117, 1.0
        %v2165 = vadd.f32 %v2119, 1.0
        %v2166 = vadd.f32 %v2121, 1.0
        %v2167 = vadd.f32 %v2123, 1.0
        %v2168 = vadd.f32 %v2125, 1.0
        %v2169 = vadd.f32 %v2127, 1.0
        %v2170 = vadd.f32 %v2129, 1.0
        %v2171 = vadd.f32 %v2131, 1.0
        %v2172 = vadd.f32 %v2133, 1.0
        %v2173 = vadd.f32 %v2135, 1.0
        %v2174 = vadd.f32 %v2137, 1.0
        %v2175 = vadd.f32 %v2139, 1.0
        %v2176 = vadd.f32 %v2141, 1.0
        %v2177 = vadd.f32 %v2143, 1.0
        %v2178 = vadd.f32 %v2145, 1.0
        %v2179 = vadd.f32 %v2147, 1.0
        %v2180 = vrcp.pop %v2148
        %v2181 = vmul.f32 1.0, %v2180
        %v2182 = vrcp.pop %v2149
        %v2183 = vmul.f32 1.0, %v2182
        %v2184 = vrcp.pop %v2150
        %v2185 = vmul.f32 1.0, %v2184
        %v2186 = vrcp.pop %v2151
        %v2187 = vmul.f32 1.0, %v2186
        %v2188 = vrcp.pop %v2152
        %v2189 = vmul.f32 1.0, %v2188
        %v2190 = vrcp.pop %v2153
        %v2191 = vmul.f32 1.0, %v2190
        %v2192 = vrcp.pop %v2154
        %v2193 = vmul.f32 1.0, %v2192
        %v2194 = vrcp.pop %v2155
        %v2195 = vmul.f32 1.0, %v2194
        %v2196 = vrcp.pop %v2156
        %v2197 = vmul.f32 1.0, %v2196
        %v2198 = vrcp.pop %v2157
        %v2199 = vmul.f32 1.0, %v2198
        %v2200 = vrcp.pop %v2158
        %v2201 = vmul.f32 1.0, %v2200
        %v2202 = vrcp.pop %v2159
        %v2203 = vmul.f32 1.0, %v2202
        %v2204 = vrcp.pop %v2160
        %v2205 = vmul.f32 1.0, %v2204
        %v2206 = vrcp.pop %v2161
        %v2207 = vmul.f32 1.0, %v2206
        %v2208 = vrcp.pop %v2162
        %v2209 = vmul.f32 1.0, %v2208
        %v2210 = vrcp.pop %v2163
        %v2211 = vmul.f32 1.0, %v2210
        %v2212 = vrcp.pop %v2164
        %v2213 = vmul.f32 1.0, %v2212
        %v2214 = vrcp.pop %v2165
        %v2215 = vmul.f32 1.0, %v2214
        %v2216 = vrcp.pop %v2166
        %v2217 = vmul.f32 1.0, %v2216
        %v2218 = vrcp.pop %v2167
        %v2219 = vmul.f32 1.0, %v2218
        %v2220 = vrcp.pop %v2168
        %v2221 = vmul.f32 1.0, %v2220
        %v2222 = vrcp.pop %v2169
        %v2223 = vmul.f32 1.0, %v2222
        %v2224 = vrcp.pop %v2170
        %v2225 = vmul.f32 1.0, %v2224
        %v2226 = vrcp.pop %v2171
        %v2227 = vmul.f32 1.0, %v2226
        %v2228 = vrcp.pop %v2172
        %v2229 = vmul.f32 1.0, %v2228
        %v2230 = vrcp.pop %v2173
        %v2231 = vmul.f32 1.0, %v2230
        %v2232 = vrcp.pop %v2174
        %v2233 = vmul.f32 1.0, %v2232
        %v2234 = vrcp.pop %v2175
        %v2235 = vmul.f32 1.0, %v2234
        %v2236 = vrcp.pop %v2176
        %v2237 = vmul.f32 1.0, %v2236
        %v2238 = vrcp.pop %v2177
        %v2239 = vmul.f32 1.0, %v2238
        %v2240 = vrcp.pop %v2178
        %v2241 = vmul.f32 1.0, %v2240
        %v2242 = vrcp.pop %v2179
        %v2243 = vmul.f32 1.0, %v2242
        %v2244 = vmul.f32 %v1165, %v2181
        %v2245 = vmul.f32 %v1169, %v2183
        %v2246 = vmul.f32 %v1173, %v2185
        %v2247 = vmul.f32 %v1177, %v2187
        %v2248 = vmul.f32 %v1181, %v2189
        %v2249 = vmul.f32 %v1185, %v2191
        %v2250 = vmul.f32 %v1189, %v2193
        %v2251 = vmul.f32 %v1193, %v2195
        %v2252 = vmul.f32 %v1197, %v2197
        %v2253 = vmul.f32 %v1201, %v2199
        %v2254 = vmul.f32 %v1205, %v2201
        %v2255 = vmul.f32 %v1209, %v2203
        %v2256 = vmul.f32 %v1213, %v2205
        %v2257 = vmul.f32 %v1217, %v2207
        %v2258 = vmul.f32 %v1221, %v2209
        %v2259 = vmul.f32 %v1225, %v2211
        %v2260 = vmul.f32 %v1229, %v2213
        %v2261 = vmul.f32 %v1233, %v2215
        %v2262 = vmul.f32 %v1237, %v2217
        %v2263 = vmul.f32 %v1241, %v2219
        %v2264 = vmul.f32 %v1245, %v2221
        %v2265 = vmul.f32 %v1249, %v2223
        %v2266 = vmul.f32 %v1253, %v2225
        %v2267 = vmul.f32 %v1257, %v2227
        %v2268 = vmul.f32 %v1261, %v2229
        %v2269 = vmul.f32 %v1265, %v2231
        %v2270 = vmul.f32 %v1269, %v2233
        %v2271 = vmul.f32 %v1273, %v2235
        %v2272 = vmul.f32 %v1277, %v2237
        %v2273 = vmul.f32 %v1281, %v2239
        %v2274 = vmul.f32 %v1285, %v2241
        %v2275 = vmul.f32 %v1289, %v2243
        %v2276 = vsel %vm1354, %v2244, 0.0
        %v2277 = vsel %vm1354, %v2245, 0.0
        %v2278 = vadd.f32 %v2276, %v2277
        %v2279 = vsel %vm1354, %v2246, 0.0
        %v2280 = vadd.f32 %v2278, %v2279
        %v2281 = vsel %vm1354, %v2247, 0.0
        %v2282 = vadd.f32 %v2280, %v2281
        %v2283 = vsel %vm1354, %v2248, 0.0
        %v2284 = vadd.f32 %v2282, %v2283
        %v2285 = vsel %vm1354, %v2249, 0.0
        %v2286 = vadd.f32 %v2284, %v2285
        %v2287 = vsel %vm1354, %v2250, 0.0
        %v2288 = vadd.f32 %v2286, %v2287
        %v2289 = vsel %vm1354, %v2251, 0.0
        %v2290 = vadd.f32 %v2288, %v2289
        %v2291 = vsel %vm1354, %v2252, 0.0
        %v2292 = vadd.f32 %v2290, %v2291
        %v2293 = vsel %vm1354, %v2253, 0.0
        %v2294 = vadd.f32 %v2292, %v2293
        %v2295 = vsel %vm1354, %v2254, 0.0
        %v2296 = vadd.f32 %v2294, %v2295
        %v2297 = vsel %vm1354, %v2255, 0.0
        %v2298 = vadd.f32 %v2296, %v2297
        %v2299 = vsel %vm1354, %v2256, 0.0
        %v2300 = vadd.f32 %v2298, %v2299
        %v2301 = vsel %vm1354, %v2257, 0.0
        %v2302 = vadd.f32 %v2300, %v2301
        %v2303 = vsel %vm1354, %v2258, 0.0
        %v2304 = vadd.f32 %v2302, %v2303
        %v2305 = vsel %vm1354, %v2259, 0.0
        %v2306 = vadd.f32 %v2304, %v2305
        %v2307 = vsel %vm1354, %v2260, 0.0
        %v2308 = vadd.f32 %v2306, %v2307
        %v2309 = vsel %vm1354, %v2261, 0.0
        %v2310 = vadd.f32 %v2308, %v2309
        %v2311 = vsel %vm1354, %v2262, 0.0
        %v2312 = vadd.f32 %v2310, %v2311
        %v2313 = vsel %vm1354, %v2263, 0.0
        %v2314 = vadd.f32 %v2312, %v2313
        %v2315 = vsel %vm1354, %v2264, 0.0
        %v2316 = vadd.f32 %v2314, %v2315
        %v2317 = vsel %vm1354, %v2265, 0.0
        %v2318 = vadd.f32 %v2316, %v2317
        %v2319 = vsel %vm1354, %v2266, 0.0
        %v2320 = vadd.f32 %v2318, %v2319
        %v2321 = vsel %vm1354, %v2267, 0.0
        %v2322 = vadd.f32 %v2320, %v2321
        %v2323 = vsel %vm1354, %v2268, 0.0
        %v2324 = vadd.f32 %v2322, %v2323
        %v2325 = vsel %vm1354, %v2269, 0.0
        %v2326 = vadd.f32 %v2324, %v2325
        %v2327 = vsel %vm1354, %v2270, 0.0
        %v2328 = vadd.f32 %v2326, %v2327
        %v2329 = vsel %vm1354, %v2271, 0.0
        %v2330 = vadd.f32 %v2328, %v2329
        %v2331 = vsel %vm1354, %v2272, 0.0
        %v2332 = vadd.f32 %v2330, %v2331
        %v2333 = vsel %vm1354, %v2273, 0.0
        %v2334 = vadd.f32 %v2332, %v2333
        %v2335 = vsel %vm1354, %v2274, 0.0
        %v2336 = vadd.f32 %v2334, %v2335
        %v2337 = vsel %vm1354, %v2275, 0.0
        %v2338 = vadd.f32 %v2336, %v2337
        %v2339 = vadd.f32 %v2338, %v205
        %v2340 = vmul.f32 %v1454, %v2181
        %v2341 = vmul.f32 %v1458, %v2183
        %v2342 = vmul.f32 %v1462, %v2185
        %v2343 = vmul.f32 %v1466, %v2187
        %v2344 = vmul.f32 %v1470, %v2189
        %v2345 = vmul.f32 %v1474, %v2191
        %v2346 = vmul.f32 %v1478, %v2193
        %v2347 = vmul.f32 %v1482, %v2195
        %v2348 = vmul.f32 %v1486, %v2197
        %v2349 = vmul.f32 %v1490, %v2199
        %v2350 = vmul.f32 %v1494, %v2201
        %v2351 = vmul.f32 %v1498, %v2203
        %v2352 = vmul.f32 %v1502, %v2205
        %v2353 = vmul.f32 %v1506, %v2207
        %v2354 = vmul.f32 %v1510, %v2209
        %v2355 = vmul.f32 %v1514, %v2211
        %v2356 = vmul.f32 %v1518, %v2213
        %v2357 = vmul.f32 %v1522, %v2215
        %v2358 = vmul.f32 %v1526, %v2217
        %v2359 = vmul.f32 %v1530, %v2219
        %v2360 = vmul.f32 %v1534, %v2221
        %v2361 = vmul.f32 %v1538, %v2223
        %v2362 = vmul.f32 %v1542, %v2225
        %v2363 = vmul.f32 %v1546, %v2227
        %v2364 = vmul.f32 %v1550, %v2229
        %v2365 = vmul.f32 %v1554, %v2231
        %v2366 = vmul.f32 %v1558, %v2233
        %v2367 = vmul.f32 %v1562, %v2235
        %v2368 = vmul.f32 %v1566, %v2237
        %v2369 = vmul.f32 %v1570, %v2239
        %v2370 = vmul.f32 %v1574, %v2241
        %v2371 = vmul.f32 %v1578, %v2243
        %v2372 = vsel %vm1354, %v2340, 0.0
        %v2373 = vsel %vm1354, %v2341, 0.0
        %v2374 = vadd.f32 %v2372, %v2373
        %v2375 = vsel %vm1354, %v2342, 0.0
        %v2376 = vadd.f32 %v2374, %v2375
        %v2377 = vsel %vm1354, %v2343, 0.0
        %v2378 = vadd.f32 %v2376, %v2377
        %v2379 = vsel %vm1354, %v2344, 0.0
        %v2380 = vadd.f32 %v2378, %v2379
        %v2381 = vsel %vm1354, %v2345, 0.0
        %v2382 = vadd.f32 %v2380, %v2381
        %v2383 = vsel %vm1354, %v2346, 0.0
        %v2384 = vadd.f32 %v2382, %v2383
        %v2385 = vsel %vm1354, %v2347, 0.0
        %v2386 = vadd.f32 %v2384, %v2385
        %v2387 = vsel %vm1354, %v2348, 0.0
        %v2388 = vadd.f32 %v2386, %v2387
        %v2389 = vsel %vm1354, %v2349, 0.0
        %v2390 = vadd.f32 %v2388, %v2389
        %v2391 = vsel %vm1354, %v2350, 0.0
        %v2392 = vadd.f32 %v2390, %v2391
        %v2393 = vsel %vm1354, %v2351, 0.0
        %v2394 = vadd.f32 %v2392, %v2393
        %v2395 = vsel %vm1354, %v2352, 0.0
        %v2396 = vadd.f32 %v2394, %v2395
        %v2397 = vsel %vm1354, %v2353, 0.0
        %v2398 = vadd.f32 %v2396, %v2397
        %v2399 = vsel %vm1354, %v2354, 0.0
        %v2400 = vadd.f32 %v2398, %v2399
        %v2401 = vsel %vm1354, %v2355, 0.0
        %v2402 = vadd.f32 %v2400, %v2401
        %v2403 = vsel %vm1354, %v2356, 0.0
        %v2404 = vadd.f32 %v2402, %v2403
        %v2405 = vsel %vm1354, %v2357, 0.0
        %v2406 = vadd.f32 %v2404, %v2405
        %v2407 = vsel %vm1354, %v2358, 0.0
        %v2408 = vadd.f32 %v2406, %v2407
        %v2409 = vsel %vm1354, %v2359, 0.0
        %v2410 = vadd.f32 %v2408, %v2409
        %v2411 = vsel %vm1354, %v2360, 0.0
        %v2412 = vadd.f32 %v2410, %v2411
        %v2413 = vsel %vm1354, %v2361, 0.0
        %v2414 = vadd.f32 %v2412, %v2413
        %v2415 = vsel %vm1354, %v2362, 0.0
        %v2416 = vadd.f32 %v2414, %v2415
        %v2417 = vsel %vm1354, %v2363, 0.0
        %v2418 = vadd.f32 %v2416, %v2417
        %v2419 = vsel %vm1354, %v2364, 0.0
        %v2420 = vadd.f32 %v2418, %v2419
        %v2421 = vsel %vm1354, %v2365, 0.0
        %v2422 = vadd.f32 %v2420, %v2421
        %v2423 = vsel %vm1354, %v2366, 0.0
        %v2424 = vadd.f32 %v2422, %v2423
        %v2425 = vsel %vm1354, %v2367, 0.0
        %v2426 = vadd.f32 %v2424, %v2425
        %v2427 = vsel %vm1354, %v2368, 0.0
        %v2428 = vadd.f32 %v2426, %v2427
        %v2429 = vsel %vm1354, %v2369, 0.0
        %v2430 = vadd.f32 %v2428, %v2429
        %v2431 = vsel %vm1354, %v2370, 0.0
        %v2432 = vadd.f32 %v2430, %v2431
        %v2433 = vsel %vm1354, %v2371, 0.0
        %v2434 = vadd.f32 %v2432, %v2433
        %v2435 = vadd.f32 %v2434, %v207
        %v2436 = vmul.f32 %v1711, %v1731
        %v2437 = vadd.f32 %v2436, %v1718
        %v2438 = vadd.f32 %v2437, %v2339
        %v2439 = vadd.f32 %v1726, %v2435
        %v2440 = vadd.f32 %v2439, 1e-08
        %v2441 = vrcp.pop %v2440
        %v2442 = vmul.f32 %v2438, %v2441
        %2443 = vxpose.xlu0.b32.start [1/16] %v2442, 128
        %2444 = vxpose.xlu0.b32.cont [2/16] 0.0, 128
        %2445 = vxpose.xlu0.b32.cont [3/16] 0.0, 128
        %2446 = vxpose.xlu0.b32.cont [4/16] 0.0, 128
        %2447 = vxpose.xlu0.b32.cont [5/16] 0.0, 128
        %2448 = vxpose.xlu0.b32.cont [6/16] 0.0, 128
        %2449 = vxpose.xlu0.b32.cont [7/16] 0.0, 128
        %2450 = vxpose.xlu0.b32.cont [8/16] 0.0, 128
        %2451 = vxpose.xlu0.b32.cont [9/16] 0.0, 128
        %2452 = vxpose.xlu0.b32.cont [10/16] 0.0, 128
        %2453 = vxpose.xlu0.b32.cont [11/16] 0.0, 128
        %2454 = vxpose.xlu0.b32.cont [12/16] 0.0, 128
        %2455 = vxpose.xlu0.b32.cont [13/16] 0.0, 128
        %2456 = vxpose.xlu0.b32.cont [14/16] 0.0, 128
        %2457 = vxpose.xlu0.b32.cont [15/16] 0.0, 128
        %2458 = vxpose.xlu0.b32.end [16/16] 0.0, 128
        %v2459 = vpop.trf.xlu0
        %v2460 = vpop.trf.xlu0
        %v2461 = vpop.trf.xlu0
        %v2462 = vpop.trf.xlu0
        %v2463 = vpop.trf.xlu0
        %v2464 = vpop.trf.xlu0
        %v2465 = vpop.trf.xlu0
        %v2466 = vpop.trf.xlu0
        %v2467 = vpop.trf.xlu0
        %v2468 = vpop.trf.xlu0
        %v2469 = vpop.trf.xlu0
        %v2470 = vpop.trf.xlu0
        %v2471 = vpop.trf.xlu0
        %v2472 = vpop.trf.xlu0
        %v2473 = vpop.trf.xlu0
        %v2474 = vpop.trf.xlu0
        %v2475 = vlaneseq
        %v2476 = vshrl.u32 %v2475, 7
        %v2477 = vsub.s32 0, %v2476
        %v2478 = vrot.slane %v2459, %v2477
        %2480 = vbcast.lane.b32.xlu0 %v2478, 256
        %v2481 = vpop.permute.xlu0 %2480
        %v2482 = vlaneseq
        %v2483 = vshrl.u32 %v2482, 7
        %v2484 = vsub.s32 1, %v2483
        %v2485 = vrot.slane %v2459, %v2484
        %2487 = vbcast.lane.b32.xlu0 %v2485, 256
        %v2488 = vpop.permute.xlu0 %2487
        %v2489 = vlaneseq
        %v2490 = vshrl.u32 %v2489, 7
        %v2491 = vsub.s32 2, %v2490
        %v2492 = vrot.slane %v2459, %v2491
        %2494 = vbcast.lane.b32.xlu0 %v2492, 256
        %v2495 = vpop.permute.xlu0 %2494
        %v2496 = vlaneseq
        %v2497 = vshrl.u32 %v2496, 7
        %v2498 = vsub.s32 3, %v2497
        %v2499 = vrot.slane %v2459, %v2498
        %2501 = vbcast.lane.b32.xlu0 %v2499, 256
        %v2502 = vpop.permute.xlu0 %2501
        %v2503 = vlaneseq
        %v2504 = vshrl.u32 %v2503, 7
        %v2505 = vsub.s32 4, %v2504
        %v2506 = vrot.slane %v2459, %v2505
        %2508 = vbcast.lane.b32.xlu0 %v2506, 256
        %v2509 = vpop.permute.xlu0 %2508
        %v2510 = vlaneseq
        %v2511 = vshrl.u32 %v2510, 7
        %v2512 = vsub.s32 5, %v2511
        %v2513 = vrot.slane %v2459, %v2512
        %2515 = vbcast.lane.b32.xlu0 %v2513, 256
        %v2516 = vpop.permute.xlu0 %2515
        %v2517 = vlaneseq
        %v2518 = vshrl.u32 %v2517, 7
        %v2519 = vsub.s32 6, %v2518
        %v2520 = vrot.slane %v2459, %v2519
        %2522 = vbcast.lane.b32.xlu0 %v2520, 256
        %v2523 = vpop.permute.xlu0 %2522
        %v2524 = vlaneseq
        %v2525 = vshrl.u32 %v2524, 7
        %v2526 = vsub.s32 7, %v2525
        %v2527 = vrot.slane %v2459, %v2526
        %2529 = vbcast.lane.b32.xlu0 %v2527, 256
        %v2530 = vpop.permute.xlu0 %2529
        %v2531 = vlaneseq
        %v2532 = vshrl.u32 %v2531, 7
        %v2533 = vsub.s32 0, %v2532
        %v2534 = vrot.slane %v2460, %v2533
        %2536 = vbcast.lane.b32.xlu0 %v2534, 256
        %v2537 = vpop.permute.xlu0 %2536
        %v2538 = vlaneseq
        %v2539 = vshrl.u32 %v2538, 7
        %v2540 = vsub.s32 1, %v2539
        %v2541 = vrot.slane %v2460, %v2540
        %2543 = vbcast.lane.b32.xlu0 %v2541, 256
        %v2544 = vpop.permute.xlu0 %2543
        %v2545 = vlaneseq
        %v2546 = vshrl.u32 %v2545, 7
        %v2547 = vsub.s32 2, %v2546
        %v2548 = vrot.slane %v2460, %v2547
        %2550 = vbcast.lane.b32.xlu0 %v2548, 256
        %v2551 = vpop.permute.xlu0 %2550
        %v2552 = vlaneseq
        %v2553 = vshrl.u32 %v2552, 7
        %v2554 = vsub.s32 3, %v2553
        %v2555 = vrot.slane %v2460, %v2554
        %2557 = vbcast.lane.b32.xlu0 %v2555, 256
        %v2558 = vpop.permute.xlu0 %2557
        %v2559 = vlaneseq
        %v2560 = vshrl.u32 %v2559, 7
        %v2561 = vsub.s32 4, %v2560
        %v2562 = vrot.slane %v2460, %v2561
        %2564 = vbcast.lane.b32.xlu0 %v2562, 256
        %v2565 = vpop.permute.xlu0 %2564
        %v2566 = vlaneseq
        %v2567 = vshrl.u32 %v2566, 7
        %v2568 = vsub.s32 5, %v2567
        %v2569 = vrot.slane %v2460, %v2568
        %2571 = vbcast.lane.b32.xlu0 %v2569, 256
        %v2572 = vpop.permute.xlu0 %2571
        %v2573 = vlaneseq
        %v2574 = vshrl.u32 %v2573, 7
        %v2575 = vsub.s32 6, %v2574
        %v2576 = vrot.slane %v2460, %v2575
        %2578 = vbcast.lane.b32.xlu0 %v2576, 256
        %v2579 = vpop.permute.xlu0 %2578
        %v2580 = vlaneseq
        %v2581 = vshrl.u32 %v2580, 7
        %v2582 = vsub.s32 7, %v2581
        %v2583 = vrot.slane %v2460, %v2582
        %2585 = vbcast.lane.b32.xlu0 %v2583, 256
        %v2586 = vpop.permute.xlu0 %2585
        %v2587 = vlaneseq
        %v2588 = vshrl.u32 %v2587, 7
        %v2589 = vsub.s32 0, %v2588
        %v2590 = vrot.slane %v2461, %v2589
        %2592 = vbcast.lane.b32.xlu0 %v2590, 256
        %v2593 = vpop.permute.xlu0 %2592
        %v2594 = vlaneseq
        %v2595 = vshrl.u32 %v2594, 7
        %v2596 = vsub.s32 1, %v2595
        %v2597 = vrot.slane %v2461, %v2596
        %2599 = vbcast.lane.b32.xlu0 %v2597, 256
        %v2600 = vpop.permute.xlu0 %2599
        %v2601 = vlaneseq
        %v2602 = vshrl.u32 %v2601, 7
        %v2603 = vsub.s32 2, %v2602
        %v2604 = vrot.slane %v2461, %v2603
        %2606 = vbcast.lane.b32.xlu0 %v2604, 256
        %v2607 = vpop.permute.xlu0 %2606
        %v2608 = vlaneseq
        %v2609 = vshrl.u32 %v2608, 7
        %v2610 = vsub.s32 3, %v2609
        %v2611 = vrot.slane %v2461, %v2610
        %2613 = vbcast.lane.b32.xlu0 %v2611, 256
        %v2614 = vpop.permute.xlu0 %2613
        %v2615 = vlaneseq
        %v2616 = vshrl.u32 %v2615, 7
        %v2617 = vsub.s32 4, %v2616
        %v2618 = vrot.slane %v2461, %v2617
        %2620 = vbcast.lane.b32.xlu0 %v2618, 256
        %v2621 = vpop.permute.xlu0 %2620
        %v2622 = vlaneseq
        %v2623 = vshrl.u32 %v2622, 7
        %v2624 = vsub.s32 5, %v2623
        %v2625 = vrot.slane %v2461, %v2624
        %2627 = vbcast.lane.b32.xlu0 %v2625, 256
        %v2628 = vpop.permute.xlu0 %2627
        %v2629 = vlaneseq
        %v2630 = vshrl.u32 %v2629, 7
        %v2631 = vsub.s32 6, %v2630
        %v2632 = vrot.slane %v2461, %v2631
        %2634 = vbcast.lane.b32.xlu0 %v2632, 256
        %v2635 = vpop.permute.xlu0 %2634
        %v2636 = vlaneseq
        %v2637 = vshrl.u32 %v2636, 7
        %v2638 = vsub.s32 7, %v2637
        %v2639 = vrot.slane %v2461, %v2638
        %2641 = vbcast.lane.b32.xlu0 %v2639, 256
        %v2642 = vpop.permute.xlu0 %2641
        %v2643 = vlaneseq
        %v2644 = vshrl.u32 %v2643, 7
        %v2645 = vsub.s32 0, %v2644
        %v2646 = vrot.slane %v2462, %v2645
        %2648 = vbcast.lane.b32.xlu0 %v2646, 256
        %v2649 = vpop.permute.xlu0 %2648
        %v2650 = vlaneseq
        %v2651 = vshrl.u32 %v2650, 7
        %v2652 = vsub.s32 1, %v2651
        %v2653 = vrot.slane %v2462, %v2652
        %2655 = vbcast.lane.b32.xlu0 %v2653, 256
        %v2656 = vpop.permute.xlu0 %2655
        %v2657 = vlaneseq
        %v2658 = vshrl.u32 %v2657, 7
        %v2659 = vsub.s32 2, %v2658
        %v2660 = vrot.slane %v2462, %v2659
        %2662 = vbcast.lane.b32.xlu0 %v2660, 256
        %v2663 = vpop.permute.xlu0 %2662
        %v2664 = vlaneseq
        %v2665 = vshrl.u32 %v2664, 7
        %v2666 = vsub.s32 3, %v2665
        %v2667 = vrot.slane %v2462, %v2666
        %2669 = vbcast.lane.b32.xlu0 %v2667, 256
        %v2670 = vpop.permute.xlu0 %2669
        %v2671 = vlaneseq
        %v2672 = vshrl.u32 %v2671, 7
        %v2673 = vsub.s32 4, %v2672
        %v2674 = vrot.slane %v2462, %v2673
        %2676 = vbcast.lane.b32.xlu0 %v2674, 256
        %v2677 = vpop.permute.xlu0 %2676
        %v2678 = vlaneseq
        %v2679 = vshrl.u32 %v2678, 7
        %v2680 = vsub.s32 5, %v2679
        %v2681 = vrot.slane %v2462, %v2680
        %2683 = vbcast.lane.b32.xlu0 %v2681, 256
        %v2684 = vpop.permute.xlu0 %2683
        %v2685 = vlaneseq
        %v2686 = vshrl.u32 %v2685, 7
        %v2687 = vsub.s32 6, %v2686
        %v2688 = vrot.slane %v2462, %v2687
        %2690 = vbcast.lane.b32.xlu0 %v2688, 256
        %v2691 = vpop.permute.xlu0 %2690
        %v2692 = vlaneseq
        %v2693 = vshrl.u32 %v2692, 7
        %v2694 = vsub.s32 7, %v2693
        %v2695 = vrot.slane %v2462, %v2694
        %2697 = vbcast.lane.b32.xlu0 %v2695, 256
        %v2698 = vpop.permute.xlu0 %2697
        %v2699 = vsub.f32 %v2481, %v525
        %v2700 = vsub.f32 %v2488, %v529
        %v2701 = vsub.f32 %v2495, %v533
        %v2702 = vsub.f32 %v2502, %v537
        %v2703 = vsub.f32 %v2509, %v541
        %v2704 = vsub.f32 %v2516, %v545
        %v2705 = vsub.f32 %v2523, %v549
        %v2706 = vsub.f32 %v2530, %v553
        %v2707 = vsub.f32 %v2537, %v557
        %v2708 = vsub.f32 %v2544, %v561
        %v2709 = vsub.f32 %v2551, %v565
        %v2710 = vsub.f32 %v2558, %v569
        %v2711 = vsub.f32 %v2565, %v573
        %v2712 = vsub.f32 %v2572, %v577
        %v2713 = vsub.f32 %v2579, %v581
        %v2714 = vsub.f32 %v2586, %v585
        %v2715 = vsub.f32 %v2593, %v589
        %v2716 = vsub.f32 %v2600, %v593
        %v2717 = vsub.f32 %v2607, %v597
        %v2718 = vsub.f32 %v2614, %v601
        %v2719 = vsub.f32 %v2621, %v605
        %v2720 = vsub.f32 %v2628, %v609
        %v2721 = vsub.f32 %v2635, %v613
        %v2722 = vsub.f32 %v2642, %v617
        %v2723 = vsub.f32 %v2649, %v621
        %v2724 = vsub.f32 %v2656, %v625
        %v2725 = vsub.f32 %v2663, %v629
        %v2726 = vsub.f32 %v2670, %v633
        %v2727 = vsub.f32 %v2677, %v637
        %v2728 = vsub.f32 %v2684, %v641
        %v2729 = vsub.f32 %v2691, %v645
        %v2730 = vsub.f32 %v2698, %v649
        %v2731 = vmul.f32 %v2699, %v749
        %v2732 = vmul.f32 %v2700, %v753
        %v2733 = vmul.f32 %v2701, %v757
        %v2734 = vmul.f32 %v2702, %v761
        %v2735 = vmul.f32 %v2703, %v765
        %v2736 = vmul.f32 %v2704, %v769
        %v2737 = vmul.f32 %v2705, %v773
        %v2738 = vmul.f32 %v2706, %v777
        %v2739 = vmul.f32 %v2707, %v781
        %v2740 = vmul.f32 %v2708, %v785
        %v2741 = vmul.f32 %v2709, %v789
        %v2742 = vmul.f32 %v2710, %v793
        %v2743 = vmul.f32 %v2711, %v797
        %v2744 = vmul.f32 %v2712, %v801
        %v2745 = vmul.f32 %v2713, %v805
        %v2746 = vmul.f32 %v2714, %v809
        %v2747 = vmul.f32 %v2715, %v813
        %v2748 = vmul.f32 %v2716, %v817
        %v2749 = vmul.f32 %v2717, %v821
        %v2750 = vmul.f32 %v2718, %v825
        %v2751 = vmul.f32 %v2719, %v829
        %v2752 = vmul.f32 %v2720, %v833
        %v2753 = vmul.f32 %v2721, %v837
        %v2754 = vmul.f32 %v2722, %v841
        %v2755 = vmul.f32 %v2723, %v845
        %v2756 = vmul.f32 %v2724, %v849
        %v2757 = vmul.f32 %v2725, %v853
        %v2758 = vmul.f32 %v2726, %v857
        %v2759 = vmul.f32 %v2727, %v861
        %v2760 = vmul.f32 %v2728, %v865
        %v2761 = vmul.f32 %v2729, %v869
        %v2762 = vmul.f32 %v2730, %v873
        %v2763 = vxor.u32 %v2731, 2147483648
        %v2764 = vxor.u32 %v2732, 2147483648
        %v2765 = vxor.u32 %v2733, 2147483648
        %v2766 = vxor.u32 %v2734, 2147483648
        %v2767 = vxor.u32 %v2735, 2147483648
        %v2768 = vxor.u32 %v2736, 2147483648
        %v2769 = vxor.u32 %v2737, 2147483648
        %v2770 = vxor.u32 %v2738, 2147483648
        %v2771 = vxor.u32 %v2739, 2147483648
        %v2772 = vxor.u32 %v2740, 2147483648
        %v2773 = vxor.u32 %v2741, 2147483648
        %v2774 = vxor.u32 %v2742, 2147483648
        %v2775 = vxor.u32 %v2743, 2147483648
        %v2776 = vxor.u32 %v2744, 2147483648
        %v2777 = vxor.u32 %v2745, 2147483648
        %v2778 = vxor.u32 %v2746, 2147483648
        %v2779 = vxor.u32 %v2747, 2147483648
        %v2780 = vxor.u32 %v2748, 2147483648
        %v2781 = vxor.u32 %v2749, 2147483648
        %v2782 = vxor.u32 %v2750, 2147483648
        %v2783 = vxor.u32 %v2751, 2147483648
        %v2784 = vxor.u32 %v2752, 2147483648
        %v2785 = vxor.u32 %v2753, 2147483648
        %v2786 = vxor.u32 %v2754, 2147483648
        %v2787 = vxor.u32 %v2755, 2147483648
        %v2788 = vxor.u32 %v2756, 2147483648
        %v2789 = vxor.u32 %v2757, 2147483648
        %v2790 = vxor.u32 %v2758, 2147483648
        %v2791 = vxor.u32 %v2759, 2147483648
        %v2792 = vxor.u32 %v2760, 2147483648
        %v2793 = vxor.u32 %v2761, 2147483648
        %v2794 = vxor.u32 %v2762, 2147483648
        %v2795 = vmul.f32 %v2763, 1.442695
        %v2796 = vpow.pop %v2795
        %v2797 = vmul.f32 %v2764, 1.442695
        %v2798 = vpow.pop %v2797
        %v2799 = vmul.f32 %v2765, 1.442695
        %v2800 = vpow.pop %v2799
        %v2801 = vmul.f32 %v2766, 1.442695
        %v2802 = vpow.pop %v2801
        %v2803 = vmul.f32 %v2767, 1.442695
        %v2804 = vpow.pop %v2803
        %v2805 = vmul.f32 %v2768, 1.442695
        %v2806 = vpow.pop %v2805
        %v2807 = vmul.f32 %v2769, 1.442695
        %v2808 = vpow.pop %v2807
        %v2809 = vmul.f32 %v2770, 1.442695
        %v2810 = vpow.pop %v2809
        %v2811 = vmul.f32 %v2771, 1.442695
        %v2812 = vpow.pop %v2811
        %v2813 = vmul.f32 %v2772, 1.442695
        %v2814 = vpow.pop %v2813
        %v2815 = vmul.f32 %v2773, 1.442695
        %v2816 = vpow.pop %v2815
        %v2817 = vmul.f32 %v2774, 1.442695
        %v2818 = vpow.pop %v2817
        %v2819 = vmul.f32 %v2775, 1.442695
        %v2820 = vpow.pop %v2819
        %v2821 = vmul.f32 %v2776, 1.442695
        %v2822 = vpow.pop %v2821
        %v2823 = vmul.f32 %v2777, 1.442695
        %v2824 = vpow.pop %v2823
        %v2825 = vmul.f32 %v2778, 1.442695
        %v2826 = vpow.pop %v2825
        %v2827 = vmul.f32 %v2779, 1.442695
        %v2828 = vpow.pop %v2827
        %v2829 = vmul.f32 %v2780, 1.442695
        %v2830 = vpow.pop %v2829
        %v2831 = vmul.f32 %v2781, 1.442695
        %v2832 = vpow.pop %v2831
        %v2833 = vmul.f32 %v2782, 1.442695
        %v2834 = vpow.pop %v2833
        %v2835 = vmul.f32 %v2783, 1.442695
        %v2836 = vpow.pop %v2835
        %v2837 = vmul.f32 %v2784, 1.442695
        %v2838 = vpow.pop %v2837
        %v2839 = vmul.f32 %v2785, 1.442695
        %v2840 = vpow.pop %v2839
        %v2841 = vmul.f32 %v2786, 1.442695
        %v2842 = vpow.pop %v2841
        %v2843 = vmul.f32 %v2787, 1.442695
        %v2844 = vpow.pop %v2843
        %v2845 = vmul.f32 %v2788, 1.442695
        %v2846 = vpow.pop %v2845
        %v2847 = vmul.f32 %v2789, 1.442695
        %v2848 = vpow.pop %v2847
        %v2849 = vmul.f32 %v2790, 1.442695
        %v2850 = vpow.pop %v2849
        %v2851 = vmul.f32 %v2791, 1.442695
        %v2852 = vpow.pop %v2851
        %v2853 = vmul.f32 %v2792, 1.442695
        %v2854 = vpow.pop %v2853
        %v2855 = vmul.f32 %v2793, 1.442695
        %v2856 = vpow.pop %v2855
        %v2857 = vmul.f32 %v2794, 1.442695
        %v2858 = vpow.pop %v2857
        %v2859 = vadd.f32 %v2796, 1.0
        %v2860 = vadd.f32 %v2798, 1.0
        %v2861 = vadd.f32 %v2800, 1.0
        %v2862 = vadd.f32 %v2802, 1.0
        %v2863 = vadd.f32 %v2804, 1.0
        %v2864 = vadd.f32 %v2806, 1.0
        %v2865 = vadd.f32 %v2808, 1.0
        %v2866 = vadd.f32 %v2810, 1.0
        %v2867 = vadd.f32 %v2812, 1.0
        %v2868 = vadd.f32 %v2814, 1.0
        %v2869 = vadd.f32 %v2816, 1.0
        %v2870 = vadd.f32 %v2818, 1.0
        %v2871 = vadd.f32 %v2820, 1.0
        %v2872 = vadd.f32 %v2822, 1.0
        %v2873 = vadd.f32 %v2824, 1.0
        %v2874 = vadd.f32 %v2826, 1.0
        %v2875 = vadd.f32 %v2828, 1.0
        %v2876 = vadd.f32 %v2830, 1.0
        %v2877 = vadd.f32 %v2832, 1.0
        %v2878 = vadd.f32 %v2834, 1.0
        %v2879 = vadd.f32 %v2836, 1.0
        %v2880 = vadd.f32 %v2838, 1.0
        %v2881 = vadd.f32 %v2840, 1.0
        %v2882 = vadd.f32 %v2842, 1.0
        %v2883 = vadd.f32 %v2844, 1.0
        %v2884 = vadd.f32 %v2846, 1.0
        %v2885 = vadd.f32 %v2848, 1.0
        %v2886 = vadd.f32 %v2850, 1.0
        %v2887 = vadd.f32 %v2852, 1.0
        %v2888 = vadd.f32 %v2854, 1.0
        %v2889 = vadd.f32 %v2856, 1.0
        %v2890 = vadd.f32 %v2858, 1.0
        %v2891 = vrcp.pop %v2859
        %v2892 = vmul.f32 1.0, %v2891
        %v2893 = vrcp.pop %v2860
        %v2894 = vmul.f32 1.0, %v2893
        %v2895 = vrcp.pop %v2861
        %v2896 = vmul.f32 1.0, %v2895
        %v2897 = vrcp.pop %v2862
        %v2898 = vmul.f32 1.0, %v2897
        %v2899 = vrcp.pop %v2863
        %v2900 = vmul.f32 1.0, %v2899
        %v2901 = vrcp.pop %v2864
        %v2902 = vmul.f32 1.0, %v2901
        %v2903 = vrcp.pop %v2865
        %v2904 = vmul.f32 1.0, %v2903
        %v2905 = vrcp.pop %v2866
        %v2906 = vmul.f32 1.0, %v2905
        %v2907 = vrcp.pop %v2867
        %v2908 = vmul.f32 1.0, %v2907
        %v2909 = vrcp.pop %v2868
        %v2910 = vmul.f32 1.0, %v2909
        %v2911 = vrcp.pop %v2869
        %v2912 = vmul.f32 1.0, %v2911
        %v2913 = vrcp.pop %v2870
        %v2914 = vmul.f32 1.0, %v2913
        %v2915 = vrcp.pop %v2871
        %v2916 = vmul.f32 1.0, %v2915
        %v2917 = vrcp.pop %v2872
        %v2918 = vmul.f32 1.0, %v2917
        %v2919 = vrcp.pop %v2873
        %v2920 = vmul.f32 1.0, %v2919
        %v2921 = vrcp.pop %v2874
        %v2922 = vmul.f32 1.0, %v2921
        %v2923 = vrcp.pop %v2875
        %v2924 = vmul.f32 1.0, %v2923
        %v2925 = vrcp.pop %v2876
        %v2926 = vmul.f32 1.0, %v2925
        %v2927 = vrcp.pop %v2877
        %v2928 = vmul.f32 1.0, %v2927
        %v2929 = vrcp.pop %v2878
        %v2930 = vmul.f32 1.0, %v2929
        %v2931 = vrcp.pop %v2879
        %v2932 = vmul.f32 1.0, %v2931
        %v2933 = vrcp.pop %v2880
        %v2934 = vmul.f32 1.0, %v2933
        %v2935 = vrcp.pop %v2881
        %v2936 = vmul.f32 1.0, %v2935
        %v2937 = vrcp.pop %v2882
        %v2938 = vmul.f32 1.0, %v2937
        %v2939 = vrcp.pop %v2883
        %v2940 = vmul.f32 1.0, %v2939
        %v2941 = vrcp.pop %v2884
        %v2942 = vmul.f32 1.0, %v2941
        %v2943 = vrcp.pop %v2885
        %v2944 = vmul.f32 1.0, %v2943
        %v2945 = vrcp.pop %v2886
        %v2946 = vmul.f32 1.0, %v2945
        %v2947 = vrcp.pop %v2887
        %v2948 = vmul.f32 1.0, %v2947
        %v2949 = vrcp.pop %v2888
        %v2950 = vmul.f32 1.0, %v2949
        %v2951 = vrcp.pop %v2889
        %v2952 = vmul.f32 1.0, %v2951
        %v2953 = vrcp.pop %v2890
        %v2954 = vmul.f32 1.0, %v2953
        %v2955 = vmul.f32 %v1165, %v2892
        %v2956 = vmul.f32 %v1169, %v2894
        %v2957 = vmul.f32 %v1173, %v2896
        %v2958 = vmul.f32 %v1177, %v2898
        %v2959 = vmul.f32 %v1181, %v2900
        %v2960 = vmul.f32 %v1185, %v2902
        %v2961 = vmul.f32 %v1189, %v2904
        %v2962 = vmul.f32 %v1193, %v2906
        %v2963 = vmul.f32 %v1197, %v2908
        %v2964 = vmul.f32 %v1201, %v2910
        %v2965 = vmul.f32 %v1205, %v2912
        %v2966 = vmul.f32 %v1209, %v2914
        %v2967 = vmul.f32 %v1213, %v2916
        %v2968 = vmul.f32 %v1217, %v2918
        %v2969 = vmul.f32 %v1221, %v2920
        %v2970 = vmul.f32 %v1225, %v2922
        %v2971 = vmul.f32 %v1229, %v2924
        %v2972 = vmul.f32 %v1233, %v2926
        %v2973 = vmul.f32 %v1237, %v2928
        %v2974 = vmul.f32 %v1241, %v2930
        %v2975 = vmul.f32 %v1245, %v2932
        %v2976 = vmul.f32 %v1249, %v2934
        %v2977 = vmul.f32 %v1253, %v2936
        %v2978 = vmul.f32 %v1257, %v2938
        %v2979 = vmul.f32 %v1261, %v2940
        %v2980 = vmul.f32 %v1265, %v2942
        %v2981 = vmul.f32 %v1269, %v2944
        %v2982 = vmul.f32 %v1273, %v2946
        %v2983 = vmul.f32 %v1277, %v2948
        %v2984 = vmul.f32 %v1281, %v2950
        %v2985 = vmul.f32 %v1285, %v2952
        %v2986 = vmul.f32 %v1289, %v2954
        %v2987 = vsel %vm1354, %v2955, 0.0
        %v2988 = vsel %vm1354, %v2956, 0.0
        %v2989 = vadd.f32 %v2987, %v2988
        %v2990 = vsel %vm1354, %v2957, 0.0
        %v2991 = vadd.f32 %v2989, %v2990
        %v2992 = vsel %vm1354, %v2958, 0.0
        %v2993 = vadd.f32 %v2991, %v2992
        %v2994 = vsel %vm1354, %v2959, 0.0
        %v2995 = vadd.f32 %v2993, %v2994
        %v2996 = vsel %vm1354, %v2960, 0.0
        %v2997 = vadd.f32 %v2995, %v2996
        %v2998 = vsel %vm1354, %v2961, 0.0
        %v2999 = vadd.f32 %v2997, %v2998
        %v3000 = vsel %vm1354, %v2962, 0.0
        %v3001 = vadd.f32 %v2999, %v3000
        %v3002 = vsel %vm1354, %v2963, 0.0
        %v3003 = vadd.f32 %v3001, %v3002
        %v3004 = vsel %vm1354, %v2964, 0.0
        %v3005 = vadd.f32 %v3003, %v3004
        %v3006 = vsel %vm1354, %v2965, 0.0
        %v3007 = vadd.f32 %v3005, %v3006
        %v3008 = vsel %vm1354, %v2966, 0.0
        %v3009 = vadd.f32 %v3007, %v3008
        %v3010 = vsel %vm1354, %v2967, 0.0
        %v3011 = vadd.f32 %v3009, %v3010
        %v3012 = vsel %vm1354, %v2968, 0.0
        %v3013 = vadd.f32 %v3011, %v3012
        %v3014 = vsel %vm1354, %v2969, 0.0
        %v3015 = vadd.f32 %v3013, %v3014
        %v3016 = vsel %vm1354, %v2970, 0.0
        %v3017 = vadd.f32 %v3015, %v3016
        %v3018 = vsel %vm1354, %v2971, 0.0
        %v3019 = vadd.f32 %v3017, %v3018
        %v3020 = vsel %vm1354, %v2972, 0.0
        %v3021 = vadd.f32 %v3019, %v3020
        %v3022 = vsel %vm1354, %v2973, 0.0
        %v3023 = vadd.f32 %v3021, %v3022
        %v3024 = vsel %vm1354, %v2974, 0.0
        %v3025 = vadd.f32 %v3023, %v3024
        %v3026 = vsel %vm1354, %v2975, 0.0
        %v3027 = vadd.f32 %v3025, %v3026
        %v3028 = vsel %vm1354, %v2976, 0.0
        %v3029 = vadd.f32 %v3027, %v3028
        %v3030 = vsel %vm1354, %v2977, 0.0
        %v3031 = vadd.f32 %v3029, %v3030
        %v3032 = vsel %vm1354, %v2978, 0.0
        %v3033 = vadd.f32 %v3031, %v3032
        %v3034 = vsel %vm1354, %v2979, 0.0
        %v3035 = vadd.f32 %v3033, %v3034
        %v3036 = vsel %vm1354, %v2980, 0.0
        %v3037 = vadd.f32 %v3035, %v3036
        %v3038 = vsel %vm1354, %v2981, 0.0
        %v3039 = vadd.f32 %v3037, %v3038
        %v3040 = vsel %vm1354, %v2982, 0.0
        %v3041 = vadd.f32 %v3039, %v3040
        %v3042 = vsel %vm1354, %v2983, 0.0
        %v3043 = vadd.f32 %v3041, %v3042
        %v3044 = vsel %vm1354, %v2984, 0.0
        %v3045 = vadd.f32 %v3043, %v3044
        %v3046 = vsel %vm1354, %v2985, 0.0
        %v3047 = vadd.f32 %v3045, %v3046
        %v3048 = vsel %vm1354, %v2986, 0.0
        %v3049 = vadd.f32 %v3047, %v3048
        %v3050 = vadd.f32 %v3049, %v205
        %v3051 = vmul.f32 %v1454, %v2892
        %v3052 = vmul.f32 %v1458, %v2894
        %v3053 = vmul.f32 %v1462, %v2896
        %v3054 = vmul.f32 %v1466, %v2898
        %v3055 = vmul.f32 %v1470, %v2900
        %v3056 = vmul.f32 %v1474, %v2902
        %v3057 = vmul.f32 %v1478, %v2904
        %v3058 = vmul.f32 %v1482, %v2906
        %v3059 = vmul.f32 %v1486, %v2908
        %v3060 = vmul.f32 %v1490, %v2910
        %v3061 = vmul.f32 %v1494, %v2912
        %v3062 = vmul.f32 %v1498, %v2914
        %v3063 = vmul.f32 %v1502, %v2916
        %v3064 = vmul.f32 %v1506, %v2918
        %v3065 = vmul.f32 %v1510, %v2920
        %v3066 = vmul.f32 %v1514, %v2922
        %v3067 = vmul.f32 %v1518, %v2924
        %v3068 = vmul.f32 %v1522, %v2926
        %v3069 = vmul.f32 %v1526, %v2928
        %v3070 = vmul.f32 %v1530, %v2930
        %v3071 = vmul.f32 %v1534, %v2932
        %v3072 = vmul.f32 %v1538, %v2934
        %v3073 = vmul.f32 %v1542, %v2936
        %v3074 = vmul.f32 %v1546, %v2938
        %v3075 = vmul.f32 %v1550, %v2940
        %v3076 = vmul.f32 %v1554, %v2942
        %v3077 = vmul.f32 %v1558, %v2944
        %v3078 = vmul.f32 %v1562, %v2946
        %v3079 = vmul.f32 %v1566, %v2948
        %v3080 = vmul.f32 %v1570, %v2950
        %v3081 = vmul.f32 %v1574, %v2952
        %v3082 = vmul.f32 %v1578, %v2954
        %v3083 = vsel %vm1354, %v3051, 0.0
        %v3084 = vsel %vm1354, %v3052, 0.0
        %v3085 = vadd.f32 %v3083, %v3084
        %v3086 = vsel %vm1354, %v3053, 0.0
        %v3087 = vadd.f32 %v3085, %v3086
        %v3088 = vsel %vm1354, %v3054, 0.0
        %v3089 = vadd.f32 %v3087, %v3088
        %v3090 = vsel %vm1354, %v3055, 0.0
        %v3091 = vadd.f32 %v3089, %v3090
        %v3092 = vsel %vm1354, %v3056, 0.0
        %v3093 = vadd.f32 %v3091, %v3092
        %v3094 = vsel %vm1354, %v3057, 0.0
        %v3095 = vadd.f32 %v3093, %v3094
        %v3096 = vsel %vm1354, %v3058, 0.0
        %v3097 = vadd.f32 %v3095, %v3096
        %v3098 = vsel %vm1354, %v3059, 0.0
        %v3099 = vadd.f32 %v3097, %v3098
        %v3100 = vsel %vm1354, %v3060, 0.0
        %v3101 = vadd.f32 %v3099, %v3100
        %v3102 = vsel %vm1354, %v3061, 0.0
        %v3103 = vadd.f32 %v3101, %v3102
        %v3104 = vsel %vm1354, %v3062, 0.0
        %v3105 = vadd.f32 %v3103, %v3104
        %v3106 = vsel %vm1354, %v3063, 0.0
        %v3107 = vadd.f32 %v3105, %v3106
        %v3108 = vsel %vm1354, %v3064, 0.0
        %v3109 = vadd.f32 %v3107, %v3108
        %v3110 = vsel %vm1354, %v3065, 0.0
        %v3111 = vadd.f32 %v3109, %v3110
        %v3112 = vsel %vm1354, %v3066, 0.0
        %v3113 = vadd.f32 %v3111, %v3112
        %v3114 = vsel %vm1354, %v3067, 0.0
        %v3115 = vadd.f32 %v3113, %v3114
        %v3116 = vsel %vm1354, %v3068, 0.0
        %v3117 = vadd.f32 %v3115, %v3116
        %v3118 = vsel %vm1354, %v3069, 0.0
        %v3119 = vadd.f32 %v3117, %v3118
        %v3120 = vsel %vm1354, %v3070, 0.0
        %v3121 = vadd.f32 %v3119, %v3120
        %v3122 = vsel %vm1354, %v3071, 0.0
        %v3123 = vadd.f32 %v3121, %v3122
        %v3124 = vsel %vm1354, %v3072, 0.0
        %v3125 = vadd.f32 %v3123, %v3124
        %v3126 = vsel %vm1354, %v3073, 0.0
        %v3127 = vadd.f32 %v3125, %v3126
        %v3128 = vsel %vm1354, %v3074, 0.0
        %v3129 = vadd.f32 %v3127, %v3128
        %v3130 = vsel %vm1354, %v3075, 0.0
        %v3131 = vadd.f32 %v3129, %v3130
        %v3132 = vsel %vm1354, %v3076, 0.0
        %v3133 = vadd.f32 %v3131, %v3132
        %v3134 = vsel %vm1354, %v3077, 0.0
        %v3135 = vadd.f32 %v3133, %v3134
        %v3136 = vsel %vm1354, %v3078, 0.0
        %v3137 = vadd.f32 %v3135, %v3136
        %v3138 = vsel %vm1354, %v3079, 0.0
        %v3139 = vadd.f32 %v3137, %v3138
        %v3140 = vsel %vm1354, %v3080, 0.0
        %v3141 = vadd.f32 %v3139, %v3140
        %v3142 = vsel %vm1354, %v3081, 0.0
        %v3143 = vadd.f32 %v3141, %v3142
        %v3144 = vsel %vm1354, %v3082, 0.0
        %v3145 = vadd.f32 %v3143, %v3144
        %v3146 = vadd.f32 %v3145, %v207
        %v3147 = vmul.f32 %v1711, %v2442
        %v3148 = vadd.f32 %v3147, %v1718
        %v3149 = vadd.f32 %v3148, %v3050
        %v3150 = vadd.f32 %v1726, %v3146
        %v3151 = vadd.f32 %v3150, 1e-08
        %v3152 = vrcp.pop %v3151
        %v3153 = vmul.f32 %v3149, %v3152
        %3154 = vxpose.xlu0.b32.start [1/16] %v3153, 128
        %3155 = vxpose.xlu0.b32.cont [2/16] 0.0, 128
        %3156 = vxpose.xlu0.b32.cont [3/16] 0.0, 128
        %3157 = vxpose.xlu0.b32.cont [4/16] 0.0, 128
        %3158 = vxpose.xlu0.b32.cont [5/16] 0.0, 128
        %3159 = vxpose.xlu0.b32.cont [6/16] 0.0, 128
        %3160 = vxpose.xlu0.b32.cont [7/16] 0.0, 128
        %3161 = vxpose.xlu0.b32.cont [8/16] 0.0, 128
        %3162 = vxpose.xlu0.b32.cont [9/16] 0.0, 128
        %3163 = vxpose.xlu0.b32.cont [10/16] 0.0, 128
        %3164 = vxpose.xlu0.b32.cont [11/16] 0.0, 128
        %3165 = vxpose.xlu0.b32.cont [12/16] 0.0, 128
        %3166 = vxpose.xlu0.b32.cont [13/16] 0.0, 128
        %3167 = vxpose.xlu0.b32.cont [14/16] 0.0, 128
        %3168 = vxpose.xlu0.b32.cont [15/16] 0.0, 128
        %3169 = vxpose.xlu0.b32.end [16/16] 0.0, 128
        %v3170 = vpop.trf.xlu0
        %v3171 = vpop.trf.xlu0
        %v3172 = vpop.trf.xlu0
        %v3173 = vpop.trf.xlu0
        %v3174 = vpop.trf.xlu0
        %v3175 = vpop.trf.xlu0
        %v3176 = vpop.trf.xlu0
        %v3177 = vpop.trf.xlu0
        %v3178 = vpop.trf.xlu0
        %v3179 = vpop.trf.xlu0
        %v3180 = vpop.trf.xlu0
        %v3181 = vpop.trf.xlu0
        %v3182 = vpop.trf.xlu0
        %v3183 = vpop.trf.xlu0
        %v3184 = vpop.trf.xlu0
        %v3185 = vpop.trf.xlu0
        %v3186 = vlaneseq
        %v3187 = vshrl.u32 %v3186, 7
        %v3188 = vsub.s32 0, %v3187
        %v3189 = vrot.slane %v3170, %v3188
        %3191 = vbcast.lane.b32.xlu0 %v3189, 256
        %v3192 = vpop.permute.xlu0 %3191
        %v3193 = vlaneseq
        %v3194 = vshrl.u32 %v3193, 7
        %v3195 = vsub.s32 1, %v3194
        %v3196 = vrot.slane %v3170, %v3195
        %3198 = vbcast.lane.b32.xlu0 %v3196, 256
        %v3199 = vpop.permute.xlu0 %3198
        %v3200 = vlaneseq
        %v3201 = vshrl.u32 %v3200, 7
        %v3202 = vsub.s32 2, %v3201
        %v3203 = vrot.slane %v3170, %v3202
        %3205 = vbcast.lane.b32.xlu0 %v3203, 256
        %v3206 = vpop.permute.xlu0 %3205
        %v3207 = vlaneseq
        %v3208 = vshrl.u32 %v3207, 7
        %v3209 = vsub.s32 3, %v3208
        %v3210 = vrot.slane %v3170, %v3209
        %3212 = vbcast.lane.b32.xlu0 %v3210, 256
        %v3213 = vpop.permute.xlu0 %3212
        %v3214 = vlaneseq
        %v3215 = vshrl.u32 %v3214, 7
        %v3216 = vsub.s32 4, %v3215
        %v3217 = vrot.slane %v3170, %v3216
        %3219 = vbcast.lane.b32.xlu0 %v3217, 256
        %v3220 = vpop.permute.xlu0 %3219
        %v3221 = vlaneseq
        %v3222 = vshrl.u32 %v3221, 7
        %v3223 = vsub.s32 5, %v3222
        %v3224 = vrot.slane %v3170, %v3223
        %3226 = vbcast.lane.b32.xlu0 %v3224, 256
        %v3227 = vpop.permute.xlu0 %3226
        %v3228 = vlaneseq
        %v3229 = vshrl.u32 %v3228, 7
        %v3230 = vsub.s32 6, %v3229
        %v3231 = vrot.slane %v3170, %v3230
        %3233 = vbcast.lane.b32.xlu0 %v3231, 256
        %v3234 = vpop.permute.xlu0 %3233
        %v3235 = vlaneseq
        %v3236 = vshrl.u32 %v3235, 7
        %v3237 = vsub.s32 7, %v3236
        %v3238 = vrot.slane %v3170, %v3237
        %3240 = vbcast.lane.b32.xlu0 %v3238, 256
        %v3241 = vpop.permute.xlu0 %3240
        %v3242 = vlaneseq
        %v3243 = vshrl.u32 %v3242, 7
        %v3244 = vsub.s32 0, %v3243
        %v3245 = vrot.slane %v3171, %v3244
        %3247 = vbcast.lane.b32.xlu0 %v3245, 256
        %v3248 = vpop.permute.xlu0 %3247
        %v3249 = vlaneseq
        %v3250 = vshrl.u32 %v3249, 7
        %v3251 = vsub.s32 1, %v3250
        %v3252 = vrot.slane %v3171, %v3251
        %3254 = vbcast.lane.b32.xlu0 %v3252, 256
        %v3255 = vpop.permute.xlu0 %3254
        %v3256 = vlaneseq
        %v3257 = vshrl.u32 %v3256, 7
        %v3258 = vsub.s32 2, %v3257
        %v3259 = vrot.slane %v3171, %v3258
        %3261 = vbcast.lane.b32.xlu0 %v3259, 256
        %v3262 = vpop.permute.xlu0 %3261
        %v3263 = vlaneseq
        %v3264 = vshrl.u32 %v3263, 7
        %v3265 = vsub.s32 3, %v3264
        %v3266 = vrot.slane %v3171, %v3265
        %3268 = vbcast.lane.b32.xlu0 %v3266, 256
        %v3269 = vpop.permute.xlu0 %3268
        %v3270 = vlaneseq
        %v3271 = vshrl.u32 %v3270, 7
        %v3272 = vsub.s32 4, %v3271
        %v3273 = vrot.slane %v3171, %v3272
        %3275 = vbcast.lane.b32.xlu0 %v3273, 256
        %v3276 = vpop.permute.xlu0 %3275
        %v3277 = vlaneseq
        %v3278 = vshrl.u32 %v3277, 7
        %v3279 = vsub.s32 5, %v3278
        %v3280 = vrot.slane %v3171, %v3279
        %3282 = vbcast.lane.b32.xlu0 %v3280, 256
        %v3283 = vpop.permute.xlu0 %3282
        %v3284 = vlaneseq
        %v3285 = vshrl.u32 %v3284, 7
        %v3286 = vsub.s32 6, %v3285
        %v3287 = vrot.slane %v3171, %v3286
        %3289 = vbcast.lane.b32.xlu0 %v3287, 256
        %v3290 = vpop.permute.xlu0 %3289
        %v3291 = vlaneseq
        %v3292 = vshrl.u32 %v3291, 7
        %v3293 = vsub.s32 7, %v3292
        %v3294 = vrot.slane %v3171, %v3293
        %3296 = vbcast.lane.b32.xlu0 %v3294, 256
        %v3297 = vpop.permute.xlu0 %3296
        %v3298 = vlaneseq
        %v3299 = vshrl.u32 %v3298, 7
        %v3300 = vsub.s32 0, %v3299
        %v3301 = vrot.slane %v3172, %v3300
        %3303 = vbcast.lane.b32.xlu0 %v3301, 256
        %v3304 = vpop.permute.xlu0 %3303
        %v3305 = vlaneseq
        %v3306 = vshrl.u32 %v3305, 7
        %v3307 = vsub.s32 1, %v3306
        %v3308 = vrot.slane %v3172, %v3307
        %3310 = vbcast.lane.b32.xlu0 %v3308, 256
        %v3311 = vpop.permute.xlu0 %3310
        %v3312 = vlaneseq
        %v3313 = vshrl.u32 %v3312, 7
        %v3314 = vsub.s32 2, %v3313
        %v3315 = vrot.slane %v3172, %v3314
        %3317 = vbcast.lane.b32.xlu0 %v3315, 256
        %v3318 = vpop.permute.xlu0 %3317
        %v3319 = vlaneseq
        %v3320 = vshrl.u32 %v3319, 7
        %v3321 = vsub.s32 3, %v3320
        %v3322 = vrot.slane %v3172, %v3321
        %3324 = vbcast.lane.b32.xlu0 %v3322, 256
        %v3325 = vpop.permute.xlu0 %3324
        %v3326 = vlaneseq
        %v3327 = vshrl.u32 %v3326, 7
        %v3328 = vsub.s32 4, %v3327
        %v3329 = vrot.slane %v3172, %v3328
        %3331 = vbcast.lane.b32.xlu0 %v3329, 256
        %v3332 = vpop.permute.xlu0 %3331
        %v3333 = vlaneseq
        %v3334 = vshrl.u32 %v3333, 7
        %v3335 = vsub.s32 5, %v3334
        %v3336 = vrot.slane %v3172, %v3335
        %3338 = vbcast.lane.b32.xlu0 %v3336, 256
        %v3339 = vpop.permute.xlu0 %3338
        %v3340 = vlaneseq
        %v3341 = vshrl.u32 %v3340, 7
        %v3342 = vsub.s32 6, %v3341
        %v3343 = vrot.slane %v3172, %v3342
        %3345 = vbcast.lane.b32.xlu0 %v3343, 256
        %v3346 = vpop.permute.xlu0 %3345
        %v3347 = vlaneseq
        %v3348 = vshrl.u32 %v3347, 7
        %v3349 = vsub.s32 7, %v3348
        %v3350 = vrot.slane %v3172, %v3349
        %3352 = vbcast.lane.b32.xlu0 %v3350, 256
        %v3353 = vpop.permute.xlu0 %3352
        %v3354 = vlaneseq
        %v3355 = vshrl.u32 %v3354, 7
        %v3356 = vsub.s32 0, %v3355
        %v3357 = vrot.slane %v3173, %v3356
        %3359 = vbcast.lane.b32.xlu0 %v3357, 256
        %v3360 = vpop.permute.xlu0 %3359
        %v3361 = vlaneseq
        %v3362 = vshrl.u32 %v3361, 7
        %v3363 = vsub.s32 1, %v3362
        %v3364 = vrot.slane %v3173, %v3363
        %3366 = vbcast.lane.b32.xlu0 %v3364, 256
        %v3367 = vpop.permute.xlu0 %3366
        %v3368 = vlaneseq
        %v3369 = vshrl.u32 %v3368, 7
        %v3370 = vsub.s32 2, %v3369
        %v3371 = vrot.slane %v3173, %v3370
        %3373 = vbcast.lane.b32.xlu0 %v3371, 256
        %v3374 = vpop.permute.xlu0 %3373
        %v3375 = vlaneseq
        %v3376 = vshrl.u32 %v3375, 7
        %v3377 = vsub.s32 3, %v3376
        %v3378 = vrot.slane %v3173, %v3377
        %3380 = vbcast.lane.b32.xlu0 %v3378, 256
        %v3381 = vpop.permute.xlu0 %3380
        %v3382 = vlaneseq
        %v3383 = vshrl.u32 %v3382, 7
        %v3384 = vsub.s32 4, %v3383
        %v3385 = vrot.slane %v3173, %v3384
        %3387 = vbcast.lane.b32.xlu0 %v3385, 256
        %v3388 = vpop.permute.xlu0 %3387
        %v3389 = vlaneseq
        %v3390 = vshrl.u32 %v3389, 7
        %v3391 = vsub.s32 5, %v3390
        %v3392 = vrot.slane %v3173, %v3391
        %3394 = vbcast.lane.b32.xlu0 %v3392, 256
        %v3395 = vpop.permute.xlu0 %3394
        %v3396 = vlaneseq
        %v3397 = vshrl.u32 %v3396, 7
        %v3398 = vsub.s32 6, %v3397
        %v3399 = vrot.slane %v3173, %v3398
        %3401 = vbcast.lane.b32.xlu0 %v3399, 256
        %v3402 = vpop.permute.xlu0 %3401
        %v3403 = vlaneseq
        %v3404 = vshrl.u32 %v3403, 7
        %v3405 = vsub.s32 7, %v3404
        %v3406 = vrot.slane %v3173, %v3405
        %3408 = vbcast.lane.b32.xlu0 %v3406, 256
        %v3409 = vpop.permute.xlu0 %3408
        %v3410 = vsub.f32 %v3192, %v525
        %v3411 = vsub.f32 %v3199, %v529
        %v3412 = vsub.f32 %v3206, %v533
        %v3413 = vsub.f32 %v3213, %v537
        %v3414 = vsub.f32 %v3220, %v541
        %v3415 = vsub.f32 %v3227, %v545
        %v3416 = vsub.f32 %v3234, %v549
        %v3417 = vsub.f32 %v3241, %v553
        %v3418 = vsub.f32 %v3248, %v557
        %v3419 = vsub.f32 %v3255, %v561
        %v3420 = vsub.f32 %v3262, %v565
        %v3421 = vsub.f32 %v3269, %v569
        %v3422 = vsub.f32 %v3276, %v573
        %v3423 = vsub.f32 %v3283, %v577
        %v3424 = vsub.f32 %v3290, %v581
        %v3425 = vsub.f32 %v3297, %v585
        %v3426 = vsub.f32 %v3304, %v589
        %v3427 = vsub.f32 %v3311, %v593
        %v3428 = vsub.f32 %v3318, %v597
        %v3429 = vsub.f32 %v3325, %v601
        %v3430 = vsub.f32 %v3332, %v605
        %v3431 = vsub.f32 %v3339, %v609
        %v3432 = vsub.f32 %v3346, %v613
        %v3433 = vsub.f32 %v3353, %v617
        %v3434 = vsub.f32 %v3360, %v621
        %v3435 = vsub.f32 %v3367, %v625
        %v3436 = vsub.f32 %v3374, %v629
        %v3437 = vsub.f32 %v3381, %v633
        %v3438 = vsub.f32 %v3388, %v637
        %v3439 = vsub.f32 %v3395, %v641
        %v3440 = vsub.f32 %v3402, %v645
        %v3441 = vsub.f32 %v3409, %v649
        %v3442 = vmul.f32 %v3410, %v749
        %v3443 = vmul.f32 %v3411, %v753
        %v3444 = vmul.f32 %v3412, %v757
        %v3445 = vmul.f32 %v3413, %v761
        %v3446 = vmul.f32 %v3414, %v765
        %v3447 = vmul.f32 %v3415, %v769
        %v3448 = vmul.f32 %v3416, %v773
        %v3449 = vmul.f32 %v3417, %v777
        %v3450 = vmul.f32 %v3418, %v781
        %v3451 = vmul.f32 %v3419, %v785
        %v3452 = vmul.f32 %v3420, %v789
        %v3453 = vmul.f32 %v3421, %v793
        %v3454 = vmul.f32 %v3422, %v797
        %v3455 = vmul.f32 %v3423, %v801
        %v3456 = vmul.f32 %v3424, %v805
        %v3457 = vmul.f32 %v3425, %v809
        %v3458 = vmul.f32 %v3426, %v813
        %v3459 = vmul.f32 %v3427, %v817
        %v3460 = vmul.f32 %v3428, %v821
        %v3461 = vmul.f32 %v3429, %v825
        %v3462 = vmul.f32 %v3430, %v829
        %v3463 = vmul.f32 %v3431, %v833
        %v3464 = vmul.f32 %v3432, %v837
        %v3465 = vmul.f32 %v3433, %v841
        %v3466 = vmul.f32 %v3434, %v845
        %v3467 = vmul.f32 %v3435, %v849
        %v3468 = vmul.f32 %v3436, %v853
        %v3469 = vmul.f32 %v3437, %v857
        %v3470 = vmul.f32 %v3438, %v861
        %v3471 = vmul.f32 %v3439, %v865
        %v3472 = vmul.f32 %v3440, %v869
        %v3473 = vmul.f32 %v3441, %v873
        %v3474 = vxor.u32 %v3442, 2147483648
        %v3475 = vxor.u32 %v3443, 2147483648
        %v3476 = vxor.u32 %v3444, 2147483648
        %v3477 = vxor.u32 %v3445, 2147483648
        %v3478 = vxor.u32 %v3446, 2147483648
        %v3479 = vxor.u32 %v3447, 2147483648
        %v3480 = vxor.u32 %v3448, 2147483648
        %v3481 = vxor.u32 %v3449, 2147483648
        %v3482 = vxor.u32 %v3450, 2147483648
        %v3483 = vxor.u32 %v3451, 2147483648
        %v3484 = vxor.u32 %v3452, 2147483648
        %v3485 = vxor.u32 %v3453, 2147483648
        %v3486 = vxor.u32 %v3454, 2147483648
        %v3487 = vxor.u32 %v3455, 2147483648
        %v3488 = vxor.u32 %v3456, 2147483648
        %v3489 = vxor.u32 %v3457, 2147483648
        %v3490 = vxor.u32 %v3458, 2147483648
        %v3491 = vxor.u32 %v3459, 2147483648
        %v3492 = vxor.u32 %v3460, 2147483648
        %v3493 = vxor.u32 %v3461, 2147483648
        %v3494 = vxor.u32 %v3462, 2147483648
        %v3495 = vxor.u32 %v3463, 2147483648
        %v3496 = vxor.u32 %v3464, 2147483648
        %v3497 = vxor.u32 %v3465, 2147483648
        %v3498 = vxor.u32 %v3466, 2147483648
        %v3499 = vxor.u32 %v3467, 2147483648
        %v3500 = vxor.u32 %v3468, 2147483648
        %v3501 = vxor.u32 %v3469, 2147483648
        %v3502 = vxor.u32 %v3470, 2147483648
        %v3503 = vxor.u32 %v3471, 2147483648
        %v3504 = vxor.u32 %v3472, 2147483648
        %v3505 = vxor.u32 %v3473, 2147483648
        %v3506 = vmul.f32 %v3474, 1.442695
        %v3507 = vpow.pop %v3506
        %v3508 = vmul.f32 %v3475, 1.442695
        %v3509 = vpow.pop %v3508
        %v3510 = vmul.f32 %v3476, 1.442695
        %v3511 = vpow.pop %v3510
        %v3512 = vmul.f32 %v3477, 1.442695
        %v3513 = vpow.pop %v3512
        %v3514 = vmul.f32 %v3478, 1.442695
        %v3515 = vpow.pop %v3514
        %v3516 = vmul.f32 %v3479, 1.442695
        %v3517 = vpow.pop %v3516
        %v3518 = vmul.f32 %v3480, 1.442695
        %v3519 = vpow.pop %v3518
        %v3520 = vmul.f32 %v3481, 1.442695
        %v3521 = vpow.pop %v3520
        %v3522 = vmul.f32 %v3482, 1.442695
        %v3523 = vpow.pop %v3522
        %v3524 = vmul.f32 %v3483, 1.442695
        %v3525 = vpow.pop %v3524
        %v3526 = vmul.f32 %v3484, 1.442695
        %v3527 = vpow.pop %v3526
        %v3528 = vmul.f32 %v3485, 1.442695
        %v3529 = vpow.pop %v3528
        %v3530 = vmul.f32 %v3486, 1.442695
        %v3531 = vpow.pop %v3530
        %v3532 = vmul.f32 %v3487, 1.442695
        %v3533 = vpow.pop %v3532
        %v3534 = vmul.f32 %v3488, 1.442695
        %v3535 = vpow.pop %v3534
        %v3536 = vmul.f32 %v3489, 1.442695
        %v3537 = vpow.pop %v3536
        %v3538 = vmul.f32 %v3490, 1.442695
        %v3539 = vpow.pop %v3538
        %v3540 = vmul.f32 %v3491, 1.442695
        %v3541 = vpow.pop %v3540
        %v3542 = vmul.f32 %v3492, 1.442695
        %v3543 = vpow.pop %v3542
        %v3544 = vmul.f32 %v3493, 1.442695
        %v3545 = vpow.pop %v3544
        %v3546 = vmul.f32 %v3494, 1.442695
        %v3547 = vpow.pop %v3546
        %v3548 = vmul.f32 %v3495, 1.442695
        %v3549 = vpow.pop %v3548
        %v3550 = vmul.f32 %v3496, 1.442695
        %v3551 = vpow.pop %v3550
        %v3552 = vmul.f32 %v3497, 1.442695
        %v3553 = vpow.pop %v3552
        %v3554 = vmul.f32 %v3498, 1.442695
        %v3555 = vpow.pop %v3554
        %v3556 = vmul.f32 %v3499, 1.442695
        %v3557 = vpow.pop %v3556
        %v3558 = vmul.f32 %v3500, 1.442695
        %v3559 = vpow.pop %v3558
        %v3560 = vmul.f32 %v3501, 1.442695
        %v3561 = vpow.pop %v3560
        %v3562 = vmul.f32 %v3502, 1.442695
        %v3563 = vpow.pop %v3562
        %v3564 = vmul.f32 %v3503, 1.442695
        %v3565 = vpow.pop %v3564
        %v3566 = vmul.f32 %v3504, 1.442695
        %v3567 = vpow.pop %v3566
        %v3568 = vmul.f32 %v3505, 1.442695
        %v3569 = vpow.pop %v3568
        %v3570 = vadd.f32 %v3507, 1.0
        %v3571 = vadd.f32 %v3509, 1.0
        %v3572 = vadd.f32 %v3511, 1.0
        %v3573 = vadd.f32 %v3513, 1.0
        %v3574 = vadd.f32 %v3515, 1.0
        %v3575 = vadd.f32 %v3517, 1.0
        %v3576 = vadd.f32 %v3519, 1.0
        %v3577 = vadd.f32 %v3521, 1.0
        %v3578 = vadd.f32 %v3523, 1.0
        %v3579 = vadd.f32 %v3525, 1.0
        %v3580 = vadd.f32 %v3527, 1.0
        %v3581 = vadd.f32 %v3529, 1.0
        %v3582 = vadd.f32 %v3531, 1.0
        %v3583 = vadd.f32 %v3533, 1.0
        %v3584 = vadd.f32 %v3535, 1.0
        %v3585 = vadd.f32 %v3537, 1.0
        %v3586 = vadd.f32 %v3539, 1.0
        %v3587 = vadd.f32 %v3541, 1.0
        %v3588 = vadd.f32 %v3543, 1.0
        %v3589 = vadd.f32 %v3545, 1.0
        %v3590 = vadd.f32 %v3547, 1.0
        %v3591 = vadd.f32 %v3549, 1.0
        %v3592 = vadd.f32 %v3551, 1.0
        %v3593 = vadd.f32 %v3553, 1.0
        %v3594 = vadd.f32 %v3555, 1.0
        %v3595 = vadd.f32 %v3557, 1.0
        %v3596 = vadd.f32 %v3559, 1.0
        %v3597 = vadd.f32 %v3561, 1.0
        %v3598 = vadd.f32 %v3563, 1.0
        %v3599 = vadd.f32 %v3565, 1.0
        %v3600 = vadd.f32 %v3567, 1.0
        %v3601 = vadd.f32 %v3569, 1.0
        %v3602 = vrcp.pop %v3570
        %v3603 = vmul.f32 1.0, %v3602
        %v3604 = vrcp.pop %v3571
        %v3605 = vmul.f32 1.0, %v3604
        %v3606 = vrcp.pop %v3572
        %v3607 = vmul.f32 1.0, %v3606
        %v3608 = vrcp.pop %v3573
        %v3609 = vmul.f32 1.0, %v3608
        %v3610 = vrcp.pop %v3574
        %v3611 = vmul.f32 1.0, %v3610
        %v3612 = vrcp.pop %v3575
        %v3613 = vmul.f32 1.0, %v3612
        %v3614 = vrcp.pop %v3576
        %v3615 = vmul.f32 1.0, %v3614
        %v3616 = vrcp.pop %v3577
        %v3617 = vmul.f32 1.0, %v3616
        %v3618 = vrcp.pop %v3578
        %v3619 = vmul.f32 1.0, %v3618
        %v3620 = vrcp.pop %v3579
        %v3621 = vmul.f32 1.0, %v3620
        %v3622 = vrcp.pop %v3580
        %v3623 = vmul.f32 1.0, %v3622
        %v3624 = vrcp.pop %v3581
        %v3625 = vmul.f32 1.0, %v3624
        %v3626 = vrcp.pop %v3582
        %v3627 = vmul.f32 1.0, %v3626
        %v3628 = vrcp.pop %v3583
        %v3629 = vmul.f32 1.0, %v3628
        %v3630 = vrcp.pop %v3584
        %v3631 = vmul.f32 1.0, %v3630
        %v3632 = vrcp.pop %v3585
        %v3633 = vmul.f32 1.0, %v3632
        %v3634 = vrcp.pop %v3586
        %v3635 = vmul.f32 1.0, %v3634
        %v3636 = vrcp.pop %v3587
        %v3637 = vmul.f32 1.0, %v3636
        %v3638 = vrcp.pop %v3588
        %v3639 = vmul.f32 1.0, %v3638
        %v3640 = vrcp.pop %v3589
        %v3641 = vmul.f32 1.0, %v3640
        %v3642 = vrcp.pop %v3590
        %v3643 = vmul.f32 1.0, %v3642
        %v3644 = vrcp.pop %v3591
        %v3645 = vmul.f32 1.0, %v3644
        %v3646 = vrcp.pop %v3592
        %v3647 = vmul.f32 1.0, %v3646
        %v3648 = vrcp.pop %v3593
        %v3649 = vmul.f32 1.0, %v3648
        %v3650 = vrcp.pop %v3594
        %v3651 = vmul.f32 1.0, %v3650
        %v3652 = vrcp.pop %v3595
        %v3653 = vmul.f32 1.0, %v3652
        %v3654 = vrcp.pop %v3596
        %v3655 = vmul.f32 1.0, %v3654
        %v3656 = vrcp.pop %v3597
        %v3657 = vmul.f32 1.0, %v3656
        %v3658 = vrcp.pop %v3598
        %v3659 = vmul.f32 1.0, %v3658
        %v3660 = vrcp.pop %v3599
        %v3661 = vmul.f32 1.0, %v3660
        %v3662 = vrcp.pop %v3600
        %v3663 = vmul.f32 1.0, %v3662
        %v3664 = vrcp.pop %v3601
        %v3665 = vmul.f32 1.0, %v3664
        %v3666 = vmul.f32 %v1165, %v3603
        %v3667 = vmul.f32 %v1169, %v3605
        %v3668 = vmul.f32 %v1173, %v3607
        %v3669 = vmul.f32 %v1177, %v3609
        %v3670 = vmul.f32 %v1181, %v3611
        %v3671 = vmul.f32 %v1185, %v3613
        %v3672 = vmul.f32 %v1189, %v3615
        %v3673 = vmul.f32 %v1193, %v3617
        %v3674 = vmul.f32 %v1197, %v3619
        %v3675 = vmul.f32 %v1201, %v3621
        %v3676 = vmul.f32 %v1205, %v3623
        %v3677 = vmul.f32 %v1209, %v3625
        %v3678 = vmul.f32 %v1213, %v3627
        %v3679 = vmul.f32 %v1217, %v3629
        %v3680 = vmul.f32 %v1221, %v3631
        %v3681 = vmul.f32 %v1225, %v3633
        %v3682 = vmul.f32 %v1229, %v3635
        %v3683 = vmul.f32 %v1233, %v3637
        %v3684 = vmul.f32 %v1237, %v3639
        %v3685 = vmul.f32 %v1241, %v3641
        %v3686 = vmul.f32 %v1245, %v3643
        %v3687 = vmul.f32 %v1249, %v3645
        %v3688 = vmul.f32 %v1253, %v3647
        %v3689 = vmul.f32 %v1257, %v3649
        %v3690 = vmul.f32 %v1261, %v3651
        %v3691 = vmul.f32 %v1265, %v3653
        %v3692 = vmul.f32 %v1269, %v3655
        %v3693 = vmul.f32 %v1273, %v3657
        %v3694 = vmul.f32 %v1277, %v3659
        %v3695 = vmul.f32 %v1281, %v3661
        %v3696 = vmul.f32 %v1285, %v3663
        %v3697 = vmul.f32 %v1289, %v3665
        %v3698 = vsel %vm1354, %v3666, 0.0
        %v3699 = vsel %vm1354, %v3667, 0.0
        %v3700 = vadd.f32 %v3698, %v3699
        %v3701 = vsel %vm1354, %v3668, 0.0
        %v3702 = vadd.f32 %v3700, %v3701
        %v3703 = vsel %vm1354, %v3669, 0.0
        %v3704 = vadd.f32 %v3702, %v3703
        %v3705 = vsel %vm1354, %v3670, 0.0
        %v3706 = vadd.f32 %v3704, %v3705
        %v3707 = vsel %vm1354, %v3671, 0.0
        %v3708 = vadd.f32 %v3706, %v3707
        %v3709 = vsel %vm1354, %v3672, 0.0
        %v3710 = vadd.f32 %v3708, %v3709
        %v3711 = vsel %vm1354, %v3673, 0.0
        %v3712 = vadd.f32 %v3710, %v3711
        %v3713 = vsel %vm1354, %v3674, 0.0
        %v3714 = vadd.f32 %v3712, %v3713
        %v3715 = vsel %vm1354, %v3675, 0.0
        %v3716 = vadd.f32 %v3714, %v3715
        %v3717 = vsel %vm1354, %v3676, 0.0
        %v3718 = vadd.f32 %v3716, %v3717
        %v3719 = vsel %vm1354, %v3677, 0.0
        %v3720 = vadd.f32 %v3718, %v3719
        %v3721 = vsel %vm1354, %v3678, 0.0
        %v3722 = vadd.f32 %v3720, %v3721
        %v3723 = vsel %vm1354, %v3679, 0.0
        %v3724 = vadd.f32 %v3722, %v3723
        %v3725 = vsel %vm1354, %v3680, 0.0
        %v3726 = vadd.f32 %v3724, %v3725
        %v3727 = vsel %vm1354, %v3681, 0.0
        %v3728 = vadd.f32 %v3726, %v3727
        %v3729 = vsel %vm1354, %v3682, 0.0
        %v3730 = vadd.f32 %v3728, %v3729
        %v3731 = vsel %vm1354, %v3683, 0.0
        %v3732 = vadd.f32 %v3730, %v3731
        %v3733 = vsel %vm1354, %v3684, 0.0
        %v3734 = vadd.f32 %v3732, %v3733
        %v3735 = vsel %vm1354, %v3685, 0.0
        %v3736 = vadd.f32 %v3734, %v3735
        %v3737 = vsel %vm1354, %v3686, 0.0
        %v3738 = vadd.f32 %v3736, %v3737
        %v3739 = vsel %vm1354, %v3687, 0.0
        %v3740 = vadd.f32 %v3738, %v3739
        %v3741 = vsel %vm1354, %v3688, 0.0
        %v3742 = vadd.f32 %v3740, %v3741
        %v3743 = vsel %vm1354, %v3689, 0.0
        %v3744 = vadd.f32 %v3742, %v3743
        %v3745 = vsel %vm1354, %v3690, 0.0
        %v3746 = vadd.f32 %v3744, %v3745
        %v3747 = vsel %vm1354, %v3691, 0.0
        %v3748 = vadd.f32 %v3746, %v3747
        %v3749 = vsel %vm1354, %v3692, 0.0
        %v3750 = vadd.f32 %v3748, %v3749
        %v3751 = vsel %vm1354, %v3693, 0.0
        %v3752 = vadd.f32 %v3750, %v3751
        %v3753 = vsel %vm1354, %v3694, 0.0
        %v3754 = vadd.f32 %v3752, %v3753
        %v3755 = vsel %vm1354, %v3695, 0.0
        %v3756 = vadd.f32 %v3754, %v3755
        %v3757 = vsel %vm1354, %v3696, 0.0
        %v3758 = vadd.f32 %v3756, %v3757
        %v3759 = vsel %vm1354, %v3697, 0.0
        %v3760 = vadd.f32 %v3758, %v3759
        %v3761 = vadd.f32 %v3760, %v205
        %v3762 = vmul.f32 %v1454, %v3603
        %v3763 = vmul.f32 %v1458, %v3605
        %v3764 = vmul.f32 %v1462, %v3607
        %v3765 = vmul.f32 %v1466, %v3609
        %v3766 = vmul.f32 %v1470, %v3611
        %v3767 = vmul.f32 %v1474, %v3613
        %v3768 = vmul.f32 %v1478, %v3615
        %v3769 = vmul.f32 %v1482, %v3617
        %v3770 = vmul.f32 %v1486, %v3619
        %v3771 = vmul.f32 %v1490, %v3621
        %v3772 = vmul.f32 %v1494, %v3623
        %v3773 = vmul.f32 %v1498, %v3625
        %v3774 = vmul.f32 %v1502, %v3627
        %v3775 = vmul.f32 %v1506, %v3629
        %v3776 = vmul.f32 %v1510, %v3631
        %v3777 = vmul.f32 %v1514, %v3633
        %v3778 = vmul.f32 %v1518, %v3635
        %v3779 = vmul.f32 %v1522, %v3637
        %v3780 = vmul.f32 %v1526, %v3639
        %v3781 = vmul.f32 %v1530, %v3641
        %v3782 = vmul.f32 %v1534, %v3643
        %v3783 = vmul.f32 %v1538, %v3645
        %v3784 = vmul.f32 %v1542, %v3647
        %v3785 = vmul.f32 %v1546, %v3649
        %v3786 = vmul.f32 %v1550, %v3651
        %v3787 = vmul.f32 %v1554, %v3653
        %v3788 = vmul.f32 %v1558, %v3655
        %v3789 = vmul.f32 %v1562, %v3657
        %v3790 = vmul.f32 %v1566, %v3659
        %v3791 = vmul.f32 %v1570, %v3661
        %v3792 = vmul.f32 %v1574, %v3663
        %v3793 = vmul.f32 %v1578, %v3665
        %v3794 = vsel %vm1354, %v3762, 0.0
        %v3795 = vsel %vm1354, %v3763, 0.0
        %v3796 = vadd.f32 %v3794, %v3795
        %v3797 = vsel %vm1354, %v3764, 0.0
        %v3798 = vadd.f32 %v3796, %v3797
        %v3799 = vsel %vm1354, %v3765, 0.0
        %v3800 = vadd.f32 %v3798, %v3799
        %v3801 = vsel %vm1354, %v3766, 0.0
        %v3802 = vadd.f32 %v3800, %v3801
        %v3803 = vsel %vm1354, %v3767, 0.0
        %v3804 = vadd.f32 %v3802, %v3803
        %v3805 = vsel %vm1354, %v3768, 0.0
        %v3806 = vadd.f32 %v3804, %v3805
        %v3807 = vsel %vm1354, %v3769, 0.0
        %v3808 = vadd.f32 %v3806, %v3807
        %v3809 = vsel %vm1354, %v3770, 0.0
        %v3810 = vadd.f32 %v3808, %v3809
        %v3811 = vsel %vm1354, %v3771, 0.0
        %v3812 = vadd.f32 %v3810, %v3811
        %v3813 = vsel %vm1354, %v3772, 0.0
        %v3814 = vadd.f32 %v3812, %v3813
        %v3815 = vsel %vm1354, %v3773, 0.0
        %v3816 = vadd.f32 %v3814, %v3815
        %v3817 = vsel %vm1354, %v3774, 0.0
        %v3818 = vadd.f32 %v3816, %v3817
        %v3819 = vsel %vm1354, %v3775, 0.0
        %v3820 = vadd.f32 %v3818, %v3819
        %v3821 = vsel %vm1354, %v3776, 0.0
        %v3822 = vadd.f32 %v3820, %v3821
        %v3823 = vsel %vm1354, %v3777, 0.0
        %v3824 = vadd.f32 %v3822, %v3823
        %v3825 = vsel %vm1354, %v3778, 0.0
        %v3826 = vadd.f32 %v3824, %v3825
        %v3827 = vsel %vm1354, %v3779, 0.0
        %v3828 = vadd.f32 %v3826, %v3827
        %v3829 = vsel %vm1354, %v3780, 0.0
        %v3830 = vadd.f32 %v3828, %v3829
        %v3831 = vsel %vm1354, %v3781, 0.0
        %v3832 = vadd.f32 %v3830, %v3831
        %v3833 = vsel %vm1354, %v3782, 0.0
        %v3834 = vadd.f32 %v3832, %v3833
        %v3835 = vsel %vm1354, %v3783, 0.0
        %v3836 = vadd.f32 %v3834, %v3835
        %v3837 = vsel %vm1354, %v3784, 0.0
        %v3838 = vadd.f32 %v3836, %v3837
        %v3839 = vsel %vm1354, %v3785, 0.0
        %v3840 = vadd.f32 %v3838, %v3839
        %v3841 = vsel %vm1354, %v3786, 0.0
        %v3842 = vadd.f32 %v3840, %v3841
        %v3843 = vsel %vm1354, %v3787, 0.0
        %v3844 = vadd.f32 %v3842, %v3843
        %v3845 = vsel %vm1354, %v3788, 0.0
        %v3846 = vadd.f32 %v3844, %v3845
        %v3847 = vsel %vm1354, %v3789, 0.0
        %v3848 = vadd.f32 %v3846, %v3847
        %v3849 = vsel %vm1354, %v3790, 0.0
        %v3850 = vadd.f32 %v3848, %v3849
        %v3851 = vsel %vm1354, %v3791, 0.0
        %v3852 = vadd.f32 %v3850, %v3851
        %v3853 = vsel %vm1354, %v3792, 0.0
        %v3854 = vadd.f32 %v3852, %v3853
        %v3855 = vsel %vm1354, %v3793, 0.0
        %v3856 = vadd.f32 %v3854, %v3855
        %v3857 = vadd.f32 %v3856, %v207
        %v3858 = vmul.f32 %v1711, %v3153
        %v3859 = vadd.f32 %v3858, %v1718
        %v3860 = vadd.f32 %v3859, %v3761
        %v3861 = vadd.f32 %v1726, %v3857
        %v3862 = vadd.f32 %v3861, 1e-08
        %v3863 = vrcp.pop %v3862
        %v3864 = vmul.f32 %v3860, %v3863
        %3865 = vxpose.xlu0.b32.start [1/16] %v3864, 128
        %3866 = vxpose.xlu0.b32.cont [2/16] 0.0, 128
        %3867 = vxpose.xlu0.b32.cont [3/16] 0.0, 128
        %3868 = vxpose.xlu0.b32.cont [4/16] 0.0, 128
        %3869 = vxpose.xlu0.b32.cont [5/16] 0.0, 128
        %3870 = vxpose.xlu0.b32.cont [6/16] 0.0, 128
        %3871 = vxpose.xlu0.b32.cont [7/16] 0.0, 128
        %3872 = vxpose.xlu0.b32.cont [8/16] 0.0, 128
        %3873 = vxpose.xlu0.b32.cont [9/16] 0.0, 128
        %3874 = vxpose.xlu0.b32.cont [10/16] 0.0, 128
        %3875 = vxpose.xlu0.b32.cont [11/16] 0.0, 128
        %3876 = vxpose.xlu0.b32.cont [12/16] 0.0, 128
        %3877 = vxpose.xlu0.b32.cont [13/16] 0.0, 128
        %3878 = vxpose.xlu0.b32.cont [14/16] 0.0, 128
        %3879 = vxpose.xlu0.b32.cont [15/16] 0.0, 128
        %3880 = vxpose.xlu0.b32.end [16/16] 0.0, 128
        %v3881 = vpop.trf.xlu0
        %v3882 = vpop.trf.xlu0
        %v3883 = vpop.trf.xlu0
        %v3884 = vpop.trf.xlu0
        %v3885 = vpop.trf.xlu0
        %v3886 = vpop.trf.xlu0
        %v3887 = vpop.trf.xlu0
        %v3888 = vpop.trf.xlu0
        %v3889 = vpop.trf.xlu0
        %v3890 = vpop.trf.xlu0
        %v3891 = vpop.trf.xlu0
        %v3892 = vpop.trf.xlu0
        %v3893 = vpop.trf.xlu0
        %v3894 = vpop.trf.xlu0
        %v3895 = vpop.trf.xlu0
        %v3896 = vpop.trf.xlu0
        %v3897 = vlaneseq
        %v3898 = vshrl.u32 %v3897, 7
        %v3899 = vsub.s32 0, %v3898
        %v3900 = vrot.slane %v3881, %v3899
        %3902 = vbcast.lane.b32.xlu0 %v3900, 256
        %v3903 = vpop.permute.xlu0 %3902
        %v3904 = vlaneseq
        %v3905 = vshrl.u32 %v3904, 7
        %v3906 = vsub.s32 1, %v3905
        %v3907 = vrot.slane %v3881, %v3906
        %3909 = vbcast.lane.b32.xlu0 %v3907, 256
        %v3910 = vpop.permute.xlu0 %3909
        %v3911 = vlaneseq
        %v3912 = vshrl.u32 %v3911, 7
        %v3913 = vsub.s32 2, %v3912
        %v3914 = vrot.slane %v3881, %v3913
        %3916 = vbcast.lane.b32.xlu0 %v3914, 256
        %v3917 = vpop.permute.xlu0 %3916
        %v3918 = vlaneseq
        %v3919 = vshrl.u32 %v3918, 7
        %v3920 = vsub.s32 3, %v3919
        %v3921 = vrot.slane %v3881, %v3920
        %3923 = vbcast.lane.b32.xlu0 %v3921, 256
        %v3924 = vpop.permute.xlu0 %3923
        %v3925 = vlaneseq
        %v3926 = vshrl.u32 %v3925, 7
        %v3927 = vsub.s32 4, %v3926
        %v3928 = vrot.slane %v3881, %v3927
        %3930 = vbcast.lane.b32.xlu0 %v3928, 256
        %v3931 = vpop.permute.xlu0 %3930
        %v3932 = vlaneseq
        %v3933 = vshrl.u32 %v3932, 7
        %v3934 = vsub.s32 5, %v3933
        %v3935 = vrot.slane %v3881, %v3934
        %3937 = vbcast.lane.b32.xlu0 %v3935, 256
        %v3938 = vpop.permute.xlu0 %3937
        %v3939 = vlaneseq
        %v3940 = vshrl.u32 %v3939, 7
        %v3941 = vsub.s32 6, %v3940
        %v3942 = vrot.slane %v3881, %v3941
        %3944 = vbcast.lane.b32.xlu0 %v3942, 256
        %v3945 = vpop.permute.xlu0 %3944
        %v3946 = vlaneseq
        %v3947 = vshrl.u32 %v3946, 7
        %v3948 = vsub.s32 7, %v3947
        %v3949 = vrot.slane %v3881, %v3948
        %3951 = vbcast.lane.b32.xlu0 %v3949, 256
        %v3952 = vpop.permute.xlu0 %3951
        %v3953 = vlaneseq
        %v3954 = vshrl.u32 %v3953, 7
        %v3955 = vsub.s32 0, %v3954
        %v3956 = vrot.slane %v3882, %v3955
        %3958 = vbcast.lane.b32.xlu0 %v3956, 256
        %v3959 = vpop.permute.xlu0 %3958
        %v3960 = vlaneseq
        %v3961 = vshrl.u32 %v3960, 7
        %v3962 = vsub.s32 1, %v3961
        %v3963 = vrot.slane %v3882, %v3962
        %3965 = vbcast.lane.b32.xlu0 %v3963, 256
        %v3966 = vpop.permute.xlu0 %3965
        %v3967 = vlaneseq
        %v3968 = vshrl.u32 %v3967, 7
        %v3969 = vsub.s32 2, %v3968
        %v3970 = vrot.slane %v3882, %v3969
        %3972 = vbcast.lane.b32.xlu0 %v3970, 256
        %v3973 = vpop.permute.xlu0 %3972
        %v3974 = vlaneseq
        %v3975 = vshrl.u32 %v3974, 7
        %v3976 = vsub.s32 3, %v3975
        %v3977 = vrot.slane %v3882, %v3976
        %3979 = vbcast.lane.b32.xlu0 %v3977, 256
        %v3980 = vpop.permute.xlu0 %3979
        %v3981 = vlaneseq
        %v3982 = vshrl.u32 %v3981, 7
        %v3983 = vsub.s32 4, %v3982
        %v3984 = vrot.slane %v3882, %v3983
        %3986 = vbcast.lane.b32.xlu0 %v3984, 256
        %v3987 = vpop.permute.xlu0 %3986
        %v3988 = vlaneseq
        %v3989 = vshrl.u32 %v3988, 7
        %v3990 = vsub.s32 5, %v3989
        %v3991 = vrot.slane %v3882, %v3990
        %3993 = vbcast.lane.b32.xlu0 %v3991, 256
        %v3994 = vpop.permute.xlu0 %3993
        %v3995 = vlaneseq
        %v3996 = vshrl.u32 %v3995, 7
        %v3997 = vsub.s32 6, %v3996
        %v3998 = vrot.slane %v3882, %v3997
        %4000 = vbcast.lane.b32.xlu0 %v3998, 256
        %v4001 = vpop.permute.xlu0 %4000
        %v4002 = vlaneseq
        %v4003 = vshrl.u32 %v4002, 7
        %v4004 = vsub.s32 7, %v4003
        %v4005 = vrot.slane %v3882, %v4004
        %4007 = vbcast.lane.b32.xlu0 %v4005, 256
        %v4008 = vpop.permute.xlu0 %4007
        %v4009 = vlaneseq
        %v4010 = vshrl.u32 %v4009, 7
        %v4011 = vsub.s32 0, %v4010
        %v4012 = vrot.slane %v3883, %v4011
        %4014 = vbcast.lane.b32.xlu0 %v4012, 256
        %v4015 = vpop.permute.xlu0 %4014
        %v4016 = vlaneseq
        %v4017 = vshrl.u32 %v4016, 7
        %v4018 = vsub.s32 1, %v4017
        %v4019 = vrot.slane %v3883, %v4018
        %4021 = vbcast.lane.b32.xlu0 %v4019, 256
        %v4022 = vpop.permute.xlu0 %4021
        %v4023 = vlaneseq
        %v4024 = vshrl.u32 %v4023, 7
        %v4025 = vsub.s32 2, %v4024
        %v4026 = vrot.slane %v3883, %v4025
        %4028 = vbcast.lane.b32.xlu0 %v4026, 256
        %v4029 = vpop.permute.xlu0 %4028
        %v4030 = vlaneseq
        %v4031 = vshrl.u32 %v4030, 7
        %v4032 = vsub.s32 3, %v4031
        %v4033 = vrot.slane %v3883, %v4032
        %4035 = vbcast.lane.b32.xlu0 %v4033, 256
        %v4036 = vpop.permute.xlu0 %4035
        %v4037 = vlaneseq
        %v4038 = vshrl.u32 %v4037, 7
        %v4039 = vsub.s32 4, %v4038
        %v4040 = vrot.slane %v3883, %v4039
        %4042 = vbcast.lane.b32.xlu0 %v4040, 256
        %v4043 = vpop.permute.xlu0 %4042
        %v4044 = vlaneseq
        %v4045 = vshrl.u32 %v4044, 7
        %v4046 = vsub.s32 5, %v4045
        %v4047 = vrot.slane %v3883, %v4046
        %4049 = vbcast.lane.b32.xlu0 %v4047, 256
        %v4050 = vpop.permute.xlu0 %4049
        %v4051 = vlaneseq
        %v4052 = vshrl.u32 %v4051, 7
        %v4053 = vsub.s32 6, %v4052
        %v4054 = vrot.slane %v3883, %v4053
        %4056 = vbcast.lane.b32.xlu0 %v4054, 256
        %v4057 = vpop.permute.xlu0 %4056
        %v4058 = vlaneseq
        %v4059 = vshrl.u32 %v4058, 7
        %v4060 = vsub.s32 7, %v4059
        %v4061 = vrot.slane %v3883, %v4060
        %4063 = vbcast.lane.b32.xlu0 %v4061, 256
        %v4064 = vpop.permute.xlu0 %4063
        %v4065 = vlaneseq
        %v4066 = vshrl.u32 %v4065, 7
        %v4067 = vsub.s32 0, %v4066
        %v4068 = vrot.slane %v3884, %v4067
        %4070 = vbcast.lane.b32.xlu0 %v4068, 256
        %v4071 = vpop.permute.xlu0 %4070
        %v4072 = vlaneseq
        %v4073 = vshrl.u32 %v4072, 7
        %v4074 = vsub.s32 1, %v4073
        %v4075 = vrot.slane %v3884, %v4074
        %4077 = vbcast.lane.b32.xlu0 %v4075, 256
        %v4078 = vpop.permute.xlu0 %4077
        %v4079 = vlaneseq
        %v4080 = vshrl.u32 %v4079, 7
        %v4081 = vsub.s32 2, %v4080
        %v4082 = vrot.slane %v3884, %v4081
        %4084 = vbcast.lane.b32.xlu0 %v4082, 256
        %v4085 = vpop.permute.xlu0 %4084
        %v4086 = vlaneseq
        %v4087 = vshrl.u32 %v4086, 7
        %v4088 = vsub.s32 3, %v4087
        %v4089 = vrot.slane %v3884, %v4088
        %4091 = vbcast.lane.b32.xlu0 %v4089, 256
        %v4092 = vpop.permute.xlu0 %4091
        %v4093 = vlaneseq
        %v4094 = vshrl.u32 %v4093, 7
        %v4095 = vsub.s32 4, %v4094
        %v4096 = vrot.slane %v3884, %v4095
        %4098 = vbcast.lane.b32.xlu0 %v4096, 256
        %v4099 = vpop.permute.xlu0 %4098
        %v4100 = vlaneseq
        %v4101 = vshrl.u32 %v4100, 7
        %v4102 = vsub.s32 5, %v4101
        %v4103 = vrot.slane %v3884, %v4102
        %4105 = vbcast.lane.b32.xlu0 %v4103, 256
        %v4106 = vpop.permute.xlu0 %4105
        %v4107 = vlaneseq
        %v4108 = vshrl.u32 %v4107, 7
        %v4109 = vsub.s32 6, %v4108
        %v4110 = vrot.slane %v3884, %v4109
        %4112 = vbcast.lane.b32.xlu0 %v4110, 256
        %v4113 = vpop.permute.xlu0 %4112
        %v4114 = vlaneseq
        %v4115 = vshrl.u32 %v4114, 7
        %v4116 = vsub.s32 7, %v4115
        %v4117 = vrot.slane %v3884, %v4116
        %4119 = vbcast.lane.b32.xlu0 %v4117, 256
        %v4120 = vpop.permute.xlu0 %4119
        %v4121 = vsub.f32 %v3903, %v525
        %v4122 = vsub.f32 %v3910, %v529
        %v4123 = vsub.f32 %v3917, %v533
        %v4124 = vsub.f32 %v3924, %v537
        %v4125 = vsub.f32 %v3931, %v541
        %v4126 = vsub.f32 %v3938, %v545
        %v4127 = vsub.f32 %v3945, %v549
        %v4128 = vsub.f32 %v3952, %v553
        %v4129 = vsub.f32 %v3959, %v557
        %v4130 = vsub.f32 %v3966, %v561
        %v4131 = vsub.f32 %v3973, %v565
        %v4132 = vsub.f32 %v3980, %v569
        %v4133 = vsub.f32 %v3987, %v573
        %v4134 = vsub.f32 %v3994, %v577
        %v4135 = vsub.f32 %v4001, %v581
        %v4136 = vsub.f32 %v4008, %v585
        %v4137 = vsub.f32 %v4015, %v589
        %v4138 = vsub.f32 %v4022, %v593
        %v4139 = vsub.f32 %v4029, %v597
        %v4140 = vsub.f32 %v4036, %v601
        %v4141 = vsub.f32 %v4043, %v605
        %v4142 = vsub.f32 %v4050, %v609
        %v4143 = vsub.f32 %v4057, %v613
        %v4144 = vsub.f32 %v4064, %v617
        %v4145 = vsub.f32 %v4071, %v621
        %v4146 = vsub.f32 %v4078, %v625
        %v4147 = vsub.f32 %v4085, %v629
        %v4148 = vsub.f32 %v4092, %v633
        %v4149 = vsub.f32 %v4099, %v637
        %v4150 = vsub.f32 %v4106, %v641
        %v4151 = vsub.f32 %v4113, %v645
        %v4152 = vsub.f32 %v4120, %v649
        %v4153 = vmul.f32 %v4121, %v749
        %v4154 = vmul.f32 %v4122, %v753
        %v4155 = vmul.f32 %v4123, %v757
        %v4156 = vmul.f32 %v4124, %v761
        %v4157 = vmul.f32 %v4125, %v765
        %v4158 = vmul.f32 %v4126, %v769
        %v4159 = vmul.f32 %v4127, %v773
        %v4160 = vmul.f32 %v4128, %v777
        %v4161 = vmul.f32 %v4129, %v781
        %v4162 = vmul.f32 %v4130, %v785
        %v4163 = vmul.f32 %v4131, %v789
        %v4164 = vmul.f32 %v4132, %v793
        %v4165 = vmul.f32 %v4133, %v797
        %v4166 = vmul.f32 %v4134, %v801
        %v4167 = vmul.f32 %v4135, %v805
        %v4168 = vmul.f32 %v4136, %v809
        %v4169 = vmul.f32 %v4137, %v813
        %v4170 = vmul.f32 %v4138, %v817
        %v4171 = vmul.f32 %v4139, %v821
        %v4172 = vmul.f32 %v4140, %v825
        %v4173 = vmul.f32 %v4141, %v829
        %v4174 = vmul.f32 %v4142, %v833
        %v4175 = vmul.f32 %v4143, %v837
        %v4176 = vmul.f32 %v4144, %v841
        %v4177 = vmul.f32 %v4145, %v845
        %v4178 = vmul.f32 %v4146, %v849
        %v4179 = vmul.f32 %v4147, %v853
        %v4180 = vmul.f32 %v4148, %v857
        %v4181 = vmul.f32 %v4149, %v861
        %v4182 = vmul.f32 %v4150, %v865
        %v4183 = vmul.f32 %v4151, %v869
        %v4184 = vmul.f32 %v4152, %v873
        %v4185 = vxor.u32 %v4153, 2147483648
        %v4186 = vxor.u32 %v4154, 2147483648
        %v4187 = vxor.u32 %v4155, 2147483648
        %v4188 = vxor.u32 %v4156, 2147483648
        %v4189 = vxor.u32 %v4157, 2147483648
        %v4190 = vxor.u32 %v4158, 2147483648
        %v4191 = vxor.u32 %v4159, 2147483648
        %v4192 = vxor.u32 %v4160, 2147483648
        %v4193 = vxor.u32 %v4161, 2147483648
        %v4194 = vxor.u32 %v4162, 2147483648
        %v4195 = vxor.u32 %v4163, 2147483648
        %v4196 = vxor.u32 %v4164, 2147483648
        %v4197 = vxor.u32 %v4165, 2147483648
        %v4198 = vxor.u32 %v4166, 2147483648
        %v4199 = vxor.u32 %v4167, 2147483648
        %v4200 = vxor.u32 %v4168, 2147483648
        %v4201 = vxor.u32 %v4169, 2147483648
        %v4202 = vxor.u32 %v4170, 2147483648
        %v4203 = vxor.u32 %v4171, 2147483648
        %v4204 = vxor.u32 %v4172, 2147483648
        %v4205 = vxor.u32 %v4173, 2147483648
        %v4206 = vxor.u32 %v4174, 2147483648
        %v4207 = vxor.u32 %v4175, 2147483648
        %v4208 = vxor.u32 %v4176, 2147483648
        %v4209 = vxor.u32 %v4177, 2147483648
        %v4210 = vxor.u32 %v4178, 2147483648
        %v4211 = vxor.u32 %v4179, 2147483648
        %v4212 = vxor.u32 %v4180, 2147483648
        %v4213 = vxor.u32 %v4181, 2147483648
        %v4214 = vxor.u32 %v4182, 2147483648
        %v4215 = vxor.u32 %v4183, 2147483648
        %v4216 = vxor.u32 %v4184, 2147483648
        %v4217 = vmul.f32 %v4185, 1.442695
        %v4218 = vpow.pop %v4217
        %v4219 = vmul.f32 %v4186, 1.442695
        %v4220 = vpow.pop %v4219
        %v4221 = vmul.f32 %v4187, 1.442695
        %v4222 = vpow.pop %v4221
        %v4223 = vmul.f32 %v4188, 1.442695
        %v4224 = vpow.pop %v4223
        %v4225 = vmul.f32 %v4189, 1.442695
        %v4226 = vpow.pop %v4225
        %v4227 = vmul.f32 %v4190, 1.442695
        %v4228 = vpow.pop %v4227
        %v4229 = vmul.f32 %v4191, 1.442695
        %v4230 = vpow.pop %v4229
        %v4231 = vmul.f32 %v4192, 1.442695
        %v4232 = vpow.pop %v4231
        %v4233 = vmul.f32 %v4193, 1.442695
        %v4234 = vpow.pop %v4233
        %v4235 = vmul.f32 %v4194, 1.442695
        %v4236 = vpow.pop %v4235
        %v4237 = vmul.f32 %v4195, 1.442695
        %v4238 = vpow.pop %v4237
        %v4239 = vmul.f32 %v4196, 1.442695
        %v4240 = vpow.pop %v4239
        %v4241 = vmul.f32 %v4197, 1.442695
        %v4242 = vpow.pop %v4241
        %v4243 = vmul.f32 %v4198, 1.442695
        %v4244 = vpow.pop %v4243
        %v4245 = vmul.f32 %v4199, 1.442695
        %v4246 = vpow.pop %v4245
        %v4247 = vmul.f32 %v4200, 1.442695
        %v4248 = vpow.pop %v4247
        %v4249 = vmul.f32 %v4201, 1.442695
        %v4250 = vpow.pop %v4249
        %v4251 = vmul.f32 %v4202, 1.442695
        %v4252 = vpow.pop %v4251
        %v4253 = vmul.f32 %v4203, 1.442695
        %v4254 = vpow.pop %v4253
        %v4255 = vmul.f32 %v4204, 1.442695
        %v4256 = vpow.pop %v4255
        %v4257 = vmul.f32 %v4205, 1.442695
        %v4258 = vpow.pop %v4257
        %v4259 = vmul.f32 %v4206, 1.442695
        %v4260 = vpow.pop %v4259
        %v4261 = vmul.f32 %v4207, 1.442695
        %v4262 = vpow.pop %v4261
        %v4263 = vmul.f32 %v4208, 1.442695
        %v4264 = vpow.pop %v4263
        %v4265 = vmul.f32 %v4209, 1.442695
        %v4266 = vpow.pop %v4265
        %v4267 = vmul.f32 %v4210, 1.442695
        %v4268 = vpow.pop %v4267
        %v4269 = vmul.f32 %v4211, 1.442695
        %v4270 = vpow.pop %v4269
        %v4271 = vmul.f32 %v4212, 1.442695
        %v4272 = vpow.pop %v4271
        %v4273 = vmul.f32 %v4213, 1.442695
        %v4274 = vpow.pop %v4273
        %v4275 = vmul.f32 %v4214, 1.442695
        %v4276 = vpow.pop %v4275
        %v4277 = vmul.f32 %v4215, 1.442695
        %v4278 = vpow.pop %v4277
        %v4279 = vmul.f32 %v4216, 1.442695
        %v4280 = vpow.pop %v4279
        %v4281 = vadd.f32 %v4218, 1.0
        %v4282 = vadd.f32 %v4220, 1.0
        %v4283 = vadd.f32 %v4222, 1.0
        %v4284 = vadd.f32 %v4224, 1.0
        %v4285 = vadd.f32 %v4226, 1.0
        %v4286 = vadd.f32 %v4228, 1.0
        %v4287 = vadd.f32 %v4230, 1.0
        %v4288 = vadd.f32 %v4232, 1.0
        %v4289 = vadd.f32 %v4234, 1.0
        %v4290 = vadd.f32 %v4236, 1.0
        %v4291 = vadd.f32 %v4238, 1.0
        %v4292 = vadd.f32 %v4240, 1.0
        %v4293 = vadd.f32 %v4242, 1.0
        %v4294 = vadd.f32 %v4244, 1.0
        %v4295 = vadd.f32 %v4246, 1.0
        %v4296 = vadd.f32 %v4248, 1.0
        %v4297 = vadd.f32 %v4250, 1.0
        %v4298 = vadd.f32 %v4252, 1.0
        %v4299 = vadd.f32 %v4254, 1.0
        %v4300 = vadd.f32 %v4256, 1.0
        %v4301 = vadd.f32 %v4258, 1.0
        %v4302 = vadd.f32 %v4260, 1.0
        %v4303 = vadd.f32 %v4262, 1.0
        %v4304 = vadd.f32 %v4264, 1.0
        %v4305 = vadd.f32 %v4266, 1.0
        %v4306 = vadd.f32 %v4268, 1.0
        %v4307 = vadd.f32 %v4270, 1.0
        %v4308 = vadd.f32 %v4272, 1.0
        %v4309 = vadd.f32 %v4274, 1.0
        %v4310 = vadd.f32 %v4276, 1.0
        %v4311 = vadd.f32 %v4278, 1.0
        %v4312 = vadd.f32 %v4280, 1.0
        %v4313 = vrcp.pop %v4281
        %v4314 = vmul.f32 1.0, %v4313
        %v4315 = vrcp.pop %v4282
        %v4316 = vmul.f32 1.0, %v4315
        %v4317 = vrcp.pop %v4283
        %v4318 = vmul.f32 1.0, %v4317
        %v4319 = vrcp.pop %v4284
        %v4320 = vmul.f32 1.0, %v4319
        %v4321 = vrcp.pop %v4285
        %v4322 = vmul.f32 1.0, %v4321
        %v4323 = vrcp.pop %v4286
        %v4324 = vmul.f32 1.0, %v4323
        %v4325 = vrcp.pop %v4287
        %v4326 = vmul.f32 1.0, %v4325
        %v4327 = vrcp.pop %v4288
        %v4328 = vmul.f32 1.0, %v4327
        %v4329 = vrcp.pop %v4289
        %v4330 = vmul.f32 1.0, %v4329
        %v4331 = vrcp.pop %v4290
        %v4332 = vmul.f32 1.0, %v4331
        %v4333 = vrcp.pop %v4291
        %v4334 = vmul.f32 1.0, %v4333
        %v4335 = vrcp.pop %v4292
        %v4336 = vmul.f32 1.0, %v4335
        %v4337 = vrcp.pop %v4293
        %v4338 = vmul.f32 1.0, %v4337
        %v4339 = vrcp.pop %v4294
        %v4340 = vmul.f32 1.0, %v4339
        %v4341 = vrcp.pop %v4295
        %v4342 = vmul.f32 1.0, %v4341
        %v4343 = vrcp.pop %v4296
        %v4344 = vmul.f32 1.0, %v4343
        %v4345 = vrcp.pop %v4297
        %v4346 = vmul.f32 1.0, %v4345
        %v4347 = vrcp.pop %v4298
        %v4348 = vmul.f32 1.0, %v4347
        %v4349 = vrcp.pop %v4299
        %v4350 = vmul.f32 1.0, %v4349
        %v4351 = vrcp.pop %v4300
        %v4352 = vmul.f32 1.0, %v4351
        %v4353 = vrcp.pop %v4301
        %v4354 = vmul.f32 1.0, %v4353
        %v4355 = vrcp.pop %v4302
        %v4356 = vmul.f32 1.0, %v4355
        %v4357 = vrcp.pop %v4303
        %v4358 = vmul.f32 1.0, %v4357
        %v4359 = vrcp.pop %v4304
        %v4360 = vmul.f32 1.0, %v4359
        %v4361 = vrcp.pop %v4305
        %v4362 = vmul.f32 1.0, %v4361
        %v4363 = vrcp.pop %v4306
        %v4364 = vmul.f32 1.0, %v4363
        %v4365 = vrcp.pop %v4307
        %v4366 = vmul.f32 1.0, %v4365
        %v4367 = vrcp.pop %v4308
        %v4368 = vmul.f32 1.0, %v4367
        %v4369 = vrcp.pop %v4309
        %v4370 = vmul.f32 1.0, %v4369
        %v4371 = vrcp.pop %v4310
        %v4372 = vmul.f32 1.0, %v4371
        %v4373 = vrcp.pop %v4311
        %v4374 = vmul.f32 1.0, %v4373
        %v4375 = vrcp.pop %v4312
        %v4376 = vmul.f32 1.0, %v4375
        %v4377 = vmul.f32 %v1165, %v4314
        %v4378 = vmul.f32 %v1169, %v4316
        %v4379 = vmul.f32 %v1173, %v4318
        %v4380 = vmul.f32 %v1177, %v4320
        %v4381 = vmul.f32 %v1181, %v4322
        %v4382 = vmul.f32 %v1185, %v4324
        %v4383 = vmul.f32 %v1189, %v4326
        %v4384 = vmul.f32 %v1193, %v4328
        %v4385 = vmul.f32 %v1197, %v4330
        %v4386 = vmul.f32 %v1201, %v4332
        %v4387 = vmul.f32 %v1205, %v4334
        %v4388 = vmul.f32 %v1209, %v4336
        %v4389 = vmul.f32 %v1213, %v4338
        %v4390 = vmul.f32 %v1217, %v4340
        %v4391 = vmul.f32 %v1221, %v4342
        %v4392 = vmul.f32 %v1225, %v4344
        %v4393 = vmul.f32 %v1229, %v4346
        %v4394 = vmul.f32 %v1233, %v4348
        %v4395 = vmul.f32 %v1237, %v4350
        %v4396 = vmul.f32 %v1241, %v4352
        %v4397 = vmul.f32 %v1245, %v4354
        %v4398 = vmul.f32 %v1249, %v4356
        %v4399 = vmul.f32 %v1253, %v4358
        %v4400 = vmul.f32 %v1257, %v4360
        %v4401 = vmul.f32 %v1261, %v4362
        %v4402 = vmul.f32 %v1265, %v4364
        %v4403 = vmul.f32 %v1269, %v4366
        %v4404 = vmul.f32 %v1273, %v4368
        %v4405 = vmul.f32 %v1277, %v4370
        %v4406 = vmul.f32 %v1281, %v4372
        %v4407 = vmul.f32 %v1285, %v4374
        %v4408 = vmul.f32 %v1289, %v4376
        %v4409 = vsel %vm1354, %v4377, 0.0
        %v4410 = vsel %vm1354, %v4378, 0.0
        %v4411 = vadd.f32 %v4409, %v4410
        %v4412 = vsel %vm1354, %v4379, 0.0
        %v4413 = vadd.f32 %v4411, %v4412
        %v4414 = vsel %vm1354, %v4380, 0.0
        %v4415 = vadd.f32 %v4413, %v4414
        %v4416 = vsel %vm1354, %v4381, 0.0
        %v4417 = vadd.f32 %v4415, %v4416
        %v4418 = vsel %vm1354, %v4382, 0.0
        %v4419 = vadd.f32 %v4417, %v4418
        %v4420 = vsel %vm1354, %v4383, 0.0
        %v4421 = vadd.f32 %v4419, %v4420
        %v4422 = vsel %vm1354, %v4384, 0.0
        %v4423 = vadd.f32 %v4421, %v4422
        %v4424 = vsel %vm1354, %v4385, 0.0
        %v4425 = vadd.f32 %v4423, %v4424
        %v4426 = vsel %vm1354, %v4386, 0.0
        %v4427 = vadd.f32 %v4425, %v4426
        %v4428 = vsel %vm1354, %v4387, 0.0
        %v4429 = vadd.f32 %v4427, %v4428
        %v4430 = vsel %vm1354, %v4388, 0.0
        %v4431 = vadd.f32 %v4429, %v4430
        %v4432 = vsel %vm1354, %v4389, 0.0
        %v4433 = vadd.f32 %v4431, %v4432
        %v4434 = vsel %vm1354, %v4390, 0.0
        %v4435 = vadd.f32 %v4433, %v4434
        %v4436 = vsel %vm1354, %v4391, 0.0
        %v4437 = vadd.f32 %v4435, %v4436
        %v4438 = vsel %vm1354, %v4392, 0.0
        %v4439 = vadd.f32 %v4437, %v4438
        %v4440 = vsel %vm1354, %v4393, 0.0
        %v4441 = vadd.f32 %v4439, %v4440
        %v4442 = vsel %vm1354, %v4394, 0.0
        %v4443 = vadd.f32 %v4441, %v4442
        %v4444 = vsel %vm1354, %v4395, 0.0
        %v4445 = vadd.f32 %v4443, %v4444
        %v4446 = vsel %vm1354, %v4396, 0.0
        %v4447 = vadd.f32 %v4445, %v4446
        %v4448 = vsel %vm1354, %v4397, 0.0
        %v4449 = vadd.f32 %v4447, %v4448
        %v4450 = vsel %vm1354, %v4398, 0.0
        %v4451 = vadd.f32 %v4449, %v4450
        %v4452 = vsel %vm1354, %v4399, 0.0
        %v4453 = vadd.f32 %v4451, %v4452
        %v4454 = vsel %vm1354, %v4400, 0.0
        %v4455 = vadd.f32 %v4453, %v4454
        %v4456 = vsel %vm1354, %v4401, 0.0
        %v4457 = vadd.f32 %v4455, %v4456
        %v4458 = vsel %vm1354, %v4402, 0.0
        %v4459 = vadd.f32 %v4457, %v4458
        %v4460 = vsel %vm1354, %v4403, 0.0
        %v4461 = vadd.f32 %v4459, %v4460
        %v4462 = vsel %vm1354, %v4404, 0.0
        %v4463 = vadd.f32 %v4461, %v4462
        %v4464 = vsel %vm1354, %v4405, 0.0
        %v4465 = vadd.f32 %v4463, %v4464
        %v4466 = vsel %vm1354, %v4406, 0.0
        %v4467 = vadd.f32 %v4465, %v4466
        %v4468 = vsel %vm1354, %v4407, 0.0
        %v4469 = vadd.f32 %v4467, %v4468
        %v4470 = vsel %vm1354, %v4408, 0.0
        %v4471 = vadd.f32 %v4469, %v4470
        %v4472 = vadd.f32 %v4471, %v205
        %v4473 = vmul.f32 %v1454, %v4314
        %v4474 = vmul.f32 %v1458, %v4316
        %v4475 = vmul.f32 %v1462, %v4318
        %v4476 = vmul.f32 %v1466, %v4320
        %v4477 = vmul.f32 %v1470, %v4322
        %v4478 = vmul.f32 %v1474, %v4324
        %v4479 = vmul.f32 %v1478, %v4326
        %v4480 = vmul.f32 %v1482, %v4328
        %v4481 = vmul.f32 %v1486, %v4330
        %v4482 = vmul.f32 %v1490, %v4332
        %v4483 = vmul.f32 %v1494, %v4334
        %v4484 = vmul.f32 %v1498, %v4336
        %v4485 = vmul.f32 %v1502, %v4338
        %v4486 = vmul.f32 %v1506, %v4340
        %v4487 = vmul.f32 %v1510, %v4342
        %v4488 = vmul.f32 %v1514, %v4344
        %v4489 = vmul.f32 %v1518, %v4346
        %v4490 = vmul.f32 %v1522, %v4348
        %v4491 = vmul.f32 %v1526, %v4350
        %v4492 = vmul.f32 %v1530, %v4352
        %v4493 = vmul.f32 %v1534, %v4354
        %v4494 = vmul.f32 %v1538, %v4356
        %v4495 = vmul.f32 %v1542, %v4358
        %v4496 = vmul.f32 %v1546, %v4360
        %v4497 = vmul.f32 %v1550, %v4362
        %v4498 = vmul.f32 %v1554, %v4364
        %v4499 = vmul.f32 %v1558, %v4366
        %v4500 = vmul.f32 %v1562, %v4368
        %v4501 = vmul.f32 %v1566, %v4370
        %v4502 = vmul.f32 %v1570, %v4372
        %v4503 = vmul.f32 %v1574, %v4374
        %v4504 = vmul.f32 %v1578, %v4376
        %v4505 = vsel %vm1354, %v4473, 0.0
        %v4506 = vsel %vm1354, %v4474, 0.0
        %v4507 = vadd.f32 %v4505, %v4506
        %v4508 = vsel %vm1354, %v4475, 0.0
        %v4509 = vadd.f32 %v4507, %v4508
        %v4510 = vsel %vm1354, %v4476, 0.0
        %v4511 = vadd.f32 %v4509, %v4510
        %v4512 = vsel %vm1354, %v4477, 0.0
        %v4513 = vadd.f32 %v4511, %v4512
        %v4514 = vsel %vm1354, %v4478, 0.0
        %v4515 = vadd.f32 %v4513, %v4514
        %v4516 = vsel %vm1354, %v4479, 0.0
        %v4517 = vadd.f32 %v4515, %v4516
        %v4518 = vsel %vm1354, %v4480, 0.0
        %v4519 = vadd.f32 %v4517, %v4518
        %v4520 = vsel %vm1354, %v4481, 0.0
        %v4521 = vadd.f32 %v4519, %v4520
        %v4522 = vsel %vm1354, %v4482, 0.0
        %v4523 = vadd.f32 %v4521, %v4522
        %v4524 = vsel %vm1354, %v4483, 0.0
        %v4525 = vadd.f32 %v4523, %v4524
        %v4526 = vsel %vm1354, %v4484, 0.0
        %v4527 = vadd.f32 %v4525, %v4526
        %v4528 = vsel %vm1354, %v4485, 0.0
        %v4529 = vadd.f32 %v4527, %v4528
        %v4530 = vsel %vm1354, %v4486, 0.0
        %v4531 = vadd.f32 %v4529, %v4530
        %v4532 = vsel %vm1354, %v4487, 0.0
        %v4533 = vadd.f32 %v4531, %v4532
        %v4534 = vsel %vm1354, %v4488, 0.0
        %v4535 = vadd.f32 %v4533, %v4534
        %v4536 = vsel %vm1354, %v4489, 0.0
        %v4537 = vadd.f32 %v4535, %v4536
        %v4538 = vsel %vm1354, %v4490, 0.0
        %v4539 = vadd.f32 %v4537, %v4538
        %v4540 = vsel %vm1354, %v4491, 0.0
        %v4541 = vadd.f32 %v4539, %v4540
        %v4542 = vsel %vm1354, %v4492, 0.0
        %v4543 = vadd.f32 %v4541, %v4542
        %v4544 = vsel %vm1354, %v4493, 0.0
        %v4545 = vadd.f32 %v4543, %v4544
        %v4546 = vsel %vm1354, %v4494, 0.0
        %v4547 = vadd.f32 %v4545, %v4546
        %v4548 = vsel %vm1354, %v4495, 0.0
        %v4549 = vadd.f32 %v4547, %v4548
        %v4550 = vsel %vm1354, %v4496, 0.0
        %v4551 = vadd.f32 %v4549, %v4550
        %v4552 = vsel %vm1354, %v4497, 0.0
        %v4553 = vadd.f32 %v4551, %v4552
        %v4554 = vsel %vm1354, %v4498, 0.0
        %v4555 = vadd.f32 %v4553, %v4554
        %v4556 = vsel %vm1354, %v4499, 0.0
        %v4557 = vadd.f32 %v4555, %v4556
        %v4558 = vsel %vm1354, %v4500, 0.0
        %v4559 = vadd.f32 %v4557, %v4558
        %v4560 = vsel %vm1354, %v4501, 0.0
        %v4561 = vadd.f32 %v4559, %v4560
        %v4562 = vsel %vm1354, %v4502, 0.0
        %v4563 = vadd.f32 %v4561, %v4562
        %v4564 = vsel %vm1354, %v4503, 0.0
        %v4565 = vadd.f32 %v4563, %v4564
        %v4566 = vsel %vm1354, %v4504, 0.0
        %v4567 = vadd.f32 %v4565, %v4566
        %v4568 = vadd.f32 %v4567, %v207
        %v4569 = vmul.f32 %v1711, %v3864
        %v4570 = vadd.f32 %v4569, %v1718
        %v4571 = vadd.f32 %v4570, %v4472
        %v4572 = vadd.f32 %v1726, %v4568
        %v4573 = vadd.f32 %v4572, 1e-08
        %v4574 = vrcp.pop %v4573
        %v4575 = vmul.f32 %v4571, %v4574
        %4576 = vxpose.xlu0.b32.start [1/16] %v4575, 128
        %4577 = vxpose.xlu0.b32.cont [2/16] 0.0, 128
        %4578 = vxpose.xlu0.b32.cont [3/16] 0.0, 128
        %4579 = vxpose.xlu0.b32.cont [4/16] 0.0, 128
        %4580 = vxpose.xlu0.b32.cont [5/16] 0.0, 128
        %4581 = vxpose.xlu0.b32.cont [6/16] 0.0, 128
        %4582 = vxpose.xlu0.b32.cont [7/16] 0.0, 128
        %4583 = vxpose.xlu0.b32.cont [8/16] 0.0, 128
        %4584 = vxpose.xlu0.b32.cont [9/16] 0.0, 128
        %4585 = vxpose.xlu0.b32.cont [10/16] 0.0, 128
        %4586 = vxpose.xlu0.b32.cont [11/16] 0.0, 128
        %4587 = vxpose.xlu0.b32.cont [12/16] 0.0, 128
        %4588 = vxpose.xlu0.b32.cont [13/16] 0.0, 128
        %4589 = vxpose.xlu0.b32.cont [14/16] 0.0, 128
        %4590 = vxpose.xlu0.b32.cont [15/16] 0.0, 128
        %4591 = vxpose.xlu0.b32.end [16/16] 0.0, 128
        %v4592 = vpop.trf.xlu0
        %v4593 = vpop.trf.xlu0
        %v4594 = vpop.trf.xlu0
        %v4595 = vpop.trf.xlu0
        %v4596 = vpop.trf.xlu0
        %v4597 = vpop.trf.xlu0
        %v4598 = vpop.trf.xlu0
        %v4599 = vpop.trf.xlu0
        %v4600 = vpop.trf.xlu0
        %v4601 = vpop.trf.xlu0
        %v4602 = vpop.trf.xlu0
        %v4603 = vpop.trf.xlu0
        %v4604 = vpop.trf.xlu0
        %v4605 = vpop.trf.xlu0
        %v4606 = vpop.trf.xlu0
        %v4607 = vpop.trf.xlu0
        %v4608 = vlaneseq
        %v4609 = vshrl.u32 %v4608, 7
        %v4610 = vsub.s32 0, %v4609
        %v4611 = vrot.slane %v4592, %v4610
        %4613 = vbcast.lane.b32.xlu0 %v4611, 256
        %v4614 = vpop.permute.xlu0 %4613
        %v4615 = vlaneseq
        %v4616 = vshrl.u32 %v4615, 7
        %v4617 = vsub.s32 1, %v4616
        %v4618 = vrot.slane %v4592, %v4617
        %4620 = vbcast.lane.b32.xlu0 %v4618, 256
        %v4621 = vpop.permute.xlu0 %4620
        %v4622 = vlaneseq
        %v4623 = vshrl.u32 %v4622, 7
        %v4624 = vsub.s32 2, %v4623
        %v4625 = vrot.slane %v4592, %v4624
        %4627 = vbcast.lane.b32.xlu0 %v4625, 256
        %v4628 = vpop.permute.xlu0 %4627
        %v4629 = vlaneseq
        %v4630 = vshrl.u32 %v4629, 7
        %v4631 = vsub.s32 3, %v4630
        %v4632 = vrot.slane %v4592, %v4631
        %4634 = vbcast.lane.b32.xlu0 %v4632, 256
        %v4635 = vpop.permute.xlu0 %4634
        %v4636 = vlaneseq
        %v4637 = vshrl.u32 %v4636, 7
        %v4638 = vsub.s32 4, %v4637
        %v4639 = vrot.slane %v4592, %v4638
        %4641 = vbcast.lane.b32.xlu0 %v4639, 256
        %v4642 = vpop.permute.xlu0 %4641
        %v4643 = vlaneseq
        %v4644 = vshrl.u32 %v4643, 7
        %v4645 = vsub.s32 5, %v4644
        %v4646 = vrot.slane %v4592, %v4645
        %4648 = vbcast.lane.b32.xlu0 %v4646, 256
        %v4649 = vpop.permute.xlu0 %4648
        %v4650 = vlaneseq
        %v4651 = vshrl.u32 %v4650, 7
        %v4652 = vsub.s32 6, %v4651
        %v4653 = vrot.slane %v4592, %v4652
        %4655 = vbcast.lane.b32.xlu0 %v4653, 256
        %v4656 = vpop.permute.xlu0 %4655
        %v4657 = vlaneseq
        %v4658 = vshrl.u32 %v4657, 7
        %v4659 = vsub.s32 7, %v4658
        %v4660 = vrot.slane %v4592, %v4659
        %4662 = vbcast.lane.b32.xlu0 %v4660, 256
        %v4663 = vpop.permute.xlu0 %4662
        %v4664 = vlaneseq
        %v4665 = vshrl.u32 %v4664, 7
        %v4666 = vsub.s32 0, %v4665
        %v4667 = vrot.slane %v4593, %v4666
        %4669 = vbcast.lane.b32.xlu0 %v4667, 256
        %v4670 = vpop.permute.xlu0 %4669
        %v4671 = vlaneseq
        %v4672 = vshrl.u32 %v4671, 7
        %v4673 = vsub.s32 1, %v4672
        %v4674 = vrot.slane %v4593, %v4673
        %4676 = vbcast.lane.b32.xlu0 %v4674, 256
        %v4677 = vpop.permute.xlu0 %4676
        %v4678 = vlaneseq
        %v4679 = vshrl.u32 %v4678, 7
        %v4680 = vsub.s32 2, %v4679
        %v4681 = vrot.slane %v4593, %v4680
        %4683 = vbcast.lane.b32.xlu0 %v4681, 256
        %v4684 = vpop.permute.xlu0 %4683
        %v4685 = vlaneseq
        %v4686 = vshrl.u32 %v4685, 7
        %v4687 = vsub.s32 3, %v4686
        %v4688 = vrot.slane %v4593, %v4687
        %4690 = vbcast.lane.b32.xlu0 %v4688, 256
        %v4691 = vpop.permute.xlu0 %4690
        %v4692 = vlaneseq
        %v4693 = vshrl.u32 %v4692, 7
        %v4694 = vsub.s32 4, %v4693
        %v4695 = vrot.slane %v4593, %v4694
        %4697 = vbcast.lane.b32.xlu0 %v4695, 256
        %v4698 = vpop.permute.xlu0 %4697
        %v4699 = vlaneseq
        %v4700 = vshrl.u32 %v4699, 7
        %v4701 = vsub.s32 5, %v4700
        %v4702 = vrot.slane %v4593, %v4701
        %4704 = vbcast.lane.b32.xlu0 %v4702, 256
        %v4705 = vpop.permute.xlu0 %4704
        %v4706 = vlaneseq
        %v4707 = vshrl.u32 %v4706, 7
        %v4708 = vsub.s32 6, %v4707
        %v4709 = vrot.slane %v4593, %v4708
        %4711 = vbcast.lane.b32.xlu0 %v4709, 256
        %v4712 = vpop.permute.xlu0 %4711
        %v4713 = vlaneseq
        %v4714 = vshrl.u32 %v4713, 7
        %v4715 = vsub.s32 7, %v4714
        %v4716 = vrot.slane %v4593, %v4715
        %4718 = vbcast.lane.b32.xlu0 %v4716, 256
        %v4719 = vpop.permute.xlu0 %4718
        %v4720 = vlaneseq
        %v4721 = vshrl.u32 %v4720, 7
        %v4722 = vsub.s32 0, %v4721
        %v4723 = vrot.slane %v4594, %v4722
        %4725 = vbcast.lane.b32.xlu0 %v4723, 256
        %v4726 = vpop.permute.xlu0 %4725
        %v4727 = vlaneseq
        %v4728 = vshrl.u32 %v4727, 7
        %v4729 = vsub.s32 1, %v4728
        %v4730 = vrot.slane %v4594, %v4729
        %4732 = vbcast.lane.b32.xlu0 %v4730, 256
        %v4733 = vpop.permute.xlu0 %4732
        %v4734 = vlaneseq
        %v4735 = vshrl.u32 %v4734, 7
        %v4736 = vsub.s32 2, %v4735
        %v4737 = vrot.slane %v4594, %v4736
        %4739 = vbcast.lane.b32.xlu0 %v4737, 256
        %v4740 = vpop.permute.xlu0 %4739
        %v4741 = vlaneseq
        %v4742 = vshrl.u32 %v4741, 7
        %v4743 = vsub.s32 3, %v4742
        %v4744 = vrot.slane %v4594, %v4743
        %4746 = vbcast.lane.b32.xlu0 %v4744, 256
        %v4747 = vpop.permute.xlu0 %4746
        %v4748 = vlaneseq
        %v4749 = vshrl.u32 %v4748, 7
        %v4750 = vsub.s32 4, %v4749
        %v4751 = vrot.slane %v4594, %v4750
        %4753 = vbcast.lane.b32.xlu0 %v4751, 256
        %v4754 = vpop.permute.xlu0 %4753
        %v4755 = vlaneseq
        %v4756 = vshrl.u32 %v4755, 7
        %v4757 = vsub.s32 5, %v4756
        %v4758 = vrot.slane %v4594, %v4757
        %4760 = vbcast.lane.b32.xlu0 %v4758, 256
        %v4761 = vpop.permute.xlu0 %4760
        %v4762 = vlaneseq
        %v4763 = vshrl.u32 %v4762, 7
        %v4764 = vsub.s32 6, %v4763
        %v4765 = vrot.slane %v4594, %v4764
        %4767 = vbcast.lane.b32.xlu0 %v4765, 256
        %v4768 = vpop.permute.xlu0 %4767
        %v4769 = vlaneseq
        %v4770 = vshrl.u32 %v4769, 7
        %v4771 = vsub.s32 7, %v4770
        %v4772 = vrot.slane %v4594, %v4771
        %4774 = vbcast.lane.b32.xlu0 %v4772, 256
        %v4775 = vpop.permute.xlu0 %4774
        %v4776 = vlaneseq
        %v4777 = vshrl.u32 %v4776, 7
        %v4778 = vsub.s32 0, %v4777
        %v4779 = vrot.slane %v4595, %v4778
        %4781 = vbcast.lane.b32.xlu0 %v4779, 256
        %v4782 = vpop.permute.xlu0 %4781
        %v4783 = vlaneseq
        %v4784 = vshrl.u32 %v4783, 7
        %v4785 = vsub.s32 1, %v4784
        %v4786 = vrot.slane %v4595, %v4785
        %4788 = vbcast.lane.b32.xlu0 %v4786, 256
        %v4789 = vpop.permute.xlu0 %4788
        %v4790 = vlaneseq
        %v4791 = vshrl.u32 %v4790, 7
        %v4792 = vsub.s32 2, %v4791
        %v4793 = vrot.slane %v4595, %v4792
        %4795 = vbcast.lane.b32.xlu0 %v4793, 256
        %v4796 = vpop.permute.xlu0 %4795
        %v4797 = vlaneseq
        %v4798 = vshrl.u32 %v4797, 7
        %v4799 = vsub.s32 3, %v4798
        %v4800 = vrot.slane %v4595, %v4799
        %4802 = vbcast.lane.b32.xlu0 %v4800, 256
        %v4803 = vpop.permute.xlu0 %4802
        %v4804 = vlaneseq
        %v4805 = vshrl.u32 %v4804, 7
        %v4806 = vsub.s32 4, %v4805
        %v4807 = vrot.slane %v4595, %v4806
        %4809 = vbcast.lane.b32.xlu0 %v4807, 256
        %v4810 = vpop.permute.xlu0 %4809
        %v4811 = vlaneseq
        %v4812 = vshrl.u32 %v4811, 7
        %v4813 = vsub.s32 5, %v4812
        %v4814 = vrot.slane %v4595, %v4813
        %4816 = vbcast.lane.b32.xlu0 %v4814, 256
        %v4817 = vpop.permute.xlu0 %4816
        %v4818 = vlaneseq
        %v4819 = vshrl.u32 %v4818, 7
        %v4820 = vsub.s32 6, %v4819
        %v4821 = vrot.slane %v4595, %v4820
        %4823 = vbcast.lane.b32.xlu0 %v4821, 256
        %v4824 = vpop.permute.xlu0 %4823
        %v4825 = vlaneseq
        %v4826 = vshrl.u32 %v4825, 7
        %v4827 = vsub.s32 7, %v4826
        %v4828 = vrot.slane %v4595, %v4827
        %4830 = vbcast.lane.b32.xlu0 %v4828, 256
        %v4831 = vpop.permute.xlu0 %4830
        %v4832 = vsub.f32 %v4614, %v525
        %v4833 = vsub.f32 %v4621, %v529
        %v4834 = vsub.f32 %v4628, %v533
        %v4835 = vsub.f32 %v4635, %v537
        %v4836 = vsub.f32 %v4642, %v541
        %v4837 = vsub.f32 %v4649, %v545
        %v4838 = vsub.f32 %v4656, %v549
        %v4839 = vsub.f32 %v4663, %v553
        %v4840 = vsub.f32 %v4670, %v557
        %v4841 = vsub.f32 %v4677, %v561
        %v4842 = vsub.f32 %v4684, %v565
        %v4843 = vsub.f32 %v4691, %v569
        %v4844 = vsub.f32 %v4698, %v573
        %v4845 = vsub.f32 %v4705, %v577
        %v4846 = vsub.f32 %v4712, %v581
        %v4847 = vsub.f32 %v4719, %v585
        %v4848 = vsub.f32 %v4726, %v589
        %v4849 = vsub.f32 %v4733, %v593
        %v4850 = vsub.f32 %v4740, %v597
        %v4851 = vsub.f32 %v4747, %v601
        %v4852 = vsub.f32 %v4754, %v605
        %v4853 = vsub.f32 %v4761, %v609
        %v4854 = vsub.f32 %v4768, %v613
        %v4855 = vsub.f32 %v4775, %v617
        %v4856 = vsub.f32 %v4782, %v621
        %v4857 = vsub.f32 %v4789, %v625
        %v4858 = vsub.f32 %v4796, %v629
        %v4859 = vsub.f32 %v4803, %v633
        %v4860 = vsub.f32 %v4810, %v637
        %v4861 = vsub.f32 %v4817, %v641
        %v4862 = vsub.f32 %v4824, %v645
        %v4863 = vsub.f32 %v4831, %v649
        %v4864 = vmul.f32 %v4832, %v749
        %v4865 = vmul.f32 %v4833, %v753
        %v4866 = vmul.f32 %v4834, %v757
        %v4867 = vmul.f32 %v4835, %v761
        %v4868 = vmul.f32 %v4836, %v765
        %v4869 = vmul.f32 %v4837, %v769
        %v4870 = vmul.f32 %v4838, %v773
        %v4871 = vmul.f32 %v4839, %v777
        %v4872 = vmul.f32 %v4840, %v781
        %v4873 = vmul.f32 %v4841, %v785
        %v4874 = vmul.f32 %v4842, %v789
        %v4875 = vmul.f32 %v4843, %v793
        %v4876 = vmul.f32 %v4844, %v797
        %v4877 = vmul.f32 %v4845, %v801
        %v4878 = vmul.f32 %v4846, %v805
        %v4879 = vmul.f32 %v4847, %v809
        %v4880 = vmul.f32 %v4848, %v813
        %v4881 = vmul.f32 %v4849, %v817
        %v4882 = vmul.f32 %v4850, %v821
        %v4883 = vmul.f32 %v4851, %v825
        %v4884 = vmul.f32 %v4852, %v829
        %v4885 = vmul.f32 %v4853, %v833
        %v4886 = vmul.f32 %v4854, %v837
        %v4887 = vmul.f32 %v4855, %v841
        %v4888 = vmul.f32 %v4856, %v845
        %v4889 = vmul.f32 %v4857, %v849
        %v4890 = vmul.f32 %v4858, %v853
        %v4891 = vmul.f32 %v4859, %v857
        %v4892 = vmul.f32 %v4860, %v861
        %v4893 = vmul.f32 %v4861, %v865
        %v4894 = vmul.f32 %v4862, %v869
        %v4895 = vmul.f32 %v4863, %v873
        %v4896 = vxor.u32 %v4864, 2147483648
        %v4897 = vxor.u32 %v4865, 2147483648
        %v4898 = vxor.u32 %v4866, 2147483648
        %v4899 = vxor.u32 %v4867, 2147483648
        %v4900 = vxor.u32 %v4868, 2147483648
        %v4901 = vxor.u32 %v4869, 2147483648
        %v4902 = vxor.u32 %v4870, 2147483648
        %v4903 = vxor.u32 %v4871, 2147483648
        %v4904 = vxor.u32 %v4872, 2147483648
        %v4905 = vxor.u32 %v4873, 2147483648
        %v4906 = vxor.u32 %v4874, 2147483648
        %v4907 = vxor.u32 %v4875, 2147483648
        %v4908 = vxor.u32 %v4876, 2147483648
        %v4909 = vxor.u32 %v4877, 2147483648
        %v4910 = vxor.u32 %v4878, 2147483648
        %v4911 = vxor.u32 %v4879, 2147483648
        %v4912 = vxor.u32 %v4880, 2147483648
        %v4913 = vxor.u32 %v4881, 2147483648
        %v4914 = vxor.u32 %v4882, 2147483648
        %v4915 = vxor.u32 %v4883, 2147483648
        %v4916 = vxor.u32 %v4884, 2147483648
        %v4917 = vxor.u32 %v4885, 2147483648
        %v4918 = vxor.u32 %v4886, 2147483648
        %v4919 = vxor.u32 %v4887, 2147483648
        %v4920 = vxor.u32 %v4888, 2147483648
        %v4921 = vxor.u32 %v4889, 2147483648
        %v4922 = vxor.u32 %v4890, 2147483648
        %v4923 = vxor.u32 %v4891, 2147483648
        %v4924 = vxor.u32 %v4892, 2147483648
        %v4925 = vxor.u32 %v4893, 2147483648
        %v4926 = vxor.u32 %v4894, 2147483648
        %v4927 = vxor.u32 %v4895, 2147483648
        %v4928 = vmul.f32 %v4896, 1.442695
        %v4929 = vpow.pop %v4928
        %v4930 = vmul.f32 %v4897, 1.442695
        %v4931 = vpow.pop %v4930
        %v4932 = vmul.f32 %v4898, 1.442695
        %v4933 = vpow.pop %v4932
        %v4934 = vmul.f32 %v4899, 1.442695
        %v4935 = vpow.pop %v4934
        %v4936 = vmul.f32 %v4900, 1.442695
        %v4937 = vpow.pop %v4936
        %v4938 = vmul.f32 %v4901, 1.442695
        %v4939 = vpow.pop %v4938
        %v4940 = vmul.f32 %v4902, 1.442695
        %v4941 = vpow.pop %v4940
        %v4942 = vmul.f32 %v4903, 1.442695
        %v4943 = vpow.pop %v4942
        %v4944 = vmul.f32 %v4904, 1.442695
        %v4945 = vpow.pop %v4944
        %v4946 = vmul.f32 %v4905, 1.442695
        %v4947 = vpow.pop %v4946
        %v4948 = vmul.f32 %v4906, 1.442695
        %v4949 = vpow.pop %v4948
        %v4950 = vmul.f32 %v4907, 1.442695
        %v4951 = vpow.pop %v4950
        %v4952 = vmul.f32 %v4908, 1.442695
        %v4953 = vpow.pop %v4952
        %v4954 = vmul.f32 %v4909, 1.442695
        %v4955 = vpow.pop %v4954
        %v4956 = vmul.f32 %v4910, 1.442695
        %v4957 = vpow.pop %v4956
        %v4958 = vmul.f32 %v4911, 1.442695
        %v4959 = vpow.pop %v4958
        %v4960 = vmul.f32 %v4912, 1.442695
        %v4961 = vpow.pop %v4960
        %v4962 = vmul.f32 %v4913, 1.442695
        %v4963 = vpow.pop %v4962
        %v4964 = vmul.f32 %v4914, 1.442695
        %v4965 = vpow.pop %v4964
        %v4966 = vmul.f32 %v4915, 1.442695
        %v4967 = vpow.pop %v4966
        %v4968 = vmul.f32 %v4916, 1.442695
        %v4969 = vpow.pop %v4968
        %v4970 = vmul.f32 %v4917, 1.442695
        %v4971 = vpow.pop %v4970
        %v4972 = vmul.f32 %v4918, 1.442695
        %v4973 = vpow.pop %v4972
        %v4974 = vmul.f32 %v4919, 1.442695
        %v4975 = vpow.pop %v4974
        %v4976 = vmul.f32 %v4920, 1.442695
        %v4977 = vpow.pop %v4976
        %v4978 = vmul.f32 %v4921, 1.442695
        %v4979 = vpow.pop %v4978
        %v4980 = vmul.f32 %v4922, 1.442695
        %v4981 = vpow.pop %v4980
        %v4982 = vmul.f32 %v4923, 1.442695
        %v4983 = vpow.pop %v4982
        %v4984 = vmul.f32 %v4924, 1.442695
        %v4985 = vpow.pop %v4984
        %v4986 = vmul.f32 %v4925, 1.442695
        %v4987 = vpow.pop %v4986
        %v4988 = vmul.f32 %v4926, 1.442695
        %v4989 = vpow.pop %v4988
        %v4990 = vmul.f32 %v4927, 1.442695
        %v4991 = vpow.pop %v4990
        %v4992 = vadd.f32 %v4929, 1.0
        %v4993 = vadd.f32 %v4931, 1.0
        %v4994 = vadd.f32 %v4933, 1.0
        %v4995 = vadd.f32 %v4935, 1.0
        %v4996 = vadd.f32 %v4937, 1.0
        %v4997 = vadd.f32 %v4939, 1.0
        %v4998 = vadd.f32 %v4941, 1.0
        %v4999 = vadd.f32 %v4943, 1.0
        %v5000 = vadd.f32 %v4945, 1.0
        %v5001 = vadd.f32 %v4947, 1.0
        %v5002 = vadd.f32 %v4949, 1.0
        %v5003 = vadd.f32 %v4951, 1.0
        %v5004 = vadd.f32 %v4953, 1.0
        %v5005 = vadd.f32 %v4955, 1.0
        %v5006 = vadd.f32 %v4957, 1.0
        %v5007 = vadd.f32 %v4959, 1.0
        %v5008 = vadd.f32 %v4961, 1.0
        %v5009 = vadd.f32 %v4963, 1.0
        %v5010 = vadd.f32 %v4965, 1.0
        %v5011 = vadd.f32 %v4967, 1.0
        %v5012 = vadd.f32 %v4969, 1.0
        %v5013 = vadd.f32 %v4971, 1.0
        %v5014 = vadd.f32 %v4973, 1.0
        %v5015 = vadd.f32 %v4975, 1.0
        %v5016 = vadd.f32 %v4977, 1.0
        %v5017 = vadd.f32 %v4979, 1.0
        %v5018 = vadd.f32 %v4981, 1.0
        %v5019 = vadd.f32 %v4983, 1.0
        %v5020 = vadd.f32 %v4985, 1.0
        %v5021 = vadd.f32 %v4987, 1.0
        %v5022 = vadd.f32 %v4989, 1.0
        %v5023 = vadd.f32 %v4991, 1.0
        %v5024 = vrcp.pop %v4992
        %v5025 = vmul.f32 1.0, %v5024
        %v5026 = vrcp.pop %v4993
        %v5027 = vmul.f32 1.0, %v5026
        %v5028 = vrcp.pop %v4994
        %v5029 = vmul.f32 1.0, %v5028
        %v5030 = vrcp.pop %v4995
        %v5031 = vmul.f32 1.0, %v5030
        %v5032 = vrcp.pop %v4996
        %v5033 = vmul.f32 1.0, %v5032
        %v5034 = vrcp.pop %v4997
        %v5035 = vmul.f32 1.0, %v5034
        %v5036 = vrcp.pop %v4998
        %v5037 = vmul.f32 1.0, %v5036
        %v5038 = vrcp.pop %v4999
        %v5039 = vmul.f32 1.0, %v5038
        %v5040 = vrcp.pop %v5000
        %v5041 = vmul.f32 1.0, %v5040
        %v5042 = vrcp.pop %v5001
        %v5043 = vmul.f32 1.0, %v5042
        %v5044 = vrcp.pop %v5002
        %v5045 = vmul.f32 1.0, %v5044
        %v5046 = vrcp.pop %v5003
        %v5047 = vmul.f32 1.0, %v5046
        %v5048 = vrcp.pop %v5004
        %v5049 = vmul.f32 1.0, %v5048
        %v5050 = vrcp.pop %v5005
        %v5051 = vmul.f32 1.0, %v5050
        %v5052 = vrcp.pop %v5006
        %v5053 = vmul.f32 1.0, %v5052
        %v5054 = vrcp.pop %v5007
        %v5055 = vmul.f32 1.0, %v5054
        %v5056 = vrcp.pop %v5008
        %v5057 = vmul.f32 1.0, %v5056
        %v5058 = vrcp.pop %v5009
        %v5059 = vmul.f32 1.0, %v5058
        %v5060 = vrcp.pop %v5010
        %v5061 = vmul.f32 1.0, %v5060
        %v5062 = vrcp.pop %v5011
        %v5063 = vmul.f32 1.0, %v5062
        %v5064 = vrcp.pop %v5012
        %v5065 = vmul.f32 1.0, %v5064
        %v5066 = vrcp.pop %v5013
        %v5067 = vmul.f32 1.0, %v5066
        %v5068 = vrcp.pop %v5014
        %v5069 = vmul.f32 1.0, %v5068
        %v5070 = vrcp.pop %v5015
        %v5071 = vmul.f32 1.0, %v5070
        %v5072 = vrcp.pop %v5016
        %v5073 = vmul.f32 1.0, %v5072
        %v5074 = vrcp.pop %v5017
        %v5075 = vmul.f32 1.0, %v5074
        %v5076 = vrcp.pop %v5018
        %v5077 = vmul.f32 1.0, %v5076
        %v5078 = vrcp.pop %v5019
        %v5079 = vmul.f32 1.0, %v5078
        %v5080 = vrcp.pop %v5020
        %v5081 = vmul.f32 1.0, %v5080
        %v5082 = vrcp.pop %v5021
        %v5083 = vmul.f32 1.0, %v5082
        %v5084 = vrcp.pop %v5022
        %v5085 = vmul.f32 1.0, %v5084
        %v5086 = vrcp.pop %v5023
        %v5087 = vmul.f32 1.0, %v5086
        %v5088 = vmul.f32 %v1165, %v5025
        %v5089 = vmul.f32 %v1169, %v5027
        %v5090 = vmul.f32 %v1173, %v5029
        %v5091 = vmul.f32 %v1177, %v5031
        %v5092 = vmul.f32 %v1181, %v5033
        %v5093 = vmul.f32 %v1185, %v5035
        %v5094 = vmul.f32 %v1189, %v5037
        %v5095 = vmul.f32 %v1193, %v5039
        %v5096 = vmul.f32 %v1197, %v5041
        %v5097 = vmul.f32 %v1201, %v5043
        %v5098 = vmul.f32 %v1205, %v5045
        %v5099 = vmul.f32 %v1209, %v5047
        %v5100 = vmul.f32 %v1213, %v5049
        %v5101 = vmul.f32 %v1217, %v5051
        %v5102 = vmul.f32 %v1221, %v5053
        %v5103 = vmul.f32 %v1225, %v5055
        %v5104 = vmul.f32 %v1229, %v5057
        %v5105 = vmul.f32 %v1233, %v5059
        %v5106 = vmul.f32 %v1237, %v5061
        %v5107 = vmul.f32 %v1241, %v5063
        %v5108 = vmul.f32 %v1245, %v5065
        %v5109 = vmul.f32 %v1249, %v5067
        %v5110 = vmul.f32 %v1253, %v5069
        %v5111 = vmul.f32 %v1257, %v5071
        %v5112 = vmul.f32 %v1261, %v5073
        %v5113 = vmul.f32 %v1265, %v5075
        %v5114 = vmul.f32 %v1269, %v5077
        %v5115 = vmul.f32 %v1273, %v5079
        %v5116 = vmul.f32 %v1277, %v5081
        %v5117 = vmul.f32 %v1281, %v5083
        %v5118 = vmul.f32 %v1285, %v5085
        %v5119 = vmul.f32 %v1289, %v5087
        %v5120 = vsel %vm1354, %v5088, 0.0
        %v5121 = vsel %vm1354, %v5089, 0.0
        %v5122 = vadd.f32 %v5120, %v5121
        %v5123 = vsel %vm1354, %v5090, 0.0
        %v5124 = vadd.f32 %v5122, %v5123
        %v5125 = vsel %vm1354, %v5091, 0.0
        %v5126 = vadd.f32 %v5124, %v5125
        %v5127 = vsel %vm1354, %v5092, 0.0
        %v5128 = vadd.f32 %v5126, %v5127
        %v5129 = vsel %vm1354, %v5093, 0.0
        %v5130 = vadd.f32 %v5128, %v5129
        %v5131 = vsel %vm1354, %v5094, 0.0
        %v5132 = vadd.f32 %v5130, %v5131
        %v5133 = vsel %vm1354, %v5095, 0.0
        %v5134 = vadd.f32 %v5132, %v5133
        %v5135 = vsel %vm1354, %v5096, 0.0
        %v5136 = vadd.f32 %v5134, %v5135
        %v5137 = vsel %vm1354, %v5097, 0.0
        %v5138 = vadd.f32 %v5136, %v5137
        %v5139 = vsel %vm1354, %v5098, 0.0
        %v5140 = vadd.f32 %v5138, %v5139
        %v5141 = vsel %vm1354, %v5099, 0.0
        %v5142 = vadd.f32 %v5140, %v5141
        %v5143 = vsel %vm1354, %v5100, 0.0
        %v5144 = vadd.f32 %v5142, %v5143
        %v5145 = vsel %vm1354, %v5101, 0.0
        %v5146 = vadd.f32 %v5144, %v5145
        %v5147 = vsel %vm1354, %v5102, 0.0
        %v5148 = vadd.f32 %v5146, %v5147
        %v5149 = vsel %vm1354, %v5103, 0.0
        %v5150 = vadd.f32 %v5148, %v5149
        %v5151 = vsel %vm1354, %v5104, 0.0
        %v5152 = vadd.f32 %v5150, %v5151
        %v5153 = vsel %vm1354, %v5105, 0.0
        %v5154 = vadd.f32 %v5152, %v5153
        %v5155 = vsel %vm1354, %v5106, 0.0
        %v5156 = vadd.f32 %v5154, %v5155
        %v5157 = vsel %vm1354, %v5107, 0.0
        %v5158 = vadd.f32 %v5156, %v5157
        %v5159 = vsel %vm1354, %v5108, 0.0
        %v5160 = vadd.f32 %v5158, %v5159
        %v5161 = vsel %vm1354, %v5109, 0.0
        %v5162 = vadd.f32 %v5160, %v5161
        %v5163 = vsel %vm1354, %v5110, 0.0
        %v5164 = vadd.f32 %v5162, %v5163
        %v5165 = vsel %vm1354, %v5111, 0.0
        %v5166 = vadd.f32 %v5164, %v5165
        %v5167 = vsel %vm1354, %v5112, 0.0
        %v5168 = vadd.f32 %v5166, %v5167
        %v5169 = vsel %vm1354, %v5113, 0.0
        %v5170 = vadd.f32 %v5168, %v5169
        %v5171 = vsel %vm1354, %v5114, 0.0
        %v5172 = vadd.f32 %v5170, %v5171
        %v5173 = vsel %vm1354, %v5115, 0.0
        %v5174 = vadd.f32 %v5172, %v5173
        %v5175 = vsel %vm1354, %v5116, 0.0
        %v5176 = vadd.f32 %v5174, %v5175
        %v5177 = vsel %vm1354, %v5117, 0.0
        %v5178 = vadd.f32 %v5176, %v5177
        %v5179 = vsel %vm1354, %v5118, 0.0
        %v5180 = vadd.f32 %v5178, %v5179
        %v5181 = vsel %vm1354, %v5119, 0.0
        %v5182 = vadd.f32 %v5180, %v5181
        %v5183 = vadd.f32 %v5182, %v205
        %v5184 = vmul.f32 %v1454, %v5025
        %v5185 = vmul.f32 %v1458, %v5027
        %v5186 = vmul.f32 %v1462, %v5029
        %v5187 = vmul.f32 %v1466, %v5031
        %v5188 = vmul.f32 %v1470, %v5033
        %v5189 = vmul.f32 %v1474, %v5035
        %v5190 = vmul.f32 %v1478, %v5037
        %v5191 = vmul.f32 %v1482, %v5039
        %v5192 = vmul.f32 %v1486, %v5041
        %v5193 = vmul.f32 %v1490, %v5043
        %v5194 = vmul.f32 %v1494, %v5045
        %v5195 = vmul.f32 %v1498, %v5047
        %v5196 = vmul.f32 %v1502, %v5049
        %v5197 = vmul.f32 %v1506, %v5051
        %v5198 = vmul.f32 %v1510, %v5053
        %v5199 = vmul.f32 %v1514, %v5055
        %v5200 = vmul.f32 %v1518, %v5057
        %v5201 = vmul.f32 %v1522, %v5059
        %v5202 = vmul.f32 %v1526, %v5061
        %v5203 = vmul.f32 %v1530, %v5063
        %v5204 = vmul.f32 %v1534, %v5065
        %v5205 = vmul.f32 %v1538, %v5067
        %v5206 = vmul.f32 %v1542, %v5069
        %v5207 = vmul.f32 %v1546, %v5071
        %v5208 = vmul.f32 %v1550, %v5073
        %v5209 = vmul.f32 %v1554, %v5075
        %v5210 = vmul.f32 %v1558, %v5077
        %v5211 = vmul.f32 %v1562, %v5079
        %v5212 = vmul.f32 %v1566, %v5081
        %v5213 = vmul.f32 %v1570, %v5083
        %v5214 = vmul.f32 %v1574, %v5085
        %v5215 = vmul.f32 %v1578, %v5087
        %v5216 = vsel %vm1354, %v5184, 0.0
        %v5217 = vsel %vm1354, %v5185, 0.0
        %v5218 = vadd.f32 %v5216, %v5217
        %v5219 = vsel %vm1354, %v5186, 0.0
        %v5220 = vadd.f32 %v5218, %v5219
        %v5221 = vsel %vm1354, %v5187, 0.0
        %v5222 = vadd.f32 %v5220, %v5221
        %v5223 = vsel %vm1354, %v5188, 0.0
        %v5224 = vadd.f32 %v5222, %v5223
        %v5225 = vsel %vm1354, %v5189, 0.0
        %v5226 = vadd.f32 %v5224, %v5225
        %v5227 = vsel %vm1354, %v5190, 0.0
        %v5228 = vadd.f32 %v5226, %v5227
        %v5229 = vsel %vm1354, %v5191, 0.0
        %v5230 = vadd.f32 %v5228, %v5229
        %v5231 = vsel %vm1354, %v5192, 0.0
        %v5232 = vadd.f32 %v5230, %v5231
        %v5233 = vsel %vm1354, %v5193, 0.0
        %v5234 = vadd.f32 %v5232, %v5233
        %v5235 = vsel %vm1354, %v5194, 0.0
        %v5236 = vadd.f32 %v5234, %v5235
        %v5237 = vsel %vm1354, %v5195, 0.0
        %v5238 = vadd.f32 %v5236, %v5237
        %v5239 = vsel %vm1354, %v5196, 0.0
        %v5240 = vadd.f32 %v5238, %v5239
        %v5241 = vsel %vm1354, %v5197, 0.0
        %v5242 = vadd.f32 %v5240, %v5241
        %v5243 = vsel %vm1354, %v5198, 0.0
        %v5244 = vadd.f32 %v5242, %v5243
        %v5245 = vsel %vm1354, %v5199, 0.0
        %v5246 = vadd.f32 %v5244, %v5245
        %v5247 = vsel %vm1354, %v5200, 0.0
        %v5248 = vadd.f32 %v5246, %v5247
        %v5249 = vsel %vm1354, %v5201, 0.0
        %v5250 = vadd.f32 %v5248, %v5249
        %v5251 = vsel %vm1354, %v5202, 0.0
        %v5252 = vadd.f32 %v5250, %v5251
        %v5253 = vsel %vm1354, %v5203, 0.0
        %v5254 = vadd.f32 %v5252, %v5253
        %v5255 = vsel %vm1354, %v5204, 0.0
        %v5256 = vadd.f32 %v5254, %v5255
        %v5257 = vsel %vm1354, %v5205, 0.0
        %v5258 = vadd.f32 %v5256, %v5257
        %v5259 = vsel %vm1354, %v5206, 0.0
        %v5260 = vadd.f32 %v5258, %v5259
        %v5261 = vsel %vm1354, %v5207, 0.0
        %v5262 = vadd.f32 %v5260, %v5261
        %v5263 = vsel %vm1354, %v5208, 0.0
        %v5264 = vadd.f32 %v5262, %v5263
        %v5265 = vsel %vm1354, %v5209, 0.0
        %v5266 = vadd.f32 %v5264, %v5265
        %v5267 = vsel %vm1354, %v5210, 0.0
        %v5268 = vadd.f32 %v5266, %v5267
        %v5269 = vsel %vm1354, %v5211, 0.0
        %v5270 = vadd.f32 %v5268, %v5269
        %v5271 = vsel %vm1354, %v5212, 0.0
        %v5272 = vadd.f32 %v5270, %v5271
        %v5273 = vsel %vm1354, %v5213, 0.0
        %v5274 = vadd.f32 %v5272, %v5273
        %v5275 = vsel %vm1354, %v5214, 0.0
        %v5276 = vadd.f32 %v5274, %v5275
        %v5277 = vsel %vm1354, %v5215, 0.0
        %v5278 = vadd.f32 %v5276, %v5277
        %v5279 = vadd.f32 %v5278, %v207
        %v5280 = vmul.f32 %v1711, %v4575
        %v5281 = vadd.f32 %v5280, %v1718
        %v5282 = vadd.f32 %v5281, %v5183
        %v5283 = vadd.f32 %v1726, %v5279
        %v5284 = vadd.f32 %v5283, 1e-08
        %v5285 = vrcp.pop %v5284
        %v5286 = vmul.f32 %v5282, %v5285
        %v5288 = vlaneseq
        %v5289 = vshrl.u32 %v5288, 7
        %v5290 = vsub.s32 0, %v5289
        %v5291 = vrot.slane %v192, %v5290
        %v5293 = vmul.f32 %v5286, %v5291
        %v5295 = vlaneseq
        %v5296 = vshrl.u32 %v5295, 7
        %v5297 = vsub.s32 0, %v5296
        %v5298 = vrot.slane %v193, %v5297
        %v5300 = vadd.f32 %v5293, %v5298
        %v5302 = vlaneseq
        %v5303 = vshrl.u32 %v5302, 7
        %v5304 = vsub.s32 0, %v5303
        %v5305 = vrot.slane %v194, %v5304
        %v5307 = vmul.f32 %v5300, %v5305
        %v5308 = vsel %vm1354, %v5307, 0.0
        %5309 = vadd.xlane.f32.xlu0 %v5308
        %v5310 = vpop.xlane.xlu0 %5309
        %v5312 = vlaneseq
        %v5313 = vshrl.u32 %v5312, 7
        %v5314 = vsub.s32 0, %v5313
        %v5315 = vrot.slane %v195, %v5314
        %v5317 = vadd.f32 %v5310, %v5315
        %v5318 = vxor.u32 %v5317, 2147483648
        %v5319 = vmul.f32 %v5318, 1.442695
        %v5320 = vpow.pop %v5319
        %v5321 = vadd.f32 %v5320, 1.0
        %v5322 = vrcp.pop %v5321
        %v5323 = vmul.f32 1.0, %v5322
        %v5324 = vmul.f32 %v215, %v5323
        %v5325 = vadd.f32 %v212, %v5324
        %vm5326 = vcmp.gt.f32.partialorder %v215, 0.5
        %v5327 = vadd.f32 %v5325, %v5323
        %vm5328 = vcmp.gt.f32.partialorder %v5327, 0.99
        %vm5329 = vmand %vm5326, %vm5328
        %v5330 = vsel %vm5329, 1.0, 0.0
        %v5331 = vsub.f32 1.0, %v5330
        %v5332 = vmul.f32 %v215, %v5331
        %v5333 = vadd.f32 %v214, %v5332
        %v5334 = vsub.f32 1.0, %v5325
        %v5335 = vmul.f32 %v5330, %v5334
        %v5336 = vadd.f32 %v5324, %v5335
        %5338 = vset.pattern.permute.xlu0 0
        %5339 = vperm.xlu0 %5338, %v5336
        %v5340 = vpop.permute.xlu0 %5339
        %v5342 = vmul.f32 %v5340, %v5300
        %v5343 = vadd.f32 %v211, %v5342
        %v5344 = vadd.f32 %v213, %v5324
        %s5345 = sadd.s32 %s209, 1
      $region69: #{ltc_forward.1} parent=61 // loop_footer
        _
      $region70: #{ltc_forward.1} parent=61 // loop_footer_branch
        %208 = sbr.rel target = $region66
      $region71: #{ltc_forward.1} parent=61 // loop_exit
        _
      %v5346 = vsub.f32 1.0, %v212
      %v5347 = vmul.f32 %v215, %v5346
      %5349 = vset.pattern.permute.xlu0 0
      %5350 = vperm.xlu0 %5349, %v5347
      %v5351 = vpop.permute.xlu0 %5350
      %v5353 = vmul.f32 %v5351, %v210
      %v5354 = vadd.f32 %v211, %v5353
      %s5355 = scalar_lea.vmem [#allocation3], %s203
      %vm5356 = vcmask 254976
      %5357 = vst.msk [vmem:[%s5355] sm:$0x3] %vm5356, %v5354
      %5358 = vst.msk [vmem:[#allocation5] sm:$0x3] %vm5356, %v5354
      %v5359 = vld [vmem:[%s15] sm:$0x3]
      %v5360 = vadd.f32 %v5359, %v213
      %vm5361 = vcmask 1024
      %5362 = vst.msk [vmem:[%s15] sm:$0x3] %vm5361, %v5360
      %v5363 = vld [vmem:[%s16] sm:$0x3]
      %v5364 = vadd.f32 %v5363, %v214
      %v5365 = vadd.f32 %v5364, 1.0
      %5366 = vst.msk [vmem:[%s16] sm:$0x3] %vm5361, %v5365
    $region62: #{ltc_forward.1} parent=1 // loop_footer
      %s201 = sadd.s32 1, %s197
    $region63: #{ltc_forward.1} parent=1 // loop_footer_branch
      %196 = sbr.rel target = $region59
    $region64: #{ltc_forward.1} parent=1 // loop_exit
      _
    // Predicated region
    $region72: #{ltc_forward.1} parent=1 // pred_check
      _
    $region73: #{ltc_forward.1} parent=1 // pred_check_branch
      %5368 = sbr.rel (0) target = $region75
    $region74: #{ltc_forward.1} parent=1 // pred_region
      %s5370 = ssub.s32 96, 96
      %5371 = vsyncadd [#allocation4], %s5370
      %s5372 = sshll.u32 [#allocation3], 4
      %s5373 = int_to_ptr.vmem [resolvable:$true] %s5372
      %5378 = dma.vmem_to_hbm [thread:$0]  %s5373, 96, %s13, [#allocation4], 32, 32, 2
    $region75: #{ltc_forward.1} parent=1 // pred_fallthru
      _
    // Predicated region
    $region76: #{ltc_forward.1} parent=1 // pred_check
      _
    $region77: #{ltc_forward.1} parent=1 // pred_check_branch
      %5380 = sbr.rel (0) target = $region79
    $region78: #{ltc_forward.1} parent=1 // pred_region
      %s5382 = ssub.s32 32, 32
      %5383 = vsyncadd [#allocation6], %s5382
      %s5385 = sshll.u32 [#allocation5], 4
      %s5386 = int_to_ptr.vmem [resolvable:$true] %s5385
      %5388 = dma.vmem_to_hbm [thread:$0]  %s5386, 32, %s14, [#allocation6]
    $region79: #{ltc_forward.1} parent=1 // pred_fallthru
      _
    // Predicated region
    $region80: #{ltc_forward.1} parent=1 // pred_check
      _
    $region81: #{ltc_forward.1} parent=1 // pred_check_branch
      %5390 = sbr.rel (0) target = $region83
    $region82: #{ltc_forward.1} parent=1 // pred_region
      _
    $region83: #{ltc_forward.1} parent=1 // pred_fallthru
      _
    // Predicated region
    $region84: #{ltc_forward.1} parent=1 // pred_check
      _
    $region85: #{ltc_forward.1} parent=1 // pred_check_branch
      %5392 = sbr.rel (0) target = $region87
    $region86: #{ltc_forward.1} parent=1 // pred_region
      _
    $region87: #{ltc_forward.1} parent=1 // pred_fallthru
      _
    // Predicated region
    $region88: #{ltc_forward.1} parent=1 // pred_check
      _
    $region89: #{ltc_forward.1} parent=1 // pred_check_branch
      %5394 = sbr.rel (0) target = $region91
    $region90: #{ltc_forward.1} parent=1 // pred_region
      %5395 = dma.done [#allocation4], 96
    $region91: #{ltc_forward.1} parent=1 // pred_fallthru
      _
    // Predicated region
    $region92: #{ltc_forward.1} parent=1 // pred_check
      _
    $region93: #{ltc_forward.1} parent=1 // pred_check_branch
      %5397 = sbr.rel (0) target = $region95
    $region94: #{ltc_forward.1} parent=1 // pred_region
      %5398 = dma.done [#allocation6], 32
    $region95: #{ltc_forward.1} parent=1 // pred_fallthru
      _
    // Predicated region
    $region96: #{ltc_forward.1} parent=1 // pred_check
      _
    $region97: #{ltc_forward.1} parent=1 // pred_check_branch
      %5400 = sbr.rel (0) target = $region99
    $region98: #{ltc_forward.1} parent=1 // pred_region
      _
    $region99: #{ltc_forward.1} parent=1 // pred_fallthru
      _
    // Predicated region
    $region100: #{ltc_forward.1} parent=1 // pred_check
      _
    $region101: #{ltc_forward.1} parent=1 // pred_check_branch
      %5402 = sbr.rel (0) target = $region103
    $region102: #{ltc_forward.1} parent=1 // pred_region
      _
    $region103: #{ltc_forward.1} parent=1 // pred_fallthru
      _
    %5403 = vsyncpa [#allocation4], 1
    %5404 = vsyncpa [#allocation6], 1

</llo_original>
